<compile_context>
chip_gen: v5e
topology: v5e:2x2
jax: 0.10.0
libtpu: 0.0.40
codegen_flags: <defaults>
</compile_context>

<pallas_src>
import math

import jax
import jax.numpy as jnp
from jax import lax
from jax.experimental import pallas as pl
from jax.experimental.pallas import tpu as pltpu

BN_EPS = 1e-5


def _gelu(x):
    # TODO(synk): PyTorch nn.GELU defaults to the exact erf formulation; the
    # tanh approximation is used here (|diff| < ~1e-3) since erf lowering in
    # Mosaic is not guaranteed.
    c = 0.7978845608028654  # sqrt(2/pi)
    return 0.5 * x * (1.0 + jnp.tanh(c * (x + 0.044715 * x * x * x)))


def _mm(a, w):
    # bf16 operands into the MXU, f32 accumulation.
    return jnp.dot(a.astype(jnp.bfloat16), w, preferred_element_type=jnp.float32)


def make_eugiformer_kernel(h_dim, n_heads, seq_len, batch_tile):
    H, NH, S, BT = h_dim, n_heads, seq_len, batch_tile
    R = BT * S  # rows per grid step (fills the MXU M dimension)

    def kernel(x_ref, pe_ref,
               pre_w1, pre_b1, pre_w2, pre_b2,
               post_w1, post_b1, post_w2t, post_b2,
               wq, bq, wk, bk, wv, bv, wo, bo,
               fw1, fb1, fw2, fb2,
               bn1s, bn1b, bn2s, bn2b,
               out_ref, x_scr):
        l = pl.program_id(1)
        last = pl.num_programs(1) - 1

        # ---- init once per batch tile: positional encoding + preprocess FFN
        @pl.when(l == 0)
        def _init():
            xin = (x_ref[...] + pe_ref[...][None, :, :]).reshape(R, H)
            hpre = _gelu(_mm(xin, pre_w1[...]) + pre_b1[...])
            x_scr[...] = _mm(hpre, pre_w2[...]) + pre_b2[...]

        x = x_scr[...]                              # (R, H) f32
        xb = x.astype(jnp.bfloat16)

        # ---- multi-head self-attention (head split lives in the packed weights)
        wq_l, bq_l = wq[0], bq[0]
        wk_l, bk_l = wk[0], bk[0]
        wv_l, bv_l = wv[0], bv[0]
        wo_l = wo[0]
        a_out = None
        for h in range(NH):
            qh = _mm(xb, wq_l[h]) + bq_l[h]         # (R, HD) — 1/sqrt(HD) pre-folded
            kh = _mm(xb, wk_l[h]) + bk_l[h]         # (R, HD)
            vh = _mm(xb, wv_l[h]) + bv_l[h]         # (R, HD)
            qhb = qh.astype(jnp.bfloat16)
            khb = kh.astype(jnp.bfloat16)
            vhb = vh.astype(jnp.bfloat16)
            ctxs = []
            for b in range(BT):                     # per-sample attention
                rows = slice(b * S, (b + 1) * S)    # sublane-aligned (S % 8 == 0)
                s = lax.dot_general(qhb[rows], khb[rows],
                                    (((1,), (1,)), ((), ())),
                                    preferred_element_type=jnp.float32)   # (S, S)
                s = s - jnp.max(s, axis=-1, keepdims=True)
                p = jnp.exp(s)
                p = p * pl.reciprocal(jnp.sum(p, axis=-1, keepdims=True),
                                      approx=True)
                ctxs.append(jnp.dot(p.astype(jnp.bfloat16), vhb[rows],
                                    preferred_element_type=jnp.float32))  # (S, HD)
            ctx = ctxs[0] if BT == 1 else jnp.concatenate(ctxs, axis=0)   # (R, HD)
            head_out = _mm(ctx, wo_l[h])            # (R, H) — no lane concat needed
            a_out = head_out if a_out is None else a_out + head_out
        x = a_out + bo[0] + x                       # dropout(A) + x, eval => identity

        # ---- BatchNorm1d #1 (folded affine)
        x = x * bn1s[0] + bn1b[0]

        # ---- FFN + residual
        hmid = _gelu(_mm(x, fw1[0]) + fb1[0])
        x = _mm(hmid, fw2[0]) + fb2[0] + x

        # ---- BatchNorm1d #2 (folded affine)
        x = x * bn2s[0] + bn2b[0]
        x_scr[...] = x

        # ---- finalize once per batch tile: postprocess FFN + min-max norm
        @pl.when(l == last)
        def _final():
            hp = _gelu(_mm(x, post_w1[...]) + post_b1[...])       # (R, 2H)
            # output_dim == 1: elementwise * + lane reduce instead of an N=1 matmul
            y = jnp.sum(hp.reshape(BT, S, 2 * H) * post_w2t[...][None, :, :],
                        axis=-1) + post_b2[...]                    # (BT, S)
            ymin = jnp.min(y, axis=-1, keepdims=True)
            ymax = jnp.max(y, axis=-1, keepdims=True)
            inv = pl.reciprocal(jnp.maximum(ymax - ymin, 1e-12), approx=True)
            out_ref[0] = (y - ymin) * inv                          # lane-dense store

    return kernel


def _pick_batch_tile(batch, seq_len):
    """Samples per grid step: enough rows to fill the MXU M dim, legal blocks."""
    target = max(1, 256 // max(seq_len, 1))
    for bt in range(min(batch, target), 0, -1):
        if batch % bt == 0 and (bt == batch or bt % 8 == 0):
            return bt
    return batch


def pack_params(params, *, num_layers, h_dim, n_heads):
    """Fold BN / attention scale and repack weights head-major, bf16 for matmuls."""
    H, NH, L = h_dim, n_heads, num_layers
    HD = H // NH
    scale = 1.0 / math.sqrt(HD)
    bf16 = jnp.bfloat16
    f32 = jnp.float32

    win, bin_ = params["mha_win"], params["mha_bin"]          # (L,H,3H), (L,3H)
    wout, bout = params["mha_wout"], params["mha_bout"]       # (L,H,H), (L,H)

    def head_major(w):                                        # (L,H,H) -> (L,NH,H,HD)
        return w.reshape(L, H, NH, HD).transpose(0, 2, 1, 3)

    def fold_bn(g, b, m, v):
        s = g * lax.rsqrt(v + BN_EPS)
        return s.reshape(L, 1, H).astype(f32), (b - m * s).reshape(L, 1, H).astype(f32)

    bn1s, bn1b = fold_bn(params["bn1_g"], params["bn1_b"], params["bn1_m"], params["bn1_v"])
    bn2s, bn2b = fold_bn(params["bn2_g"], params["bn2_b"], params["bn2_m"], params["bn2_v"])

    p = {
        "pe": params["pe"].astype(f32),                                   # (S, H)
        "pre_w1": params["pre_w1"].astype(bf16), "pre_b1": params["pre_b1"].astype(f32),
        "pre_w2": params["pre_w2"].astype(bf16), "pre_b2": params["pre_b2"].astype(f32),
        "post_w1": params["post_w1"].astype(bf16), "post_b1": params["post_b1"].astype(f32),
        "post_w2t": params["post_w2"].T.astype(f32),                      # (1, 2H)
        "post_b2": params["post_b2"].astype(f32),                         # (1, 1)
        # attention scale folded into Wq / bq
        "wq": head_major(win[:, :, 0:H] * scale).astype(bf16),            # (L,NH,H,HD)
        "wk": head_major(win[:, :, H:2 * H]).astype(bf16),
        "wv": head_major(win[:, :, 2 * H:3 * H]).astype(bf16),
        "bq": (bin_[:, 0:H] * scale).reshape(L, NH, 1, HD).astype(f32),
        "bk": bin_[:, H:2 * H].reshape(L, NH, 1, HD).astype(f32),
        "bv": bin_[:, 2 * H:3 * H].reshape(L, NH, 1, HD).astype(f32),
        "wo": wout.reshape(L, NH, HD, H).astype(bf16),
        "bo": bout.reshape(L, 1, H).astype(f32),
        "fw1": params["ffn_w1"].astype(bf16), "fb1": params["ffn_b1"].reshape(L, 1, 2 * H).astype(f32),
        "fw2": params["ffn_w2"].astype(bf16), "fb2": params["ffn_b2"].reshape(L, 1, H).astype(f32),
        "bn1s": bn1s, "bn1b": bn1b, "bn2s": bn2s, "bn2b": bn2b,
    }
    return p


def eugiformer_forward(x_torch_layout, params, *, num_layers, h_dim, head, seq_len):
    """x_torch_layout: (B, h_dim, seq) — same layout as the PyTorch module input."""
    B = x_torch_layout.shape[0]
    S, H, L, NH = seq_len, h_dim, num_layers, head
    BT = _pick_batch_tile(B, S)
    R = BT * S

    x = jnp.transpose(x_torch_layout, (0, 2, 1)).astype(jnp.float32)      # (B, S, H)
    packed = pack_params(params, num_layers=L, h_dim=H, n_heads=NH)

    inv_names = ("pe", "pre_w1", "pre_b1", "pre_w2", "pre_b2",
                 "post_w1", "post_b1", "post_w2t", "post_b2")
    lay_names = ("wq", "bq", "wk", "bk", "wv", "bv", "wo", "bo",
                 "fw1", "fb1", "fw2", "fb2", "bn1s", "bn1b", "bn2s", "bn2b")
    inv_list = [packed[n] for n in inv_names]
    lay_list = [packed[n] for n in lay_names]

    def invariant_spec(arr):
        nd = arr.ndim
        # TODO(synk): on v7x, pipeline_mode=pl.Buffered(1) would single-buffer
        # these layer-invariant blocks; left at the default to guarantee clean
        # compilation on all toolchains.
        return pl.BlockSpec(arr.shape, lambda bt, l: (0,) * nd)

    def per_layer_spec(arr):
        nd = arr.ndim
        return pl.BlockSpec((1,) + arr.shape[1:],
                            lambda bt, l: (l,) + (0,) * (nd - 1))

    in_specs = ([pl.BlockSpec((BT, S, H), lambda bt, l: (bt, 0, 0))]
                + [invariant_spec(a) for a in inv_list]
                + [per_layer_spec(a) for a in lay_list])

    kernel = make_eugiformer_kernel(H, NH, S, BT)
    out = pl.pallas_call(
        kernel,
        out_shape=jax.ShapeDtypeStruct((B // BT, BT, S), jnp.float32),
        grid=(B // BT, L),
        in_specs=in_specs,
        out_specs=pl.BlockSpec((1, BT, S), lambda bt, l: (bt, 0, 0)),
        scratch_shapes=[pltpu.VMEM((R, H), jnp.float32)],   # persistent activation
        compiler_params=pltpu.CompilerParams(
            dimension_semantics=("parallel", "arbitrary"),
            vmem_limit_bytes=64 * 1024 * 1024),
    )(x, *inv_list, *lay_list)

    out = out.reshape(B, S)
    return out[:, None, :]                                   # (B, 1, S) PyTorch layout


def init_params(key, num_layers, h_dim, seq_len):
    """Deterministic synthetic parameters in (in, out) layout (torch-equivalent)."""
    H, S, L = h_dim, seq_len, num_layers
    keys = iter(jax.random.split(key, 64))

    def unif(shape, fan_in):
        bound = 1.0 / math.sqrt(fan_in)
        return jax.random.uniform(next(keys), shape, jnp.float32, -bound, bound)

    p = {}
    # Positional encoding slice (S, H)  (factor=1.0, start=0)
    pos = jnp.arange(S, dtype=jnp.float32)[:, None]
    div = jnp.exp(jnp.arange(0, H, 2, dtype=jnp.float32) * (-math.log(10000.0) / H))
    pe = jnp.zeros((S, H), jnp.float32)
    pe = pe.at[:, 0::2].set(jnp.sin(pos * div))
    pe = pe.at[:, 1::2].set(jnp.cos(pos * div))
    p["pe"] = pe

    p["pre_w1"] = unif((H, 2 * H), H)
    p["pre_b1"] = unif((1, 2 * H), H)
    p["pre_w2"] = unif((2 * H, H), 2 * H)
    p["pre_b2"] = unif((1, H), 2 * H)

    p["mha_win"] = unif((L, H, 3 * H), H)
    p["mha_bin"] = jnp.zeros((L, 3 * H), jnp.float32)
    p["mha_wout"] = unif((L, H, H), H)
    p["mha_bout"] = jnp.zeros((L, H), jnp.float32)

    p["ffn_w1"] = unif((L, H, 2 * H), H)
    p["ffn_b1"] = unif((L, 2 * H), H)
    p["ffn_w2"] = unif((L, 2 * H, H), 2 * H)
    p["ffn_b2"] = unif((L, H), 2 * H)

    for name in ("bn1", "bn2"):
        p[f"{name}_g"] = jnp.ones((L, H), jnp.float32)
        p[f"{name}_b"] = jnp.zeros((L, H), jnp.float32)
        p[f"{name}_m"] = jnp.zeros((L, H), jnp.float32)
        p[f"{name}_v"] = jnp.ones((L, H), jnp.float32)

    p["post_w1"] = unif((H, 2 * H), H)
    p["post_b1"] = unif((1, 2 * H), H)
    p["post_w2"] = unif((2 * H, 1), 2 * H)
    p["post_b2"] = unif((1, 1), 2 * H)
    return p


if __name__ == "__main__":
    # Small shapes consistent with the module (reduce=True => feature dim is h_dim).
    B, H, S, NHEAD, L = 2, 32, 8, 4, 2

    key = jax.random.PRNGKey(0)
    kx, kp = jax.random.split(key)
    x = jax.random.normal(kx, (B, H, S), dtype=jnp.float32)   # PyTorch layout (B, h_dim, seq)
    params = init_params(kp, num_layers=L, h_dim=H, seq_len=S)

    out = eugiformer_forward(x, params, num_layers=L, h_dim=H, head=NHEAD, seq_len=S)
    out = jax.block_until_ready(out)

    assert out.shape == (B, 1, S), out.shape
    assert bool(jnp.all(jnp.isfinite(out)))
    print("KERNEL_OK")
</pallas_src>

<mosaic_0001>
module attributes {stable_mosaic.version = 11 : i64} {
  func.func @kernel(%arg0: i32, %arg1: i32, %arg2: memref<2x8x32xf32, #tpu.memory_space<vmem>>, %arg3: memref<8x32xf32, #tpu.memory_space<vmem>>, %arg4: memref<32x64xbf16, #tpu.memory_space<vmem>>, %arg5: memref<1x64xf32, #tpu.memory_space<vmem>>, %arg6: memref<64x32xbf16, #tpu.memory_space<vmem>>, %arg7: memref<1x32xf32, #tpu.memory_space<vmem>>, %arg8: memref<32x64xbf16, #tpu.memory_space<vmem>>, %arg9: memref<1x64xf32, #tpu.memory_space<vmem>>, %arg10: memref<1x64xf32, #tpu.memory_space<vmem>>, %arg11: memref<1x1xf32, #tpu.memory_space<vmem>>, %arg12: memref<1x4x32x8xbf16, #tpu.memory_space<vmem>>, %arg13: memref<1x4x1x8xf32, #tpu.memory_space<vmem>>, %arg14: memref<1x4x32x8xbf16, #tpu.memory_space<vmem>>, %arg15: memref<1x4x1x8xf32, #tpu.memory_space<vmem>>, %arg16: memref<1x4x32x8xbf16, #tpu.memory_space<vmem>>, %arg17: memref<1x4x1x8xf32, #tpu.memory_space<vmem>>, %arg18: memref<1x4x8x32xbf16, #tpu.memory_space<vmem>>, %arg19: memref<1x1x32xf32, #tpu.memory_space<vmem>>, %arg20: memref<1x32x64xbf16, #tpu.memory_space<vmem>>, %arg21: memref<1x1x64xf32, #tpu.memory_space<vmem>>, %arg22: memref<1x64x32xbf16, #tpu.memory_space<vmem>>, %arg23: memref<1x1x32xf32, #tpu.memory_space<vmem>>, %arg24: memref<1x1x32xf32, #tpu.memory_space<vmem>>, %arg25: memref<1x1x32xf32, #tpu.memory_space<vmem>>, %arg26: memref<1x1x32xf32, #tpu.memory_space<vmem>>, %arg27: memref<1x1x32xf32, #tpu.memory_space<vmem>>, %arg28: memref<1x2x8xf32, #tpu.memory_space<vmem>>, %arg29: memref<16x32xf32, #tpu.memory_space<vmem>>) attributes {dimension_semantics = [#tpu.dimension_semantics<parallel>, #tpu.dimension_semantics<arbitrary>], iteration_bounds = array<i64: 1, 2>, scalar_prefetch = 0 : i64, scratch_operands = 1 : i64, tpu.core_type = #tpu.core_type<tc>, window_params = [{transform_indices = @transform_0, window_bounds = array<i64: 2, 8, 32>}, {pipeline_mode = #tpu.pipeline_mode<synchronous>, transform_indices = @transform_1, window_bounds = array<i64: 8, 32>}, {pipeline_mode = #tpu.pipeline_mode<synchronous>, transform_indices = @transform_2, window_bounds = array<i64: 32, 64>}, {pipeline_mode = #tpu.pipeline_mode<synchronous>, transform_indices = @transform_3, window_bounds = array<i64: 1, 64>}, {pipeline_mode = #tpu.pipeline_mode<synchronous>, transform_indices = @transform_4, window_bounds = array<i64: 64, 32>}, {pipeline_mode = #tpu.pipeline_mode<synchronous>, transform_indices = @transform_5, window_bounds = array<i64: 1, 32>}, {pipeline_mode = #tpu.pipeline_mode<synchronous>, transform_indices = @transform_6, window_bounds = array<i64: 32, 64>}, {pipeline_mode = #tpu.pipeline_mode<synchronous>, transform_indices = @transform_7, window_bounds = array<i64: 1, 64>}, {pipeline_mode = #tpu.pipeline_mode<synchronous>, transform_indices = @transform_8, window_bounds = array<i64: 1, 64>}, {pipeline_mode = #tpu.pipeline_mode<synchronous>, transform_indices = @transform_9, window_bounds = array<i64: 1, 1>}, {transform_indices = @transform_10, window_bounds = array<i64: 1, 4, 32, 8>}, {transform_indices = @transform_11, window_bounds = array<i64: 1, 4, 1, 8>}, {transform_indices = @transform_12, window_bounds = array<i64: 1, 4, 32, 8>}, {transform_indices = @transform_13, window_bounds = array<i64: 1, 4, 1, 8>}, {transform_indices = @transform_14, window_bounds = array<i64: 1, 4, 32, 8>}, {transform_indices = @transform_15, window_bounds = array<i64: 1, 4, 1, 8>}, {transform_indices = @transform_16, window_bounds = array<i64: 1, 4, 8, 32>}, {transform_indices = @transform_17, window_bounds = array<i64: 1, 1, 32>}, {transform_indices = @transform_18, window_bounds = array<i64: 1, 32, 64>}, {transform_indices = @transform_19, window_bounds = array<i64: 1, 1, 64>}, {transform_indices = @transform_20, window_bounds = array<i64: 1, 64, 32>}, {transform_indices = @transform_21, window_bounds = array<i64: 1, 1, 32>}, {transform_indices = @transform_22, window_bounds = array<i64: 1, 1, 32>}, {transform_indices = @transform_23, window_bounds = array<i64: 1, 1, 32>}, {transform_indices = @transform_24, window_bounds = array<i64: 1, 1, 32>}, {transform_indices = @transform_25, window_bounds = array<i64: 1, 1, 32>}, {transform_indices = @transform_26, window_bounds = array<i64: 1, 2, 8>}]} {
    %c0_i32 = arith.constant 0 : i32
    %0 = arith.cmpi eq, %arg1, %c0_i32 : i32
    %1 = arith.extui %0 : i1 to i32
    %c0_i32_0 = arith.constant 0 : i32
    %2 = arith.cmpi ne, %1, %c0_i32_0 : i32
    scf.if %2 {
      %c0_113 = arith.constant 0 : index
      %c0_114 = arith.constant 0 : index
      %c0_115 = arith.constant 0 : index
      %321 = vector.load %arg2[%c0_113, %c0_114, %c0_115] : memref<2x8x32xf32, #tpu.memory_space<vmem>>, vector<2x8x32xf32>
      %c0_116 = arith.constant 0 : index
      %c0_117 = arith.constant 0 : index
      %322 = vector.load %arg3[%c0_116, %c0_117] : memref<8x32xf32, #tpu.memory_space<vmem>>, vector<8x32xf32>
      %323 = vector.shape_cast %322 : vector<8x32xf32> to vector<1x8x32xf32>
      %324 = vector.broadcast %323 : vector<1x8x32xf32> to vector<2x8x32xf32>
      %325 = arith.addf %321, %324 : vector<2x8x32xf32>
      %326 = vector.shape_cast %325 : vector<2x8x32xf32> to vector<16x32xf32>
      %c0_118 = arith.constant 0 : index
      %c0_119 = arith.constant 0 : index
      %327 = vector.load %arg4[%c0_118, %c0_119] : memref<32x64xbf16, #tpu.memory_space<vmem>>, vector<32x64xbf16>
      %328 = arith.truncf %326 : vector<16x32xf32> to vector<16x32xbf16>
      %cst_120 = arith.constant dense<0.000000e+00> : vector<16x64xf32>
      %329 = tpu.matmul %328, %327, %cst_120 {dimension_numbers = #tpu.dot_dimension_numbers<[1], [0], [0], [1], [0, 0, 1, 1], [], []>} : vector<16x32xbf16>, vector<32x64xbf16>, vector<16x64xf32> -> vector<16x64xf32>
      %c0_121 = arith.constant 0 : index
      %c0_122 = arith.constant 0 : index
      %330 = vector.load %arg5[%c0_121, %c0_122] : memref<1x64xf32, #tpu.memory_space<vmem>>, vector<1x64xf32>
      %331 = vector.broadcast %330 : vector<1x64xf32> to vector<16x64xf32>
      %332 = arith.addf %329, %331 : vector<16x64xf32>
      %cst_123 = arith.constant 5.000000e-01 : f32
      %333 = vector.broadcast %cst_123 : f32 to vector<16x64xf32>
      %334 = arith.mulf %333, %332 : vector<16x64xf32>
      %cst_124 = arith.constant 4.471500e-02 : f32
      %335 = vector.broadcast %cst_124 : f32 to vector<16x64xf32>
      %336 = arith.mulf %335, %332 : vector<16x64xf32>
      %337 = arith.mulf %336, %332 : vector<16x64xf32>
      %338 = arith.mulf %337, %332 : vector<16x64xf32>
      %339 = arith.addf %332, %338 : vector<16x64xf32>
      %cst_125 = arith.constant 0.797884583 : f32
      %340 = vector.broadcast %cst_125 : f32 to vector<16x64xf32>
      %341 = arith.mulf %340, %339 : vector<16x64xf32>
      %342 = math.tanh %341 : vector<16x64xf32>
      %cst_126 = arith.constant 1.000000e+00 : f32
      %343 = vector.broadcast %cst_126 : f32 to vector<16x64xf32>
      %344 = arith.addf %343, %342 : vector<16x64xf32>
      %345 = arith.mulf %334, %344 : vector<16x64xf32>
      %c0_127 = arith.constant 0 : index
      %c0_128 = arith.constant 0 : index
      %346 = vector.load %arg6[%c0_127, %c0_128] : memref<64x32xbf16, #tpu.memory_space<vmem>>, vector<64x32xbf16>
      %347 = arith.truncf %345 : vector<16x64xf32> to vector<16x64xbf16>
      %cst_129 = arith.constant dense<0.000000e+00> : vector<16x32xf32>
      %348 = tpu.matmul %347, %346, %cst_129 {dimension_numbers = #tpu.dot_dimension_numbers<[1], [0], [0], [1], [0, 0, 1, 1], [], []>} : vector<16x64xbf16>, vector<64x32xbf16>, vector<16x32xf32> -> vector<16x32xf32>
      %c0_130 = arith.constant 0 : index
      %c0_131 = arith.constant 0 : index
      %349 = vector.load %arg7[%c0_130, %c0_131] : memref<1x32xf32, #tpu.memory_space<vmem>>, vector<1x32xf32>
      %350 = vector.broadcast %349 : vector<1x32xf32> to vector<16x32xf32>
      %351 = arith.addf %348, %350 : vector<16x32xf32>
      %c0_132 = arith.constant 0 : index
      %c0_133 = arith.constant 0 : index
      %352 = vector.load %arg29[%c0_132, %c0_133] : memref<16x32xf32, #tpu.memory_space<vmem>>, vector<16x32xf32>
      tpu.vector_store %arg29[%c0_132, %c0_133], %351 {strides = array<i32>} : memref<16x32xf32, #tpu.memory_space<vmem>>, vector<16x32xf32>,
    } else {
    }
    %c0 = arith.constant 0 : index
    %c0_1 = arith.constant 0 : index
    %3 = vector.load %arg29[%c0, %c0_1] : memref<16x32xf32, #tpu.memory_space<vmem>>, vector<16x32xf32>
    %4 = arith.truncf %3 : vector<16x32xf32> to vector<16x32xbf16>
    %c0_2 = arith.constant 0 : index
    %c0_3 = arith.constant 0 : index
    %c0_4 = arith.constant 0 : index
    %c0_5 = arith.constant 0 : index
    %5 = vector.load %arg12[%c0_2, %c0_3, %c0_4, %c0_5] : memref<1x4x32x8xbf16, #tpu.memory_space<vmem>>, vector<1x4x32x8xbf16>
    %6 = vector.shape_cast %5 : vector<1x4x32x8xbf16> to vector<4x32x8xbf16>
    %c0_6 = arith.constant 0 : index
    %c0_7 = arith.constant 0 : index
    %c0_8 = arith.constant 0 : index
    %c0_9 = arith.constant 0 : index
    %7 = vector.load %arg13[%c0_6, %c0_7, %c0_8, %c0_9] : memref<1x4x1x8xf32, #tpu.memory_space<vmem>>, vector<1x4x1x8xf32>
    %8 = vector.shape_cast %7 : vector<1x4x1x8xf32> to vector<4x1x8xf32>
    %c0_10 = arith.constant 0 : index
    %c0_11 = arith.constant 0 : index
    %c0_12 = arith.constant 0 : index
    %c0_13 = arith.constant 0 : index
    %9 = vector.load %arg14[%c0_10, %c0_11, %c0_12, %c0_13] : memref<1x4x32x8xbf16, #tpu.memory_space<vmem>>, vector<1x4x32x8xbf16>
    %10 = vector.shape_cast %9 : vector<1x4x32x8xbf16> to vector<4x32x8xbf16>
    %c0_14 = arith.constant 0 : index
    %c0_15 = arith.constant 0 : index
    %c0_16 = arith.constant 0 : index
    %c0_17 = arith.constant 0 : index
    %11 = vector.load %arg15[%c0_14, %c0_15, %c0_16, %c0_17] : memref<1x4x1x8xf32, #tpu.memory_space<vmem>>, vector<1x4x1x8xf32>
    %12 = vector.shape_cast %11 : vector<1x4x1x8xf32> to vector<4x1x8xf32>
    %c0_18 = arith.constant 0 : index
    %c0_19 = arith.constant 0 : index
    %c0_20 = arith.constant 0 : index
    %c0_21 = arith.constant 0 : index
    %13 = vector.load %arg16[%c0_18, %c0_19, %c0_20, %c0_21] : memref<1x4x32x8xbf16, #tpu.memory_space<vmem>>, vector<1x4x32x8xbf16>
    %14 = vector.shape_cast %13 : vector<1x4x32x8xbf16> to vector<4x32x8xbf16>
    %c0_22 = arith.constant 0 : index
    %c0_23 = arith.constant 0 : index
    %c0_24 = arith.constant 0 : index
    %c0_25 = arith.constant 0 : index
    %15 = vector.load %arg17[%c0_22, %c0_23, %c0_24, %c0_25] : memref<1x4x1x8xf32, #tpu.memory_space<vmem>>, vector<1x4x1x8xf32>
    %16 = vector.shape_cast %15 : vector<1x4x1x8xf32> to vector<4x1x8xf32>
    %c0_26 = arith.constant 0 : index
    %c0_27 = arith.constant 0 : index
    %c0_28 = arith.constant 0 : index
    %c0_29 = arith.constant 0 : index
    %17 = vector.load %arg18[%c0_26, %c0_27, %c0_28, %c0_29] : memref<1x4x8x32xbf16, #tpu.memory_space<vmem>>, vector<1x4x8x32xbf16>
    %18 = vector.shape_cast %17 : vector<1x4x8x32xbf16> to vector<4x8x32xbf16>
    %19 = vector.extract_strided_slice %6 {offsets = [0, 0, 0], sizes = [1, 32, 8], strides = [1, 1, 1]} : vector<4x32x8xbf16> to vector<1x32x8xbf16>
    %20 = vector.shape_cast %19 : vector<1x32x8xbf16> to vector<32x8xbf16>
    %cst = arith.constant dense<0.000000e+00> : vector<16x8xf32>
    %21 = tpu.matmul %4, %20, %cst {dimension_numbers = #tpu.dot_dimension_numbers<[1], [0], [0], [1], [0, 0, 1, 1], [], []>} : vector<16x32xbf16>, vector<32x8xbf16>, vector<16x8xf32> -> vector<16x8xf32>
    %22 = vector.extract_strided_slice %8 {offsets = [0, 0, 0], sizes = [1, 1, 8], strides = [1, 1, 1]} : vector<4x1x8xf32> to vector<1x1x8xf32>
    %23 = vector.shape_cast %22 : vector<1x1x8xf32> to vector<1x8xf32>
    %24 = vector.broadcast %23 : vector<1x8xf32> to vector<16x8xf32>
    %25 = arith.addf %21, %24 : vector<16x8xf32>
    %26 = vector.extract_strided_slice %10 {offsets = [0, 0, 0], sizes = [1, 32, 8], strides = [1, 1, 1]} : vector<4x32x8xbf16> to vector<1x32x8xbf16>
    %27 = vector.shape_cast %26 : vector<1x32x8xbf16> to vector<32x8xbf16>
    %cst_30 = arith.constant dense<0.000000e+00> : vector<16x8xf32>
    %28 = tpu.matmul %4, %27, %cst_30 {dimension_numbers = #tpu.dot_dimension_numbers<[1], [0], [0], [1], [0, 0, 1, 1], [], []>} : vector<16x32xbf16>, vector<32x8xbf16>, vector<16x8xf32> -> vector<16x8xf32>
    %29 = vector.extract_strided_slice %12 {offsets = [0, 0, 0], sizes = [1, 1, 8], strides = [1, 1, 1]} : vector<4x1x8xf32> to vector<1x1x8xf32>
    %30 = vector.shape_cast %29 : vector<1x1x8xf32> to vector<1x8xf32>
    %31 = vector.broadcast %30 : vector<1x8xf32> to vector<16x8xf32>
    %32 = arith.addf %28, %31 : vector<16x8xf32>
    %33 = vector.extract_strided_slice %14 {offsets = [0, 0, 0], sizes = [1, 32, 8], strides = [1, 1, 1]} : vector<4x32x8xbf16> to vector<1x32x8xbf16>
    %34 = vector.shape_cast %33 : vector<1x32x8xbf16> to vector<32x8xbf16>
    %cst_31 = arith.constant dense<0.000000e+00> : vector<16x8xf32>
    %35 = tpu.matmul %4, %34, %cst_31 {dimension_numbers = #tpu.dot_dimension_numbers<[1], [0], [0], [1], [0, 0, 1, 1], [], []>} : vector<16x32xbf16>, vector<32x8xbf16>, vector<16x8xf32> -> vector<16x8xf32>
    %36 = vector.extract_strided_slice %16 {offsets = [0, 0, 0], sizes = [1, 1, 8], strides = [1, 1, 1]} : vector<4x1x8xf32> to vector<1x1x8xf32>
    %37 = vector.shape_cast %36 : vector<1x1x8xf32> to vector<1x8xf32>
    %38 = vector.broadcast %37 : vector<1x8xf32> to vector<16x8xf32>
    %39 = arith.addf %35, %38 : vector<16x8xf32>
    %40 = arith.truncf %25 : vector<16x8xf32> to vector<16x8xbf16>
    %41 = arith.truncf %32 : vector<16x8xf32> to vector<16x8xbf16>
    %42 = arith.truncf %39 : vector<16x8xf32> to vector<16x8xbf16>
    %43 = vector.extract_strided_slice %40 {offsets = [0, 0], sizes = [8, 8], strides = [1, 1]} : vector<16x8xbf16> to vector<8x8xbf16>
    %44 = vector.extract_strided_slice %41 {offsets = [0, 0], sizes = [8, 8], strides = [1, 1]} : vector<16x8xbf16> to vector<8x8xbf16>
    %cst_32 = arith.constant dense<0.000000e+00> : vector<8x8xf32>
    %45 = tpu.matmul %43, %44, %cst_32 {dimension_numbers = #tpu.dot_dimension_numbers<[1], [1], [0], [0], [0, 0, 1, 0], [], []>} : vector<8x8xbf16>, vector<8x8xbf16>, vector<8x8xf32> -> vector<8x8xf32>
    %cst_33 = arith.constant dense<0xFF800000> : vector<8xf32>
    %46 = vector.multi_reduction <maximumf>, %45, %cst_33 [1] : vector<8x8xf32> to vector<8xf32>
    %47 = vector.shape_cast %46 : vector<8xf32> to vector<8x1xf32>
    %48 = vector.broadcast %47 : vector<8x1xf32> to vector<8x8xf32>
    %49 = arith.subf %45, %48 : vector<8x8xf32>
    %50 = math.exp %49 : vector<8x8xf32>
    %cst_34 = arith.constant dense<0.000000e+00> : vector<8xf32>
    %51 = vector.multi_reduction <add>, %50, %cst_34 [1] : vector<8x8xf32> to vector<8xf32>
    %52 = vector.shape_cast %51 : vector<8xf32> to vector<8x1xf32>
    %53 = tpu.reciprocal %52 {approx = true} : vector<8x1xf32> -> vector<8x1xf32>
    %54 = vector.broadcast %53 : vector<8x1xf32> to vector<8x8xf32>
    %55 = arith.mulf %50, %54 : vector<8x8xf32>
    %56 = arith.truncf %55 : vector<8x8xf32> to vector<8x8xbf16>
    %57 = vector.extract_strided_slice %42 {offsets = [0, 0], sizes = [8, 8], strides = [1, 1]} : vector<16x8xbf16> to vector<8x8xbf16>
    %cst_35 = arith.constant dense<0.000000e+00> : vector<8x8xf32>
    %58 = tpu.matmul %56, %57, %cst_35 {dimension_numbers = #tpu.dot_dimension_numbers<[1], [0], [0], [1], [0, 0, 1, 1], [], []>} : vector<8x8xbf16>, vector<8x8xbf16>, vector<8x8xf32> -> vector<8x8xf32>
    %59 = vector.extract_strided_slice %40 {offsets = [8, 0], sizes = [8, 8], strides = [1, 1]} : vector<16x8xbf16> to vector<8x8xbf16>
    %60 = vector.extract_strided_slice %41 {offsets = [8, 0], sizes = [8, 8], strides = [1, 1]} : vector<16x8xbf16> to vector<8x8xbf16>
    %cst_36 = arith.constant dense<0.000000e+00> : vector<8x8xf32>
    %61 = tpu.matmul %59, %60, %cst_36 {dimension_numbers = #tpu.dot_dimension_numbers<[1], [1], [0], [0], [0, 0, 1, 0], [], []>} : vector<8x8xbf16>, vector<8x8xbf16>, vector<8x8xf32> -> vector<8x8xf32>
    %cst_37 = arith.constant dense<0xFF800000> : vector<8xf32>
    %62 = vector.multi_reduction <maximumf>, %61, %cst_37 [1] : vector<8x8xf32> to vector<8xf32>
    %63 = vector.shape_cast %62 : vector<8xf32> to vector<8x1xf32>
    %64 = vector.broadcast %63 : vector<8x1xf32> to vector<8x8xf32>
    %65 = arith.subf %61, %64 : vector<8x8xf32>
    %66 = math.exp %65 : vector<8x8xf32>
    %cst_38 = arith.constant dense<0.000000e+00> : vector<8xf32>
    %67 = vector.multi_reduction <add>, %66, %cst_38 [1] : vector<8x8xf32> to vector<8xf32>
    %68 = vector.shape_cast %67 : vector<8xf32> to vector<8x1xf32>
    %69 = tpu.reciprocal %68 {approx = true} : vector<8x1xf32> -> vector<8x1xf32>
    %70 = vector.broadcast %69 : vector<8x1xf32> to vector<8x8xf32>
    %71 = arith.mulf %66, %70 : vector<8x8xf32>
    %72 = arith.truncf %71 : vector<8x8xf32> to vector<8x8xbf16>
    %73 = vector.extract_strided_slice %42 {offsets = [8, 0], sizes = [8, 8], strides = [1, 1]} : vector<16x8xbf16> to vector<8x8xbf16>
    %cst_39 = arith.constant dense<0.000000e+00> : vector<8x8xf32>
    %74 = tpu.matmul %72, %73, %cst_39 {dimension_numbers = #tpu.dot_dimension_numbers<[1], [0], [0], [1], [0, 0, 1, 1], [], []>} : vector<8x8xbf16>, vector<8x8xbf16>, vector<8x8xf32> -> vector<8x8xf32>
    %75 = tpu.concatenate %58, %74 in 0 : vector<8x8xf32>, vector<8x8xf32> -> vector<16x8xf32>
    %76 = vector.extract_strided_slice %18 {offsets = [0, 0, 0], sizes = [1, 8, 32], strides = [1, 1, 1]} : vector<4x8x32xbf16> to vector<1x8x32xbf16>
    %77 = vector.shape_cast %76 : vector<1x8x32xbf16> to vector<8x32xbf16>
    %78 = arith.truncf %75 : vector<16x8xf32> to vector<16x8xbf16>
    %cst_40 = arith.constant dense<0.000000e+00> : vector<16x32xf32>
    %79 = tpu.matmul %78, %77, %cst_40 {dimension_numbers = #tpu.dot_dimension_numbers<[1], [0], [0], [1], [0, 0, 1, 1], [], []>} : vector<16x8xbf16>, vector<8x32xbf16>, vector<16x32xf32> -> vector<16x32xf32>
    %80 = vector.extract_strided_slice %6 {offsets = [1, 0, 0], sizes = [1, 32, 8], strides = [1, 1, 1]} : vector<4x32x8xbf16> to vector<1x32x8xbf16>
    %81 = vector.shape_cast %80 : vector<1x32x8xbf16> to vector<32x8xbf16>
    %cst_41 = arith.constant dense<0.000000e+00> : vector<16x8xf32>
    %82 = tpu.matmul %4, %81, %cst_41 {dimension_numbers = #tpu.dot_dimension_numbers<[1], [0], [0], [1], [0, 0, 1, 1], [], []>} : vector<16x32xbf16>, vector<32x8xbf16>, vector<16x8xf32> -> vector<16x8xf32>
    %83 = vector.extract_strided_slice %8 {offsets = [1, 0, 0], sizes = [1, 1, 8], strides = [1, 1, 1]} : vector<4x1x8xf32> to vector<1x1x8xf32>
    %84 = vector.shape_cast %83 : vector<1x1x8xf32> to vector<1x8xf32>
    %85 = vector.broadcast %84 : vector<1x8xf32> to vector<16x8xf32>
    %86 = arith.addf %82, %85 : vector<16x8xf32>
    %87 = vector.extract_strided_slice %10 {offsets = [1, 0, 0], sizes = [1, 32, 8], strides = [1, 1, 1]} : vector<4x32x8xbf16> to vector<1x32x8xbf16>
    %88 = vector.shape_cast %87 : vector<1x32x8xbf16> to vector<32x8xbf16>
    %cst_42 = arith.constant dense<0.000000e+00> : vector<16x8xf32>
    %89 = tpu.matmul %4, %88, %cst_42 {dimension_numbers = #tpu.dot_dimension_numbers<[1], [0], [0], [1], [0, 0, 1, 1], [], []>} : vector<16x32xbf16>, vector<32x8xbf16>, vector<16x8xf32> -> vector<16x8xf32>
    %90 = vector.extract_strided_slice %12 {offsets = [1, 0, 0], sizes = [1, 1, 8], strides = [1, 1, 1]} : vector<4x1x8xf32> to vector<1x1x8xf32>
    %91 = vector.shape_cast %90 : vector<1x1x8xf32> to vector<1x8xf32>
    %92 = vector.broadcast %91 : vector<1x8xf32> to vector<16x8xf32>
    %93 = arith.addf %89, %92 : vector<16x8xf32>
    %94 = vector.extract_strided_slice %14 {offsets = [1, 0, 0], sizes = [1, 32, 8], strides = [1, 1, 1]} : vector<4x32x8xbf16> to vector<1x32x8xbf16>
    %95 = vector.shape_cast %94 : vector<1x32x8xbf16> to vector<32x8xbf16>
    %cst_43 = arith.constant dense<0.000000e+00> : vector<16x8xf32>
    %96 = tpu.matmul %4, %95, %cst_43 {dimension_numbers = #tpu.dot_dimension_numbers<[1], [0], [0], [1], [0, 0, 1, 1], [], []>} : vector<16x32xbf16>, vector<32x8xbf16>, vector<16x8xf32> -> vector<16x8xf32>
    %97 = vector.extract_strided_slice %16 {offsets = [1, 0, 0], sizes = [1, 1, 8], strides = [1, 1, 1]} : vector<4x1x8xf32> to vector<1x1x8xf32>
    %98 = vector.shape_cast %97 : vector<1x1x8xf32> to vector<1x8xf32>
    %99 = vector.broadcast %98 : vector<1x8xf32> to vector<16x8xf32>
    %100 = arith.addf %96, %99 : vector<16x8xf32>
    %101 = arith.truncf %86 : vector<16x8xf32> to vector<16x8xbf16>
    %102 = arith.truncf %93 : vector<16x8xf32> to vector<16x8xbf16>
    %103 = arith.truncf %100 : vector<16x8xf32> to vector<16x8xbf16>
    %104 = vector.extract_strided_slice %101 {offsets = [0, 0], sizes = [8, 8], strides = [1, 1]} : vector<16x8xbf16> to vector<8x8xbf16>
    %105 = vector.extract_strided_slice %102 {offsets = [0, 0], sizes = [8, 8], strides = [1, 1]} : vector<16x8xbf16> to vector<8x8xbf16>
    %cst_44 = arith.constant dense<0.000000e+00> : vector<8x8xf32>
    %106 = tpu.matmul %104, %105, %cst_44 {dimension_numbers = #tpu.dot_dimension_numbers<[1], [1], [0], [0], [0, 0, 1, 0], [], []>} : vector<8x8xbf16>, vector<8x8xbf16>, vector<8x8xf32> -> vector<8x8xf32>
    %cst_45 = arith.constant dense<0xFF800000> : vector<8xf32>
    %107 = vector.multi_reduction <maximumf>, %106, %cst_45 [1] : vector<8x8xf32> to vector<8xf32>
    %108 = vector.shape_cast %107 : vector<8xf32> to vector<8x1xf32>
    %109 = vector.broadcast %108 : vector<8x1xf32> to vector<8x8xf32>
    %110 = arith.subf %106, %109 : vector<8x8xf32>
    %111 = math.exp %110 : vector<8x8xf32>
    %cst_46 = arith.constant dense<0.000000e+00> : vector<8xf32>
    %112 = vector.multi_reduction <add>, %111, %cst_46 [1] : vector<8x8xf32> to vector<8xf32>
    %113 = vector.shape_cast %112 : vector<8xf32> to vector<8x1xf32>
    %114 = tpu.reciprocal %113 {approx = true} : vector<8x1xf32> -> vector<8x1xf32>
    %115 = vector.broadcast %114 : vector<8x1xf32> to vector<8x8xf32>
    %116 = arith.mulf %111, %115 : vector<8x8xf32>
    %117 = arith.truncf %116 : vector<8x8xf32> to vector<8x8xbf16>
    %118 = vector.extract_strided_slice %103 {offsets = [0, 0], sizes = [8, 8], strides = [1, 1]} : vector<16x8xbf16> to vector<8x8xbf16>
    %cst_47 = arith.constant dense<0.000000e+00> : vector<8x8xf32>
    %119 = tpu.matmul %117, %118, %cst_47 {dimension_numbers = #tpu.dot_dimension_numbers<[1], [0], [0], [1], [0, 0, 1, 1], [], []>} : vector<8x8xbf16>, vector<8x8xbf16>, vector<8x8xf32> -> vector<8x8xf32>
    %120 = vector.extract_strided_slice %101 {offsets = [8, 0], sizes = [8, 8], strides = [1, 1]} : vector<16x8xbf16> to vector<8x8xbf16>
    %121 = vector.extract_strided_slice %102 {offsets = [8, 0], sizes = [8, 8], strides = [1, 1]} : vector<16x8xbf16> to vector<8x8xbf16>
    %cst_48 = arith.constant dense<0.000000e+00> : vector<8x8xf32>
    %122 = tpu.matmul %120, %121, %cst_48 {dimension_numbers = #tpu.dot_dimension_numbers<[1], [1], [0], [0], [0, 0, 1, 0], [], []>} : vector<8x8xbf16>, vector<8x8xbf16>, vector<8x8xf32> -> vector<8x8xf32>
    %cst_49 = arith.constant dense<0xFF800000> : vector<8xf32>
    %123 = vector.multi_reduction <maximumf>, %122, %cst_49 [1] : vector<8x8xf32> to vector<8xf32>
    %124 = vector.shape_cast %123 : vector<8xf32> to vector<8x1xf32>
    %125 = vector.broadcast %124 : vector<8x1xf32> to vector<8x8xf32>
    %126 = arith.subf %122, %125 : vector<8x8xf32>
    %127 = math.exp %126 : vector<8x8xf32>
    %cst_50 = arith.constant dense<0.000000e+00> : vector<8xf32>
    %128 = vector.multi_reduction <add>, %127, %cst_50 [1] : vector<8x8xf32> to vector<8xf32>
    %129 = vector.shape_cast %128 : vector<8xf32> to vector<8x1xf32>
    %130 = tpu.reciprocal %129 {approx = true} : vector<8x1xf32> -> vector<8x1xf32>
    %131 = vector.broadcast %130 : vector<8x1xf32> to vector<8x8xf32>
    %132 = arith.mulf %127, %131 : vector<8x8xf32>
    %133 = arith.truncf %132 : vector<8x8xf32> to vector<8x8xbf16>
    %134 = vector.extract_strided_slice %103 {offsets = [8, 0], sizes = [8, 8], strides = [1, 1]} : vector<16x8xbf16> to vector<8x8xbf16>
    %cst_51 = arith.constant dense<0.000000e+00> : vector<8x8xf32>
    %135 = tpu.matmul %133, %134, %cst_51 {dimension_numbers = #tpu.dot_dimension_numbers<[1], [0], [0], [1], [0, 0, 1, 1], [], []>} : vector<8x8xbf16>, vector<8x8xbf16>, vector<8x8xf32> -> vector<8x8xf32>
    %136 = tpu.concatenate %119, %135 in 0 : vector<8x8xf32>, vector<8x8xf32> -> vector<16x8xf32>
    %137 = vector.extract_strided_slice %18 {offsets = [1, 0, 0], sizes = [1, 8, 32], strides = [1, 1, 1]} : vector<4x8x32xbf16> to vector<1x8x32xbf16>
    %138 = vector.shape_cast %137 : vector<1x8x32xbf16> to vector<8x32xbf16>
    %139 = arith.truncf %136 : vector<16x8xf32> to vector<16x8xbf16>
    %cst_52 = arith.constant dense<0.000000e+00> : vector<16x32xf32>
    %140 = tpu.matmul %139, %138, %cst_52 {dimension_numbers = #tpu.dot_dimension_numbers<[1], [0], [0], [1], [0, 0, 1, 1], [], []>} : vector<16x8xbf16>, vector<8x32xbf16>, vector<16x32xf32> -> vector<16x32xf32>
    %141 = arith.addf %79, %140 : vector<16x32xf32>
    %142 = vector.extract_strided_slice %6 {offsets = [2, 0, 0], sizes = [1, 32, 8], strides = [1, 1, 1]} : vector<4x32x8xbf16> to vector<1x32x8xbf16>
    %143 = vector.shape_cast %142 : vector<1x32x8xbf16> to vector<32x8xbf16>
    %cst_53 = arith.constant dense<0.000000e+00> : vector<16x8xf32>
    %144 = tpu.matmul %4, %143, %cst_53 {dimension_numbers = #tpu.dot_dimension_numbers<[1], [0], [0], [1], [0, 0, 1, 1], [], []>} : vector<16x32xbf16>, vector<32x8xbf16>, vector<16x8xf32> -> vector<16x8xf32>
    %145 = vector.extract_strided_slice %8 {offsets = [2, 0, 0], sizes = [1, 1, 8], strides = [1, 1, 1]} : vector<4x1x8xf32> to vector<1x1x8xf32>
    %146 = vector.shape_cast %145 : vector<1x1x8xf32> to vector<1x8xf32>
    %147 = vector.broadcast %146 : vector<1x8xf32> to vector<16x8xf32>
    %148 = arith.addf %144, %147 : vector<16x8xf32>
    %149 = vector.extract_strided_slice %10 {offsets = [2, 0, 0], sizes = [1, 32, 8], strides = [1, 1, 1]} : vector<4x32x8xbf16> to vector<1x32x8xbf16>
    %150 = vector.shape_cast %149 : vector<1x32x8xbf16> to vector<32x8xbf16>
    %cst_54 = arith.constant dense<0.000000e+00> : vector<16x8xf32>
    %151 = tpu.matmul %4, %150, %cst_54 {dimension_numbers = #tpu.dot_dimension_numbers<[1], [0], [0], [1], [0, 0, 1, 1], [], []>} : vector<16x32xbf16>, vector<32x8xbf16>, vector<16x8xf32> -> vector<16x8xf32>
    %152 = vector.extract_strided_slice %12 {offsets = [2, 0, 0], sizes = [1, 1, 8], strides = [1, 1, 1]} : vector<4x1x8xf32> to vector<1x1x8xf32>
    %153 = vector.shape_cast %152 : vector<1x1x8xf32> to vector<1x8xf32>
    %154 = vector.broadcast %153 : vector<1x8xf32> to vector<16x8xf32>
    %155 = arith.addf %151, %154 : vector<16x8xf32>
    %156 = vector.extract_strided_slice %14 {offsets = [2, 0, 0], sizes = [1, 32, 8], strides = [1, 1, 1]} : vector<4x32x8xbf16> to vector<1x32x8xbf16>
    %157 = vector.shape_cast %156 : vector<1x32x8xbf16> to vector<32x8xbf16>
    %cst_55 = arith.constant dense<0.000000e+00> : vector<16x8xf32>
    %158 = tpu.matmul %4, %157, %cst_55 {dimension_numbers = #tpu.dot_dimension_numbers<[1], [0], [0], [1], [0, 0, 1, 1], [], []>} : vector<16x32xbf16>, vector<32x8xbf16>, vector<16x8xf32> -> vector<16x8xf32>
    %159 = vector.extract_strided_slice %16 {offsets = [2, 0, 0], sizes = [1, 1, 8], strides = [1, 1, 1]} : vector<4x1x8xf32> to vector<1x1x8xf32>
    %160 = vector.shape_cast %159 : vector<1x1x8xf32> to vector<1x8xf32>
    %161 = vector.broadcast %160 : vector<1x8xf32> to vector<16x8xf32>
    %162 = arith.addf %158, %161 : vector<16x8xf32>
    %163 = arith.truncf %148 : vector<16x8xf32> to vector<16x8xbf16>
    %164 = arith.truncf %155 : vector<16x8xf32> to vector<16x8xbf16>
    %165 = arith.truncf %162 : vector<16x8xf32> to vector<16x8xbf16>
    %166 = vector.extract_strided_slice %163 {offsets = [0, 0], sizes = [8, 8], strides = [1, 1]} : vector<16x8xbf16> to vector<8x8xbf16>
    %167 = vector.extract_strided_slice %164 {offsets = [0, 0], sizes = [8, 8], strides = [1, 1]} : vector<16x8xbf16> to vector<8x8xbf16>
    %cst_56 = arith.constant dense<0.000000e+00> : vector<8x8xf32>
    %168 = tpu.matmul %166, %167, %cst_56 {dimension_numbers = #tpu.dot_dimension_numbers<[1], [1], [0], [0], [0, 0, 1, 0], [], []>} : vector<8x8xbf16>, vector<8x8xbf16>, vector<8x8xf32> -> vector<8x8xf32>
    %cst_57 = arith.constant dense<0xFF800000> : vector<8xf32>
    %169 = vector.multi_reduction <maximumf>, %168, %cst_57 [1] : vector<8x8xf32> to vector<8xf32>
    %170 = vector.shape_cast %169 : vector<8xf32> to vector<8x1xf32>
    %171 = vector.broadcast %170 : vector<8x1xf32> to vector<8x8xf32>
    %172 = arith.subf %168, %171 : vector<8x8xf32>
    %173 = math.exp %172 : vector<8x8xf32>
    %cst_58 = arith.constant dense<0.000000e+00> : vector<8xf32>
    %174 = vector.multi_reduction <add>, %173, %cst_58 [1] : vector<8x8xf32> to vector<8xf32>
    %175 = vector.shape_cast %174 : vector<8xf32> to vector<8x1xf32>
    %176 = tpu.reciprocal %175 {approx = true} : vector<8x1xf32> -> vector<8x1xf32>
    %177 = vector.broadcast %176 : vector<8x1xf32> to vector<8x8xf32>
    %178 = arith.mulf %173, %177 : vector<8x8xf32>
    %179 = arith.truncf %178 : vector<8x8xf32> to vector<8x8xbf16>
    %180 = vector.extract_strided_slice %165 {offsets = [0, 0], sizes = [8, 8], strides = [1, 1]} : vector<16x8xbf16> to vector<8x8xbf16>
    %cst_59 = arith.constant dense<0.000000e+00> : vector<8x8xf32>
    %181 = tpu.matmul %179, %180, %cst_59 {dimension_numbers = #tpu.dot_dimension_numbers<[1], [0], [0], [1], [0, 0, 1, 1], [], []>} : vector<8x8xbf16>, vector<8x8xbf16>, vector<8x8xf32> -> vector<8x8xf32>
    %182 = vector.extract_strided_slice %163 {offsets = [8, 0], sizes = [8, 8], strides = [1, 1]} : vector<16x8xbf16> to vector<8x8xbf16>
    %183 = vector.extract_strided_slice %164 {offsets = [8, 0], sizes = [8, 8], strides = [1, 1]} : vector<16x8xbf16> to vector<8x8xbf16>
    %cst_60 = arith.constant dense<0.000000e+00> : vector<8x8xf32>
    %184 = tpu.matmul %182, %183, %cst_60 {dimension_numbers = #tpu.dot_dimension_numbers<[1], [1], [0], [0], [0, 0, 1, 0], [], []>} : vector<8x8xbf16>, vector<8x8xbf16>, vector<8x8xf32> -> vector<8x8xf32>
    %cst_61 = arith.constant dense<0xFF800000> : vector<8xf32>
    %185 = vector.multi_reduction <maximumf>, %184, %cst_61 [1] : vector<8x8xf32> to vector<8xf32>
    %186 = vector.shape_cast %185 : vector<8xf32> to vector<8x1xf32>
    %187 = vector.broadcast %186 : vector<8x1xf32> to vector<8x8xf32>
    %188 = arith.subf %184, %187 : vector<8x8xf32>
    %189 = math.exp %188 : vector<8x8xf32>
    %cst_62 = arith.constant dense<0.000000e+00> : vector<8xf32>
    %190 = vector.multi_reduction <add>, %189, %cst_62 [1] : vector<8x8xf32> to vector<8xf32>
    %191 = vector.shape_cast %190 : vector<8xf32> to vector<8x1xf32>
    %192 = tpu.reciprocal %191 {approx = true} : vector<8x1xf32> -> vector<8x1xf32>
    %193 = vector.broadcast %192 : vector<8x1xf32> to vector<8x8xf32>
    %194 = arith.mulf %189, %193 : vector<8x8xf32>
    %195 = arith.truncf %194 : vector<8x8xf32> to vector<8x8xbf16>
    %196 = vector.extract_strided_slice %165 {offsets = [8, 0], sizes = [8, 8], strides = [1, 1]} : vector<16x8xbf16> to vector<8x8xbf16>
    %cst_63 = arith.constant dense<0.000000e+00> : vector<8x8xf32>
    %197 = tpu.matmul %195, %196, %cst_63 {dimension_numbers = #tpu.dot_dimension_numbers<[1], [0], [0], [1], [0, 0, 1, 1], [], []>} : vector<8x8xbf16>, vector<8x8xbf16>, vector<8x8xf32> -> vector<8x8xf32>
    %198 = tpu.concatenate %181, %197 in 0 : vector<8x8xf32>, vector<8x8xf32> -> vector<16x8xf32>
    %199 = vector.extract_strided_slice %18 {offsets = [2, 0, 0], sizes = [1, 8, 32], strides = [1, 1, 1]} : vector<4x8x32xbf16> to vector<1x8x32xbf16>
    %200 = vector.shape_cast %199 : vector<1x8x32xbf16> to vector<8x32xbf16>
    %201 = arith.truncf %198 : vector<16x8xf32> to vector<16x8xbf16>
    %cst_64 = arith.constant dense<0.000000e+00> : vector<16x32xf32>
    %202 = tpu.matmul %201, %200, %cst_64 {dimension_numbers = #tpu.dot_dimension_numbers<[1], [0], [0], [1], [0, 0, 1, 1], [], []>} : vector<16x8xbf16>, vector<8x32xbf16>, vector<16x32xf32> -> vector<16x32xf32>
    %203 = arith.addf %141, %202 : vector<16x32xf32>
    %204 = vector.extract_strided_slice %6 {offsets = [3, 0, 0], sizes = [1, 32, 8], strides = [1, 1, 1]} : vector<4x32x8xbf16> to vector<1x32x8xbf16>
    %205 = vector.shape_cast %204 : vector<1x32x8xbf16> to vector<32x8xbf16>
    %cst_65 = arith.constant dense<0.000000e+00> : vector<16x8xf32>
    %206 = tpu.matmul %4, %205, %cst_65 {dimension_numbers = #tpu.dot_dimension_numbers<[1], [0], [0], [1], [0, 0, 1, 1], [], []>} : vector<16x32xbf16>, vector<32x8xbf16>, vector<16x8xf32> -> vector<16x8xf32>
    %207 = vector.extract_strided_slice %8 {offsets = [3, 0, 0], sizes = [1, 1, 8], strides = [1, 1, 1]} : vector<4x1x8xf32> to vector<1x1x8xf32>
    %208 = vector.shape_cast %207 : vector<1x1x8xf32> to vector<1x8xf32>
    %209 = vector.broadcast %208 : vector<1x8xf32> to vector<16x8xf32>
    %210 = arith.addf %206, %209 : vector<16x8xf32>
    %211 = vector.extract_strided_slice %10 {offsets = [3, 0, 0], sizes = [1, 32, 8], strides = [1, 1, 1]} : vector<4x32x8xbf16> to vector<1x32x8xbf16>
    %212 = vector.shape_cast %211 : vector<1x32x8xbf16> to vector<32x8xbf16>
    %cst_66 = arith.constant dense<0.000000e+00> : vector<16x8xf32>
    %213 = tpu.matmul %4, %212, %cst_66 {dimension_numbers = #tpu.dot_dimension_numbers<[1], [0], [0], [1], [0, 0, 1, 1], [], []>} : vector<16x32xbf16>, vector<32x8xbf16>, vector<16x8xf32> -> vector<16x8xf32>
    %214 = vector.extract_strided_slice %12 {offsets = [3, 0, 0], sizes = [1, 1, 8], strides = [1, 1, 1]} : vector<4x1x8xf32> to vector<1x1x8xf32>
    %215 = vector.shape_cast %214 : vector<1x1x8xf32> to vector<1x8xf32>
    %216 = vector.broadcast %215 : vector<1x8xf32> to vector<16x8xf32>
    %217 = arith.addf %213, %216 : vector<16x8xf32>
    %218 = vector.extract_strided_slice %14 {offsets = [3, 0, 0], sizes = [1, 32, 8], strides = [1, 1, 1]} : vector<4x32x8xbf16> to vector<1x32x8xbf16>
    %219 = vector.shape_cast %218 : vector<1x32x8xbf16> to vector<32x8xbf16>
    %cst_67 = arith.constant dense<0.000000e+00> : vector<16x8xf32>
    %220 = tpu.matmul %4, %219, %cst_67 {dimension_numbers = #tpu.dot_dimension_numbers<[1], [0], [0], [1], [0, 0, 1, 1], [], []>} : vector<16x32xbf16>, vector<32x8xbf16>, vector<16x8xf32> -> vector<16x8xf32>
    %221 = vector.extract_strided_slice %16 {offsets = [3, 0, 0], sizes = [1, 1, 8], strides = [1, 1, 1]} : vector<4x1x8xf32> to vector<1x1x8xf32>
    %222 = vector.shape_cast %221 : vector<1x1x8xf32> to vector<1x8xf32>
    %223 = vector.broadcast %222 : vector<1x8xf32> to vector<16x8xf32>
    %224 = arith.addf %220, %223 : vector<16x8xf32>
    %225 = arith.truncf %210 : vector<16x8xf32> to vector<16x8xbf16>
    %226 = arith.truncf %217 : vector<16x8xf32> to vector<16x8xbf16>
    %227 = arith.truncf %224 : vector<16x8xf32> to vector<16x8xbf16>
    %228 = vector.extract_strided_slice %225 {offsets = [0, 0], sizes = [8, 8], strides = [1, 1]} : vector<16x8xbf16> to vector<8x8xbf16>
    %229 = vector.extract_strided_slice %226 {offsets = [0, 0], sizes = [8, 8], strides = [1, 1]} : vector<16x8xbf16> to vector<8x8xbf16>
    %cst_68 = arith.constant dense<0.000000e+00> : vector<8x8xf32>
    %230 = tpu.matmul %228, %229, %cst_68 {dimension_numbers = #tpu.dot_dimension_numbers<[1], [1], [0], [0], [0, 0, 1, 0], [], []>} : vector<8x8xbf16>, vector<8x8xbf16>, vector<8x8xf32> -> vector<8x8xf32>
    %cst_69 = arith.constant dense<0xFF800000> : vector<8xf32>
    %231 = vector.multi_reduction <maximumf>, %230, %cst_69 [1] : vector<8x8xf32> to vector<8xf32>
    %232 = vector.shape_cast %231 : vector<8xf32> to vector<8x1xf32>
    %233 = vector.broadcast %232 : vector<8x1xf32> to vector<8x8xf32>
    %234 = arith.subf %230, %233 : vector<8x8xf32>
    %235 = math.exp %234 : vector<8x8xf32>
    %cst_70 = arith.constant dense<0.000000e+00> : vector<8xf32>
    %236 = vector.multi_reduction <add>, %235, %cst_70 [1] : vector<8x8xf32> to vector<8xf32>
    %237 = vector.shape_cast %236 : vector<8xf32> to vector<8x1xf32>
    %238 = tpu.reciprocal %237 {approx = true} : vector<8x1xf32> -> vector<8x1xf32>
    %239 = vector.broadcast %238 : vector<8x1xf32> to vector<8x8xf32>
    %240 = arith.mulf %235, %239 : vector<8x8xf32>
    %241 = arith.truncf %240 : vector<8x8xf32> to vector<8x8xbf16>
    %242 = vector.extract_strided_slice %227 {offsets = [0, 0], sizes = [8, 8], strides = [1, 1]} : vector<16x8xbf16> to vector<8x8xbf16>
    %cst_71 = arith.constant dense<0.000000e+00> : vector<8x8xf32>
    %243 = tpu.matmul %241, %242, %cst_71 {dimension_numbers = #tpu.dot_dimension_numbers<[1], [0], [0], [1], [0, 0, 1, 1], [], []>} : vector<8x8xbf16>, vector<8x8xbf16>, vector<8x8xf32> -> vector<8x8xf32>
    %244 = vector.extract_strided_slice %225 {offsets = [8, 0], sizes = [8, 8], strides = [1, 1]} : vector<16x8xbf16> to vector<8x8xbf16>
    %245 = vector.extract_strided_slice %226 {offsets = [8, 0], sizes = [8, 8], strides = [1, 1]} : vector<16x8xbf16> to vector<8x8xbf16>
    %cst_72 = arith.constant dense<0.000000e+00> : vector<8x8xf32>
    %246 = tpu.matmul %244, %245, %cst_72 {dimension_numbers = #tpu.dot_dimension_numbers<[1], [1], [0], [0], [0, 0, 1, 0], [], []>} : vector<8x8xbf16>, vector<8x8xbf16>, vector<8x8xf32> -> vector<8x8xf32>
    %cst_73 = arith.constant dense<0xFF800000> : vector<8xf32>
    %247 = vector.multi_reduction <maximumf>, %246, %cst_73 [1] : vector<8x8xf32> to vector<8xf32>
    %248 = vector.shape_cast %247 : vector<8xf32> to vector<8x1xf32>
    %249 = vector.broadcast %248 : vector<8x1xf32> to vector<8x8xf32>
    %250 = arith.subf %246, %249 : vector<8x8xf32>
    %251 = math.exp %250 : vector<8x8xf32>
    %cst_74 = arith.constant dense<0.000000e+00> : vector<8xf32>
    %252 = vector.multi_reduction <add>, %251, %cst_74 [1] : vector<8x8xf32> to vector<8xf32>
    %253 = vector.shape_cast %252 : vector<8xf32> to vector<8x1xf32>
    %254 = tpu.reciprocal %253 {approx = true} : vector<8x1xf32> -> vector<8x1xf32>
    %255 = vector.broadcast %254 : vector<8x1xf32> to vector<8x8xf32>
    %256 = arith.mulf %251, %255 : vector<8x8xf32>
    %257 = arith.truncf %256 : vector<8x8xf32> to vector<8x8xbf16>
    %258 = vector.extract_strided_slice %227 {offsets = [8, 0], sizes = [8, 8], strides = [1, 1]} : vector<16x8xbf16> to vector<8x8xbf16>
    %cst_75 = arith.constant dense<0.000000e+00> : vector<8x8xf32>
    %259 = tpu.matmul %257, %258, %cst_75 {dimension_numbers = #tpu.dot_dimension_numbers<[1], [0], [0], [1], [0, 0, 1, 1], [], []>} : vector<8x8xbf16>, vector<8x8xbf16>, vector<8x8xf32> -> vector<8x8xf32>
    %260 = tpu.concatenate %243, %259 in 0 : vector<8x8xf32>, vector<8x8xf32> -> vector<16x8xf32>
    %261 = vector.extract_strided_slice %18 {offsets = [3, 0, 0], sizes = [1, 8, 32], strides = [1, 1, 1]} : vector<4x8x32xbf16> to vector<1x8x32xbf16>
    %262 = vector.shape_cast %261 : vector<1x8x32xbf16> to vector<8x32xbf16>
    %263 = arith.truncf %260 : vector<16x8xf32> to vector<16x8xbf16>
    %cst_76 = arith.constant dense<0.000000e+00> : vector<16x32xf32>
    %264 = tpu.matmul %263, %262, %cst_76 {dimension_numbers = #tpu.dot_dimension_numbers<[1], [0], [0], [1], [0, 0, 1, 1], [], []>} : vector<16x8xbf16>, vector<8x32xbf16>, vector<16x32xf32> -> vector<16x32xf32>
    %265 = arith.addf %203, %264 : vector<16x32xf32>
    %c0_77 = arith.constant 0 : index
    %c0_78 = arith.constant 0 : index
    %c0_79 = arith.constant 0 : index
    %266 = vector.load %arg19[%c0_77, %c0_78, %c0_79] : memref<1x1x32xf32, #tpu.memory_space<vmem>>, vector<1x1x32xf32>
    %267 = vector.shape_cast %266 : vector<1x1x32xf32> to vector<1x32xf32>
    %268 = vector.broadcast %267 : vector<1x32xf32> to vector<16x32xf32>
    %269 = arith.addf %265, %268 : vector<16x32xf32>
    %270 = arith.addf %269, %3 : vector<16x32xf32>
    %c0_80 = arith.constant 0 : index
    %c0_81 = arith.constant 0 : index
    %c0_82 = arith.constant 0 : index
    %271 = vector.load %arg24[%c0_80, %c0_81, %c0_82] : memref<1x1x32xf32, #tpu.memory_space<vmem>>, vector<1x1x32xf32>
    %272 = vector.shape_cast %271 : vector<1x1x32xf32> to vector<1x32xf32>
    %273 = vector.broadcast %272 : vector<1x32xf32> to vector<16x32xf32>
    %274 = arith.mulf %270, %273 : vector<16x32xf32>
    %c0_83 = arith.constant 0 : index
    %c0_84 = arith.constant 0 : index
    %c0_85 = arith.constant 0 : index
    %275 = vector.load %arg25[%c0_83, %c0_84, %c0_85] : memref<1x1x32xf32, #tpu.memory_space<vmem>>, vector<1x1x32xf32>
    %276 = vector.shape_cast %275 : vector<1x1x32xf32> to vector<1x32xf32>
    %277 = vector.broadcast %276 : vector<1x32xf32> to vector<16x32xf32>
    %278 = arith.addf %274, %277 : vector<16x32xf32>
    %c0_86 = arith.constant 0 : index
    %c0_87 = arith.constant 0 : index
    %c0_88 = arith.constant 0 : index
    %279 = vector.load %arg20[%c0_86, %c0_87, %c0_88] : memref<1x32x64xbf16, #tpu.memory_space<vmem>>, vector<1x32x64xbf16>
    %280 = vector.shape_cast %279 : vector<1x32x64xbf16> to vector<32x64xbf16>
    %281 = arith.truncf %278 : vector<16x32xf32> to vector<16x32xbf16>
    %cst_89 = arith.constant dense<0.000000e+00> : vector<16x64xf32>
    %282 = tpu.matmul %281, %280, %cst_89 {dimension_numbers = #tpu.dot_dimension_numbers<[1], [0], [0], [1], [0, 0, 1, 1], [], []>} : vector<16x32xbf16>, vector<32x64xbf16>, vector<16x64xf32> -> vector<16x64xf32>
    %c0_90 = arith.constant 0 : index
    %c0_91 = arith.constant 0 : index
    %c0_92 = arith.constant 0 : index
    %283 = vector.load %arg21[%c0_90, %c0_91, %c0_92] : memref<1x1x64xf32, #tpu.memory_space<vmem>>, vector<1x1x64xf32>
    %284 = vector.shape_cast %283 : vector<1x1x64xf32> to vector<1x64xf32>
    %285 = vector.broadcast %284 : vector<1x64xf32> to vector<16x64xf32>
    %286 = arith.addf %282, %285 : vector<16x64xf32>
    %cst_93 = arith.constant 5.000000e-01 : f32
    %287 = vector.broadcast %cst_93 : f32 to vector<16x64xf32>
    %288 = arith.mulf %287, %286 : vector<16x64xf32>
    %cst_94 = arith.constant 4.471500e-02 : f32
    %289 = vector.broadcast %cst_94 : f32 to vector<16x64xf32>
    %290 = arith.mulf %289, %286 : vector<16x64xf32>
    %291 = arith.mulf %290, %286 : vector<16x64xf32>
    %292 = arith.mulf %291, %286 : vector<16x64xf32>
    %293 = arith.addf %286, %292 : vector<16x64xf32>
    %cst_95 = arith.constant 0.797884583 : f32
    %294 = vector.broadcast %cst_95 : f32 to vector<16x64xf32>
    %295 = arith.mulf %294, %293 : vector<16x64xf32>
    %296 = math.tanh %295 : vector<16x64xf32>
    %cst_96 = arith.constant 1.000000e+00 : f32
    %297 = vector.broadcast %cst_96 : f32 to vector<16x64xf32>
    %298 = arith.addf %297, %296 : vector<16x64xf32>
    %299 = arith.mulf %288, %298 : vector<16x64xf32>
    %c0_97 = arith.constant 0 : index
    %c0_98 = arith.constant 0 : index
    %c0_99 = arith.constant 0 : index
    %300 = vector.load %arg22[%c0_97, %c0_98, %c0_99] : memref<1x64x32xbf16, #tpu.memory_space<vmem>>, vector<1x64x32xbf16>
    %301 = vector.shape_cast %300 : vector<1x64x32xbf16> to vector<64x32xbf16>
    %302 = arith.truncf %299 : vector<16x64xf32> to vector<16x64xbf16>
    %cst_100 = arith.constant dense<0.000000e+00> : vector<16x32xf32>
    %303 = tpu.matmul %302, %301, %cst_100 {dimension_numbers = #tpu.dot_dimension_numbers<[1], [0], [0], [1], [0, 0, 1, 1], [], []>} : vector<16x64xbf16>, vector<64x32xbf16>, vector<16x32xf32> -> vector<16x32xf32>
    %c0_101 = arith.constant 0 : index
    %c0_102 = arith.constant 0 : index
    %c0_103 = arith.constant 0 : index
    %304 = vector.load %arg23[%c0_101, %c0_102, %c0_103] : memref<1x1x32xf32, #tpu.memory_space<vmem>>, vector<1x1x32xf32>
    %305 = vector.shape_cast %304 : vector<1x1x32xf32> to vector<1x32xf32>
    %306 = vector.broadcast %305 : vector<1x32xf32> to vector<16x32xf32>
    %307 = arith.addf %303, %306 : vector<16x32xf32>
    %308 = arith.addf %307, %278 : vector<16x32xf32>
    %c0_104 = arith.constant 0 : index
    %c0_105 = arith.constant 0 : index
    %c0_106 = arith.constant 0 : index
    %309 = vector.load %arg26[%c0_104, %c0_105, %c0_106] : memref<1x1x32xf32, #tpu.memory_space<vmem>>, vector<1x1x32xf32>
    %310 = vector.shape_cast %309 : vector<1x1x32xf32> to vector<1x32xf32>
    %311 = vector.broadcast %310 : vector<1x32xf32> to vector<16x32xf32>
    %312 = arith.mulf %308, %311 : vector<16x32xf32>
    %c0_107 = arith.constant 0 : index
    %c0_108 = arith.constant 0 : index
    %c0_109 = arith.constant 0 : index
    %313 = vector.load %arg27[%c0_107, %c0_108, %c0_109] : memref<1x1x32xf32, #tpu.memory_space<vmem>>, vector<1x1x32xf32>
    %314 = vector.shape_cast %313 : vector<1x1x32xf32> to vector<1x32xf32>
    %315 = vector.broadcast %314 : vector<1x32xf32> to vector<16x32xf32>
    %316 = arith.addf %312, %315 : vector<16x32xf32>
    %c0_110 = arith.constant 0 : index
    %c0_111 = arith.constant 0 : index
    %317 = vector.load %arg29[%c0_110, %c0_111] : memref<16x32xf32, #tpu.memory_space<vmem>>, vector<16x32xf32>
    tpu.vector_store %arg29[%c0_110, %c0_111], %316 {strides = array<i32>} : memref<16x32xf32, #tpu.memory_space<vmem>>, vector<16x32xf32>,
    %c1_i32 = arith.constant 1 : i32
    %318 = arith.cmpi eq, %arg1, %c1_i32 : i32
    %319 = arith.extui %318 : i1 to i32
    %c0_i32_112 = arith.constant 0 : i32
    %320 = arith.cmpi ne, %319, %c0_i32_112 : i32
    scf.if %320 {
      %c0_113 = arith.constant 0 : index
      %c0_114 = arith.constant 0 : index
      %321 = vector.load %arg8[%c0_113, %c0_114] : memref<32x64xbf16, #tpu.memory_space<vmem>>, vector<32x64xbf16>
      %322 = arith.truncf %316 : vector<16x32xf32> to vector<16x32xbf16>
      %cst_115 = arith.constant dense<0.000000e+00> : vector<16x64xf32>
      %323 = tpu.matmul %322, %321, %cst_115 {dimension_numbers = #tpu.dot_dimension_numbers<[1], [0], [0], [1], [0, 0, 1, 1], [], []>} : vector<16x32xbf16>, vector<32x64xbf16>, vector<16x64xf32> -> vector<16x64xf32>
      %c0_116 = arith.constant 0 : index
      %c0_117 = arith.constant 0 : index
      %324 = vector.load %arg9[%c0_116, %c0_117] : memref<1x64xf32, #tpu.memory_space<vmem>>, vector<1x64xf32>
      %325 = vector.broadcast %324 : vector<1x64xf32> to vector<16x64xf32>
      %326 = arith.addf %323, %325 : vector<16x64xf32>
      %cst_118 = arith.constant 5.000000e-01 : f32
      %327 = vector.broadcast %cst_118 : f32 to vector<16x64xf32>
      %328 = arith.mulf %327, %326 : vector<16x64xf32>
      %cst_119 = arith.constant 4.471500e-02 : f32
      %329 = vector.broadcast %cst_119 : f32 to vector<16x64xf32>
      %330 = arith.mulf %329, %326 : vector<16x64xf32>
      %331 = arith.mulf %330, %326 : vector<16x64xf32>
      %332 = arith.mulf %331, %326 : vector<16x64xf32>
      %333 = arith.addf %326, %332 : vector<16x64xf32>
      %cst_120 = arith.constant 0.797884583 : f32
      %334 = vector.broadcast %cst_120 : f32 to vector<16x64xf32>
      %335 = arith.mulf %334, %333 : vector<16x64xf32>
      %336 = math.tanh %335 : vector<16x64xf32>
      %cst_121 = arith.constant 1.000000e+00 : f32
      %337 = vector.broadcast %cst_121 : f32 to vector<16x64xf32>
      %338 = arith.addf %337, %336 : vector<16x64xf32>
      %339 = arith.mulf %328, %338 : vector<16x64xf32>
      %340 = vector.shape_cast %339 : vector<16x64xf32> to vector<2x8x64xf32>
      %c0_122 = arith.constant 0 : index
      %c0_123 = arith.constant 0 : index
      %341 = vector.load %arg10[%c0_122, %c0_123] : memref<1x64xf32, #tpu.memory_space<vmem>>, vector<1x64xf32>
      %342 = vector.shape_cast %341 : vector<1x64xf32> to vector<1x1x64xf32>
      %343 = vector.broadcast %342 : vector<1x1x64xf32> to vector<2x8x64xf32>
      %344 = arith.mulf %340, %343 : vector<2x8x64xf32>
      %cst_124 = arith.constant dense<0.000000e+00> : vector<2x8xf32>
      %345 = vector.multi_reduction <add>, %344, %cst_124 [2] : vector<2x8x64xf32> to vector<2x8xf32>
      %c0_125 = arith.constant 0 : index
      %c0_126 = arith.constant 0 : index
      %346 = vector.load %arg11[%c0_125, %c0_126] : memref<1x1xf32, #tpu.memory_space<vmem>>, vector<1x1xf32>
      %347 = vector.broadcast %346 : vector<1x1xf32> to vector<2x8xf32>
      %348 = arith.addf %345, %347 : vector<2x8xf32>
      %cst_127 = arith.constant dense<0x7F800000> : vector<2xf32>
      %349 = vector.multi_reduction <minimumf>, %348, %cst_127 [1] : vector<2x8xf32> to vector<2xf32>
      %350 = vector.shape_cast %349 : vector<2xf32> to vector<2x1xf32>
      %cst_128 = arith.constant dense<0xFF800000> : vector<2xf32>
      %351 = vector.multi_reduction <maximumf>, %348, %cst_128 [1] : vector<2x8xf32> to vector<2xf32>
      %352 = vector.shape_cast %351 : vector<2xf32> to vector<2x1xf32>
      %353 = arith.subf %352, %350 : vector<2x1xf32>
      %cst_129 = arith.constant 9.99999996E-13 : f32
      %354 = vector.broadcast %cst_129 : f32 to vector<2x1xf32>
      %355 = arith.maximumf %353, %354 : vector<2x1xf32>
      %356 = tpu.reciprocal %355 {approx = true} : vector<2x1xf32> -> vector<2x1xf32>
      %357 = vector.broadcast %350 : vector<2x1xf32> to vector<2x8xf32>
      %358 = arith.subf %348, %357 : vector<2x8xf32>
      %359 = vector.broadcast %356 : vector<2x1xf32> to vector<2x8xf32>
      %360 = arith.mulf %358, %359 : vector<2x8xf32>
      %c0_130 = arith.constant 0 : index
      %c0_131 = arith.constant 0 : index
      %c0_132 = arith.constant 0 : index
      %361 = vector.load %arg28[%c0_130, %c0_131, %c0_132] : memref<1x2x8xf32, #tpu.memory_space<vmem>>, vector<1x2x8xf32>
      %362 = vector.shape_cast %361 : vector<1x2x8xf32> to vector<2x8xf32>
      %363 = vector.shape_cast %360 : vector<2x8xf32> to vector<1x2x8xf32>
      tpu.vector_store %arg28[%c0_130, %c0_131, %c0_132], %363 {strides = array<i32>} : memref<1x2x8xf32, #tpu.memory_space<vmem>>, vector<1x2x8xf32>,
    } else {
    }
    return
  }
  func.func @transform_0(%arg0: i32, %arg1: i32) -> (i32, i32, i32) {
    %c0_i32 = arith.constant 0 : i32
    %c0_i32_0 = arith.constant 0 : i32
    %c0_i32_1 = arith.constant 0 : i32
    return %arg0, %c0_i32, %c0_i32_0 : i32, i32, i32
  }
  func.func @transform_1(%arg0: i32, %arg1: i32) -> (i32, i32) {
    %c0_i32 = arith.constant 0 : i32
    %c0_i32_0 = arith.constant 0 : i32
    %c0_i32_1 = arith.constant 0 : i32
    return %c0_i32, %c0_i32_0 : i32, i32
  }
  func.func @transform_2(%arg0: i32, %arg1: i32) -> (i32, i32) {
    %c0_i32 = arith.constant 0 : i32
    %c0_i32_0 = arith.constant 0 : i32
    %c0_i32_1 = arith.constant 0 : i32
    return %c0_i32, %c0_i32_0 : i32, i32
  }
  func.func @transform_3(%arg0: i32, %arg1: i32) -> (i32, i32) {
    %c0_i32 = arith.constant 0 : i32
    %c0_i32_0 = arith.constant 0 : i32
    %c0_i32_1 = arith.constant 0 : i32
    return %c0_i32, %c0_i32_0 : i32, i32
  }
  func.func @transform_4(%arg0: i32, %arg1: i32) -> (i32, i32) {
    %c0_i32 = arith.constant 0 : i32
    %c0_i32_0 = arith.constant 0 : i32
    %c0_i32_1 = arith.constant 0 : i32
    return %c0_i32, %c0_i32_0 : i32, i32
  }
  func.func @transform_5(%arg0: i32, %arg1: i32) -> (i32, i32) {
    %c0_i32 = arith.constant 0 : i32
    %c0_i32_0 = arith.constant 0 : i32
    %c0_i32_1 = arith.constant 0 : i32
    return %c0_i32, %c0_i32_0 : i32, i32
  }
  func.func @transform_6(%arg0: i32, %arg1: i32) -> (i32, i32) {
    %c0_i32 = arith.constant 0 : i32
    %c0_i32_0 = arith.constant 0 : i32
    %c0_i32_1 = arith.constant 0 : i32
    return %c0_i32, %c0_i32_0 : i32, i32
  }
  func.func @transform_7(%arg0: i32, %arg1: i32) -> (i32, i32) {
    %c0_i32 = arith.constant 0 : i32
    %c0_i32_0 = arith.constant 0 : i32
    %c0_i32_1 = arith.constant 0 : i32
    return %c0_i32, %c0_i32_0 : i32, i32
  }
  func.func @transform_8(%arg0: i32, %arg1: i32) -> (i32, i32) {
    %c0_i32 = arith.constant 0 : i32
    %c0_i32_0 = arith.constant 0 : i32
    %c0_i32_1 = arith.constant 0 : i32
    return %c0_i32, %c0_i32_0 : i32, i32
  }
  func.func @transform_9(%arg0: i32, %arg1: i32) -> (i32, i32) {
    %c0_i32 = arith.constant 0 : i32
    %c0_i32_0 = arith.constant 0 : i32
    %c0_i32_1 = arith.constant 0 : i32
    return %c0_i32, %c0_i32_0 : i32, i32
  }
  func.func @transform_10(%arg0: i32, %arg1: i32) -> (i32, i32, i32, i32) {
    %c0_i32 = arith.constant 0 : i32
    %c0_i32_0 = arith.constant 0 : i32
    %c0_i32_1 = arith.constant 0 : i32
    %c0_i32_2 = arith.constant 0 : i32
    return %arg1, %c0_i32, %c0_i32_0, %c0_i32_1 : i32, i32, i32, i32
  }
  func.func @transform_11(%arg0: i32, %arg1: i32) -> (i32, i32, i32, i32) {
    %c0_i32 = arith.constant 0 : i32
    %c0_i32_0 = arith.constant 0 : i32
    %c0_i32_1 = arith.constant 0 : i32
    %c0_i32_2 = arith.constant 0 : i32
    return %arg1, %c0_i32, %c0_i32_0, %c0_i32_1 : i32, i32, i32, i32
  }
  func.func @transform_12(%arg0: i32, %arg1: i32) -> (i32, i32, i32, i32) {
    %c0_i32 = arith.constant 0 : i32
    %c0_i32_0 = arith.constant 0 : i32
    %c0_i32_1 = arith.constant 0 : i32
    %c0_i32_2 = arith.constant 0 : i32
    return %arg1, %c0_i32, %c0_i32_0, %c0_i32_1 : i32, i32, i32, i32
  }
  func.func @transform_13(%arg0: i32, %arg1: i32) -> (i32, i32, i32, i32) {
    %c0_i32 = arith.constant 0 : i32
    %c0_i32_0 = arith.constant 0 : i32
    %c0_i32_1 = arith.constant 0 : i32
    %c0_i32_2 = arith.constant 0 : i32
    return %arg1, %c0_i32, %c0_i32_0, %c0_i32_1 : i32, i32, i32, i32
  }
  func.func @transform_14(%arg0: i32, %arg1: i32) -> (i32, i32, i32, i32) {
    %c0_i32 = arith.constant 0 : i32
    %c0_i32_0 = arith.constant 0 : i32
    %c0_i32_1 = arith.constant 0 : i32
    %c0_i32_2 = arith.constant 0 : i32
    return %arg1, %c0_i32, %c0_i32_0, %c0_i32_1 : i32, i32, i32, i32
  }
  func.func @transform_15(%arg0: i32, %arg1: i32) -> (i32, i32, i32, i32) {
    %c0_i32 = arith.constant 0 : i32
    %c0_i32_0 = arith.constant 0 : i32
    %c0_i32_1 = arith.constant 0 : i32
    %c0_i32_2 = arith.constant 0 : i32
    return %arg1, %c0_i32, %c0_i32_0, %c0_i32_1 : i32, i32, i32, i32
  }
  func.func @transform_16(%arg0: i32, %arg1: i32) -> (i32, i32, i32, i32) {
    %c0_i32 = arith.constant 0 : i32
    %c0_i32_0 = arith.constant 0 : i32
    %c0_i32_1 = arith.constant 0 : i32
    %c0_i32_2 = arith.constant 0 : i32
    return %arg1, %c0_i32, %c0_i32_0, %c0_i32_1 : i32, i32, i32, i32
  }
  func.func @transform_17(%arg0: i32, %arg1: i32) -> (i32, i32, i32) {
    %c0_i32 = arith.constant 0 : i32
    %c0_i32_0 = arith.constant 0 : i32
    %c0_i32_1 = arith.constant 0 : i32
    return %arg1, %c0_i32, %c0_i32_0 : i32, i32, i32
  }
  func.func @transform_18(%arg0: i32, %arg1: i32) -> (i32, i32, i32) {
    %c0_i32 = arith.constant 0 : i32
    %c0_i32_0 = arith.constant 0 : i32
    %c0_i32_1 = arith.constant 0 : i32
    return %arg1, %c0_i32, %c0_i32_0 : i32, i32, i32
  }
  func.func @transform_19(%arg0: i32, %arg1: i32) -> (i32, i32, i32) {
    %c0_i32 = arith.constant 0 : i32
    %c0_i32_0 = arith.constant 0 : i32
    %c0_i32_1 = arith.constant 0 : i32
    return %arg1, %c0_i32, %c0_i32_0 : i32, i32, i32
  }
  func.func @transform_20(%arg0: i32, %arg1: i32) -> (i32, i32, i32) {
    %c0_i32 = arith.constant 0 : i32
    %c0_i32_0 = arith.constant 0 : i32
    %c0_i32_1 = arith.constant 0 : i32
    return %arg1, %c0_i32, %c0_i32_0 : i32, i32, i32
  }
  func.func @transform_21(%arg0: i32, %arg1: i32) -> (i32, i32, i32) {
    %c0_i32 = arith.constant 0 : i32
    %c0_i32_0 = arith.constant 0 : i32
    %c0_i32_1 = arith.constant 0 : i32
    return %arg1, %c0_i32, %c0_i32_0 : i32, i32, i32
  }
  func.func @transform_22(%arg0: i32, %arg1: i32) -> (i32, i32, i32) {
    %c0_i32 = arith.constant 0 : i32
    %c0_i32_0 = arith.constant 0 : i32
    %c0_i32_1 = arith.constant 0 : i32
    return %arg1, %c0_i32, %c0_i32_0 : i32, i32, i32
  }
  func.func @transform_23(%arg0: i32, %arg1: i32) -> (i32, i32, i32) {
    %c0_i32 = arith.constant 0 : i32
    %c0_i32_0 = arith.constant 0 : i32
    %c0_i32_1 = arith.constant 0 : i32
    return %arg1, %c0_i32, %c0_i32_0 : i32, i32, i32
  }
  func.func @transform_24(%arg0: i32, %arg1: i32) -> (i32, i32, i32) {
    %c0_i32 = arith.constant 0 : i32
    %c0_i32_0 = arith.constant 0 : i32
    %c0_i32_1 = arith.constant 0 : i32
    return %arg1, %c0_i32, %c0_i32_0 : i32, i32, i32
  }
  func.func @transform_25(%arg0: i32, %arg1: i32) -> (i32, i32, i32) {
    %c0_i32 = arith.constant 0 : i32
    %c0_i32_0 = arith.constant 0 : i32
    %c0_i32_1 = arith.constant 0 : i32
    return %arg1, %c0_i32, %c0_i32_0 : i32, i32, i32
  }
  func.func @transform_26(%arg0: i32, %arg1: i32) -> (i32, i32, i32) {
    %c0_i32 = arith.constant 0 : i32
    %c0_i32_0 = arith.constant 0 : i32
    %c0_i32_1 = arith.constant 0 : i32
    return %arg0, %c0_i32, %c0_i32_0 : i32, i32, i32
  }
}

</mosaic_0001>

<llo_original>
// kernel: tpu_custom_call.1
$region0: #{tpu_custom_call.1}
  #allocation0 [shape = 'u32[]', space=smem, size = 0x4, offset = 0x4, fixed_abs, tag = 'smem constant byte address 0x4 - core index']
  #allocation1 [shape = 'u32[72,128]{1,0:T(1,128)}', space=vmem, size = 0x9000, scoped, tag = 'internal scratch']
  #allocation2 [shape = 'f32[16,32]{1,0:T(8,128)}', space=vmem, size = 0x2000, scoped, tag = 'scratch operand']
  #allocation3 [shape = 'f32[1,1]{1,0:T(1,128)S(1)}', space=vmem, size = 0x200, scoped, tag = 'scoped memory for tpu_custom_call.1']
  %s0 = inlined_call_operand.vmem [shape: f32[2,8,32], index: 0, kind: input, shape index: {}]
  %s1 = inlined_call_operand.vmem [shape: f32[8,32], index: 1, kind: input, shape index: {}]
  %s2 = inlined_call_operand.vmem [shape: bf16[32,64], index: 2, kind: input, shape index: {}]
  %s3 = inlined_call_operand.vmem [shape: f32[1,64], index: 3, kind: input, shape index: {}]
  %s4 = inlined_call_operand.vmem [shape: bf16[64,32], index: 4, kind: input, shape index: {}]
  %s5 = inlined_call_operand.vmem [shape: f32[1,32], index: 5, kind: input, shape index: {}]
  %s6 = inlined_call_operand.vmem [shape: bf16[32,64], index: 6, kind: input, shape index: {}]
  %s7 = inlined_call_operand.vmem [shape: f32[1,64], index: 7, kind: input, shape index: {}]
  %s8 = inlined_call_operand.vmem [shape: f32[1,64], index: 8, kind: input, shape index: {}]
  %s9 = inlined_call_operand.<no memory space> [shape: f32[1,1], index: 9, kind: input, shape index: {}]
  %s10 = inlined_call_operand.vmem [shape: bf16[2,4,32,8], index: 10, kind: input, shape index: {}]
  %s11 = inlined_call_operand.vmem [shape: f32[2,4,1,8], index: 11, kind: input, shape index: {}]
  %s12 = inlined_call_operand.vmem [shape: bf16[2,4,32,8], index: 12, kind: input, shape index: {}]
  %s13 = inlined_call_operand.vmem [shape: f32[2,4,1,8], index: 13, kind: input, shape index: {}]
  %s14 = inlined_call_operand.vmem [shape: bf16[2,4,32,8], index: 14, kind: input, shape index: {}]
  %s15 = inlined_call_operand.vmem [shape: f32[2,4,1,8], index: 15, kind: input, shape index: {}]
  %s16 = inlined_call_operand.vmem [shape: bf16[2,4,8,32], index: 16, kind: input, shape index: {}]
  %s17 = inlined_call_operand.vmem [shape: f32[2,1,32], index: 17, kind: input, shape index: {}]
  %s18 = inlined_call_operand.vmem [shape: bf16[2,32,64], index: 18, kind: input, shape index: {}]
  %s19 = inlined_call_operand.vmem [shape: f32[2,1,64], index: 19, kind: input, shape index: {}]
  %s20 = inlined_call_operand.vmem [shape: bf16[2,64,32], index: 20, kind: input, shape index: {}]
  %s21 = inlined_call_operand.vmem [shape: f32[2,1,32], index: 21, kind: input, shape index: {}]
  %s22 = inlined_call_operand.vmem [shape: f32[2,1,32], index: 22, kind: input, shape index: {}]
  %s23 = inlined_call_operand.vmem [shape: f32[2,1,32], index: 23, kind: input, shape index: {}]
  %s24 = inlined_call_operand.vmem [shape: f32[2,1,32], index: 24, kind: input, shape index: {}]
  %s25 = inlined_call_operand.vmem [shape: f32[2,1,32], index: 25, kind: input, shape index: {}]
  %s26 = inlined_call_operand.hbm [shape: f32[1,2,8], index: 26, kind: output, shape index: {}]
  %s27 = sld [smem:[#allocation0]]
  $region145: #{tpu_custom_call.1} parent=0
    _
  %s29 = ssub.s32 1, %s27
  %s30 = scalar_select 0, %s29, %s27
  %v31 = vstv %s9
  %32 = vst [vmem:[#allocation3] sm:$0x1] %v31
  $region1: #{tpu_custom_call.1} parent=0
    #allocation4 [shape = 'u8[1024]{0}', space=vmem, size = 0x400, scoped, tag = 'output window, operand 0, single buffered']
    #allocation5 [shape = 's32[2]{0}', space=sflag, size = 0x8, scoped, tag = 'scoped memory for tpu_custom_call.1']
    %33 = vsyncpa [#allocation5], 0
    loop: start=0, step=1, limit=4
    $region2: #{tpu_custom_call.1} parent=1 // loop_pre_header
      _
    $region3: #{tpu_custom_call.1} parent=1 // loop_header
      %s35 = sphi 0, %s39
      %p36 = scmp.ge.s32.totalorder %s35, 4
      %s42 = sphi 0, %s54
      %s43 = sphi 0, %s50
      %s44 = sphi 0, %s42
      %s45 = sphi 0, %s43
      %s46 = sphi 0, %s44
      %s47 = sphi 0, %s45
      %s57 = sphi 0, %s59
      %s60 = sphi 0, %s57
      %s61 = sphi 0, %s60
      %s77 = sphi 0, %s61
      %s81 = sphi 0, %s81
      %s83 = sphi 0, %s81
      %s84 = sphi 0, %s83
      %s98 = sphi 0, %s84
      %s102 = sphi 0, %s102
      %s104 = sphi 0, %s102
      %s105 = sphi 0, %s104
      %s119 = sphi 0, %s105
      %s123 = sphi 0, %s123
      %s125 = sphi 0, %s123
      %s126 = sphi 0, %s125
      %s140 = sphi 0, %s126
      %s144 = sphi 0, %s144
      %s146 = sphi 0, %s144
      %s147 = sphi 0, %s146
      %s161 = sphi 0, %s147
      %s165 = sphi 0, %s165
      %s167 = sphi 0, %s165
      %s168 = sphi 0, %s167
      %s182 = sphi 0, %s168
      %s186 = sphi 0, %s186
      %s188 = sphi 0, %s186
      %s189 = sphi 0, %s188
      %s203 = sphi 0, %s189
      %s207 = sphi 0, %s207
      %s209 = sphi 0, %s207
      %s210 = sphi 0, %s209
      %s224 = sphi 0, %s210
      %s228 = sphi 0, %s228
      %s230 = sphi 0, %s228
      %s231 = sphi 0, %s230
      %s245 = sphi 0, %s231
      %s249 = sphi 0, %s249
      %s251 = sphi 0, %s249
      %s252 = sphi 0, %s251
      %s266 = sphi 0, %s252
      %s272 = sphi 0, %s274
      %s275 = sphi 0, %s272
      %s276 = sphi 0, %s275
      %s292 = sphi 0, %s276
      %s298 = sphi 0, %s300
      %s301 = sphi 0, %s298
      %s302 = sphi 0, %s301
      %s318 = sphi 0, %s302
      %s324 = sphi 0, %s326
      %s327 = sphi 0, %s324
      %s328 = sphi 0, %s327
      %s344 = sphi 0, %s328
      %s350 = sphi 0, %s352
      %s353 = sphi 0, %s350
      %s354 = sphi 0, %s353
      %s370 = sphi 0, %s354
      %s376 = sphi 0, %s378
      %s379 = sphi 0, %s376
      %s380 = sphi 0, %s379
      %s396 = sphi 0, %s380
      %s402 = sphi 0, %s404
      %s405 = sphi 0, %s402
      %s406 = sphi 0, %s405
      %s422 = sphi 0, %s406
      %s428 = sphi 0, %s430
      %s431 = sphi 0, %s428
      %s432 = sphi 0, %s431
      %s448 = sphi 0, %s432
      %s454 = sphi 0, %s456
      %s457 = sphi 0, %s454
      %s458 = sphi 0, %s457
      %s474 = sphi 0, %s458
      %s480 = sphi 0, %s482
      %s483 = sphi 0, %s480
      %s484 = sphi 0, %s483
      %s500 = sphi 0, %s484
      %s506 = sphi 0, %s508
      %s509 = sphi 0, %s506
      %s510 = sphi 0, %s509
      %s526 = sphi 0, %s510
      %s532 = sphi 0, %s534
      %s535 = sphi 0, %s532
      %s536 = sphi 0, %s535
      %s552 = sphi 0, %s536
      %s558 = sphi 0, %s560
      %s561 = sphi 0, %s558
      %s562 = sphi 0, %s561
      %s578 = sphi 0, %s562
      %s584 = sphi 0, %s586
      %s587 = sphi 0, %s584
      %s588 = sphi 0, %s587
      %s604 = sphi 0, %s588
      %s610 = sphi 0, %s612
      %s613 = sphi 0, %s610
      %s614 = sphi 0, %s613
      %s630 = sphi 0, %s614
      %s636 = sphi 0, %s638
      %s639 = sphi 0, %s636
      %s640 = sphi 0, %s639
      %s656 = sphi 0, %s640
      %s662 = sphi 0, %s664
      %s665 = sphi 0, %s662
      %s666 = sphi 0, %s665
      %s682 = sphi 0, %s666
      %s688 = sphi 0, %s690
      %s691 = sphi 0, %s688
      %s692 = sphi 0, %s691
      %s708 = sphi 0, %s692
    $region4: #{tpu_custom_call.1} parent=1 // loop_header_branch
      %38 = sbr.rel (%p36) target = $region8
    $region5: #{tpu_custom_call.1} parent=1 // loop_body
      %s40 = ssub.s32 %s35, 1
      %s41 = ssub.s32 %s35, 2
      %s48 = sadd.s32 1, %s43
      %p49 = scmp.ge.s32.totalorder %s48, 2
      %s50 = scalar_select %p49, 0, %s48
      %s51 = sadd.s32 1, %s42
      %s52 = scalar_select %p49, %s51, %s42
      %p53 = scmp.ge.s32.totalorder %s52, 1
      %s54 = scalar_select %p53, 0, %s52
      %s55 = ssub.s32 %s42, %s54
      %p56 = scmp.eq.s32.totalorder %s55, 0
      %s58 = sadd.s32 %s57, 1
      %s59 = scalar_select %p56, %s57, %s58
      %p62 = pneg %p56
      %p63 = scmp.eq.s32.totalorder %s35, 1
      %p64 = por %p62, %p63
      %p65 = scmp.ne.s32.totalorder %s57, %s60
      %p66 = scmp.eq.s32.totalorder %s35, 0
      %p67 = por %p65, %p66
      %p68 = scmp.ne.s32.totalorder %s57, %s60
      %p69 = scmp.eq.s32.totalorder %s40, 1
      %p70 = por %p68, %p69
      %p71 = scmp.ne.s32.totalorder %s60, %s61
      %p72 = scmp.eq.s32.totalorder %s40, 0
      %p73 = por %p71, %p72
      %p74 = scmp.ne.s32.totalorder %s60, %s61
      %p75 = scmp.eq.s32.totalorder %s41, 1
      %p76 = por %p74, %p75
      %p78 = scmp.ne.s32.totalorder %s61, %s77
      %p79 = scmp.eq.s32.totalorder %s41, 0
      %p80 = por %p78, %p79
      %s82 = sadd.s32 %s81, 1
      %p85 = scmp.eq.s32.totalorder %s35, 1
      %p86 = scmp.ne.s32.totalorder %s81, %s83
      %p87 = scmp.eq.s32.totalorder %s35, 0
      %p88 = por %p86, %p87
      %p89 = scmp.ne.s32.totalorder %s81, %s83
      %p90 = scmp.eq.s32.totalorder %s40, 1
      %p91 = por %p89, %p90
      %p92 = scmp.ne.s32.totalorder %s83, %s84
      %p93 = scmp.eq.s32.totalorder %s40, 0
      %p94 = por %p92, %p93
      %p95 = scmp.ne.s32.totalorder %s83, %s84
      %p96 = scmp.eq.s32.totalorder %s41, 1
      %p97 = por %p95, %p96
      %p99 = scmp.ne.s32.totalorder %s84, %s98
      %p100 = scmp.eq.s32.totalorder %s41, 0
      %p101 = por %p99, %p100
      %s103 = sadd.s32 %s102, 1
      %p106 = scmp.eq.s32.totalorder %s35, 1
      %p107 = scmp.ne.s32.totalorder %s102, %s104
      %p108 = scmp.eq.s32.totalorder %s35, 0
      %p109 = por %p107, %p108
      %p110 = scmp.ne.s32.totalorder %s102, %s104
      %p111 = scmp.eq.s32.totalorder %s40, 1
      %p112 = por %p110, %p111
      %p113 = scmp.ne.s32.totalorder %s104, %s105
      %p114 = scmp.eq.s32.totalorder %s40, 0
      %p115 = por %p113, %p114
      %p116 = scmp.ne.s32.totalorder %s104, %s105
      %p117 = scmp.eq.s32.totalorder %s41, 1
      %p118 = por %p116, %p117
      %p120 = scmp.ne.s32.totalorder %s105, %s119
      %p121 = scmp.eq.s32.totalorder %s41, 0
      %p122 = por %p120, %p121
      %s124 = sadd.s32 %s123, 1
      %p127 = scmp.eq.s32.totalorder %s35, 1
      %p128 = scmp.ne.s32.totalorder %s123, %s125
      %p129 = scmp.eq.s32.totalorder %s35, 0
      %p130 = por %p128, %p129
      %p131 = scmp.ne.s32.totalorder %s123, %s125
      %p132 = scmp.eq.s32.totalorder %s40, 1
      %p133 = por %p131, %p132
      %p134 = scmp.ne.s32.totalorder %s125, %s126
      %p135 = scmp.eq.s32.totalorder %s40, 0
      %p136 = por %p134, %p135
      %p137 = scmp.ne.s32.totalorder %s125, %s126
      %p138 = scmp.eq.s32.totalorder %s41, 1
      %p139 = por %p137, %p138
      %p141 = scmp.ne.s32.totalorder %s126, %s140
      %p142 = scmp.eq.s32.totalorder %s41, 0
      %p143 = por %p141, %p142
      %s145 = sadd.s32 %s144, 1
      %p148 = scmp.eq.s32.totalorder %s35, 1
      %p149 = scmp.ne.s32.totalorder %s144, %s146
      %p150 = scmp.eq.s32.totalorder %s35, 0
      %p151 = por %p149, %p150
      %p152 = scmp.ne.s32.totalorder %s144, %s146
      %p153 = scmp.eq.s32.totalorder %s40, 1
      %p154 = por %p152, %p153
      %p155 = scmp.ne.s32.totalorder %s146, %s147
      %p156 = scmp.eq.s32.totalorder %s40, 0
      %p157 = por %p155, %p156
      %p158 = scmp.ne.s32.totalorder %s146, %s147
      %p159 = scmp.eq.s32.totalorder %s41, 1
      %p160 = por %p158, %p159
      %p162 = scmp.ne.s32.totalorder %s147, %s161
      %p163 = scmp.eq.s32.totalorder %s41, 0
      %p164 = por %p162, %p163
      %s166 = sadd.s32 %s165, 1
      %p169 = scmp.eq.s32.totalorder %s35, 1
      %p170 = scmp.ne.s32.totalorder %s165, %s167
      %p171 = scmp.eq.s32.totalorder %s35, 0
      %p172 = por %p170, %p171
      %p173 = scmp.ne.s32.totalorder %s165, %s167
      %p174 = scmp.eq.s32.totalorder %s40, 1
      %p175 = por %p173, %p174
      %p176 = scmp.ne.s32.totalorder %s167, %s168
      %p177 = scmp.eq.s32.totalorder %s40, 0
      %p178 = por %p176, %p177
      %p179 = scmp.ne.s32.totalorder %s167, %s168
      %p180 = scmp.eq.s32.totalorder %s41, 1
      %p181 = por %p179, %p180
      %p183 = scmp.ne.s32.totalorder %s168, %s182
      %p184 = scmp.eq.s32.totalorder %s41, 0
      %p185 = por %p183, %p184
      %s187 = sadd.s32 %s186, 1
      %p190 = scmp.eq.s32.totalorder %s35, 1
      %p191 = scmp.ne.s32.totalorder %s186, %s188
      %p192 = scmp.eq.s32.totalorder %s35, 0
      %p193 = por %p191, %p192
      %p194 = scmp.ne.s32.totalorder %s186, %s188
      %p195 = scmp.eq.s32.totalorder %s40, 1
      %p196 = por %p194, %p195
      %p197 = scmp.ne.s32.totalorder %s188, %s189
      %p198 = scmp.eq.s32.totalorder %s40, 0
      %p199 = por %p197, %p198
      %p200 = scmp.ne.s32.totalorder %s188, %s189
      %p201 = scmp.eq.s32.totalorder %s41, 1
      %p202 = por %p200, %p201
      %p204 = scmp.ne.s32.totalorder %s189, %s203
      %p205 = scmp.eq.s32.totalorder %s41, 0
      %p206 = por %p204, %p205
      %s208 = sadd.s32 %s207, 1
      %p211 = scmp.eq.s32.totalorder %s35, 1
      %p212 = scmp.ne.s32.totalorder %s207, %s209
      %p213 = scmp.eq.s32.totalorder %s35, 0
      %p214 = por %p212, %p213
      %p215 = scmp.ne.s32.totalorder %s207, %s209
      %p216 = scmp.eq.s32.totalorder %s40, 1
      %p217 = por %p215, %p216
      %p218 = scmp.ne.s32.totalorder %s209, %s210
      %p219 = scmp.eq.s32.totalorder %s40, 0
      %p220 = por %p218, %p219
      %p221 = scmp.ne.s32.totalorder %s209, %s210
      %p222 = scmp.eq.s32.totalorder %s41, 1
      %p223 = por %p221, %p222
      %p225 = scmp.ne.s32.totalorder %s210, %s224
      %p226 = scmp.eq.s32.totalorder %s41, 0
      %p227 = por %p225, %p226
      %s229 = sadd.s32 %s228, 1
      %p232 = scmp.eq.s32.totalorder %s35, 1
      %p233 = scmp.ne.s32.totalorder %s228, %s230
      %p234 = scmp.eq.s32.totalorder %s35, 0
      %p235 = por %p233, %p234
      %p236 = scmp.ne.s32.totalorder %s228, %s230
      %p237 = scmp.eq.s32.totalorder %s40, 1
      %p238 = por %p236, %p237
      %p239 = scmp.ne.s32.totalorder %s230, %s231
      %p240 = scmp.eq.s32.totalorder %s40, 0
      %p241 = por %p239, %p240
      %p242 = scmp.ne.s32.totalorder %s230, %s231
      %p243 = scmp.eq.s32.totalorder %s41, 1
      %p244 = por %p242, %p243
      %p246 = scmp.ne.s32.totalorder %s231, %s245
      %p247 = scmp.eq.s32.totalorder %s41, 0
      %p248 = por %p246, %p247
      %s250 = sadd.s32 %s249, 1
      %p253 = scmp.eq.s32.totalorder %s35, 1
      %p254 = scmp.ne.s32.totalorder %s249, %s251
      %p255 = scmp.eq.s32.totalorder %s35, 0
      %p256 = por %p254, %p255
      %p257 = scmp.ne.s32.totalorder %s249, %s251
      %p258 = scmp.eq.s32.totalorder %s40, 1
      %p259 = por %p257, %p258
      %p260 = scmp.ne.s32.totalorder %s251, %s252
      %p261 = scmp.eq.s32.totalorder %s40, 0
      %p262 = por %p260, %p261
      %p263 = scmp.ne.s32.totalorder %s251, %s252
      %p264 = scmp.eq.s32.totalorder %s41, 1
      %p265 = por %p263, %p264
      %p267 = scmp.ne.s32.totalorder %s252, %s266
      %p268 = scmp.eq.s32.totalorder %s41, 0
      %p269 = por %p267, %p268
      %s270 = ssub.s32 %s43, %s50
      %p271 = scmp.eq.s32.totalorder %s270, 0
      %s273 = sadd.s32 %s272, 1
      %s274 = scalar_select %p271, %s272, %s273
      %p277 = pneg %p271
      %p278 = scmp.eq.s32.totalorder %s35, 1
      %p279 = por %p277, %p278
      %p280 = scmp.ne.s32.totalorder %s272, %s275
      %p281 = scmp.eq.s32.totalorder %s35, 0
      %p282 = por %p280, %p281
      %p283 = scmp.ne.s32.totalorder %s272, %s275
      %p284 = scmp.eq.s32.totalorder %s40, 1
      %p285 = por %p283, %p284
      %p286 = scmp.ne.s32.totalorder %s275, %s276
      %p287 = scmp.eq.s32.totalorder %s40, 0
      %p288 = por %p286, %p287
      %p289 = scmp.ne.s32.totalorder %s275, %s276
      %p290 = scmp.eq.s32.totalorder %s41, 1
      %p291 = por %p289, %p290
      %p293 = scmp.ne.s32.totalorder %s276, %s292
      %p294 = scmp.eq.s32.totalorder %s41, 0
      %p295 = por %p293, %p294
      %s296 = ssub.s32 %s43, %s50
      %p297 = scmp.eq.s32.totalorder %s296, 0
      %s299 = sadd.s32 %s298, 1
      %s300 = scalar_select %p297, %s298, %s299
      %p303 = pneg %p297
      %p304 = scmp.eq.s32.totalorder %s35, 1
      %p305 = por %p303, %p304
      %p306 = scmp.ne.s32.totalorder %s298, %s301
      %p307 = scmp.eq.s32.totalorder %s35, 0
      %p308 = por %p306, %p307
      %p309 = scmp.ne.s32.totalorder %s298, %s301
      %p310 = scmp.eq.s32.totalorder %s40, 1
      %p311 = por %p309, %p310
      %p312 = scmp.ne.s32.totalorder %s301, %s302
      %p313 = scmp.eq.s32.totalorder %s40, 0
      %p314 = por %p312, %p313
      %p315 = scmp.ne.s32.totalorder %s301, %s302
      %p316 = scmp.eq.s32.totalorder %s41, 1
      %p317 = por %p315, %p316
      %p319 = scmp.ne.s32.totalorder %s302, %s318
      %p320 = scmp.eq.s32.totalorder %s41, 0
      %p321 = por %p319, %p320
      %s322 = ssub.s32 %s43, %s50
      %p323 = scmp.eq.s32.totalorder %s322, 0
      %s325 = sadd.s32 %s324, 1
      %s326 = scalar_select %p323, %s324, %s325
      %p329 = pneg %p323
      %p330 = scmp.eq.s32.totalorder %s35, 1
      %p331 = por %p329, %p330
      %p332 = scmp.ne.s32.totalorder %s324, %s327
      %p333 = scmp.eq.s32.totalorder %s35, 0
      %p334 = por %p332, %p333
      %p335 = scmp.ne.s32.totalorder %s324, %s327
      %p336 = scmp.eq.s32.totalorder %s40, 1
      %p337 = por %p335, %p336
      %p338 = scmp.ne.s32.totalorder %s327, %s328
      %p339 = scmp.eq.s32.totalorder %s40, 0
      %p340 = por %p338, %p339
      %p341 = scmp.ne.s32.totalorder %s327, %s328
      %p342 = scmp.eq.s32.totalorder %s41, 1
      %p343 = por %p341, %p342
      %p345 = scmp.ne.s32.totalorder %s328, %s344
      %p346 = scmp.eq.s32.totalorder %s41, 0
      %p347 = por %p345, %p346
      %s348 = ssub.s32 %s43, %s50
      %p349 = scmp.eq.s32.totalorder %s348, 0
      %s351 = sadd.s32 %s350, 1
      %s352 = scalar_select %p349, %s350, %s351
      %p355 = pneg %p349
      %p356 = scmp.eq.s32.totalorder %s35, 1
      %p357 = por %p355, %p356
      %p358 = scmp.ne.s32.totalorder %s350, %s353
      %p359 = scmp.eq.s32.totalorder %s35, 0
      %p360 = por %p358, %p359
      %p361 = scmp.ne.s32.totalorder %s350, %s353
      %p362 = scmp.eq.s32.totalorder %s40, 1
      %p363 = por %p361, %p362
      %p364 = scmp.ne.s32.totalorder %s353, %s354
      %p365 = scmp.eq.s32.totalorder %s40, 0
      %p366 = por %p364, %p365
      %p367 = scmp.ne.s32.totalorder %s353, %s354
      %p368 = scmp.eq.s32.totalorder %s41, 1
      %p369 = por %p367, %p368
      %p371 = scmp.ne.s32.totalorder %s354, %s370
      %p372 = scmp.eq.s32.totalorder %s41, 0
      %p373 = por %p371, %p372
      %s374 = ssub.s32 %s43, %s50
      %p375 = scmp.eq.s32.totalorder %s374, 0
      %s377 = sadd.s32 %s376, 1
      %s378 = scalar_select %p375, %s376, %s377
      %p381 = pneg %p375
      %p382 = scmp.eq.s32.totalorder %s35, 1
      %p383 = por %p381, %p382
      %p384 = scmp.ne.s32.totalorder %s376, %s379
      %p385 = scmp.eq.s32.totalorder %s35, 0
      %p386 = por %p384, %p385
      %p387 = scmp.ne.s32.totalorder %s376, %s379
      %p388 = scmp.eq.s32.totalorder %s40, 1
      %p389 = por %p387, %p388
      %p390 = scmp.ne.s32.totalorder %s379, %s380
      %p391 = scmp.eq.s32.totalorder %s40, 0
      %p392 = por %p390, %p391
      %p393 = scmp.ne.s32.totalorder %s379, %s380
      %p394 = scmp.eq.s32.totalorder %s41, 1
      %p395 = por %p393, %p394
      %p397 = scmp.ne.s32.totalorder %s380, %s396
      %p398 = scmp.eq.s32.totalorder %s41, 0
      %p399 = por %p397, %p398
      %s400 = ssub.s32 %s43, %s50
      %p401 = scmp.eq.s32.totalorder %s400, 0
      %s403 = sadd.s32 %s402, 1
      %s404 = scalar_select %p401, %s402, %s403
      %p407 = pneg %p401
      %p408 = scmp.eq.s32.totalorder %s35, 1
      %p409 = por %p407, %p408
      %p410 = scmp.ne.s32.totalorder %s402, %s405
      %p411 = scmp.eq.s32.totalorder %s35, 0
      %p412 = por %p410, %p411
      %p413 = scmp.ne.s32.totalorder %s402, %s405
      %p414 = scmp.eq.s32.totalorder %s40, 1
      %p415 = por %p413, %p414
      %p416 = scmp.ne.s32.totalorder %s405, %s406
      %p417 = scmp.eq.s32.totalorder %s40, 0
      %p418 = por %p416, %p417
      %p419 = scmp.ne.s32.totalorder %s405, %s406
      %p420 = scmp.eq.s32.totalorder %s41, 1
      %p421 = por %p419, %p420
      %p423 = scmp.ne.s32.totalorder %s406, %s422
      %p424 = scmp.eq.s32.totalorder %s41, 0
      %p425 = por %p423, %p424
      %s426 = ssub.s32 %s43, %s50
      %p427 = scmp.eq.s32.totalorder %s426, 0
      %s429 = sadd.s32 %s428, 1
      %s430 = scalar_select %p427, %s428, %s429
      %p433 = pneg %p427
      %p434 = scmp.eq.s32.totalorder %s35, 1
      %p435 = por %p433, %p434
      %p436 = scmp.ne.s32.totalorder %s428, %s431
      %p437 = scmp.eq.s32.totalorder %s35, 0
      %p438 = por %p436, %p437
      %p439 = scmp.ne.s32.totalorder %s428, %s431
      %p440 = scmp.eq.s32.totalorder %s40, 1
      %p441 = por %p439, %p440
      %p442 = scmp.ne.s32.totalorder %s431, %s432
      %p443 = scmp.eq.s32.totalorder %s40, 0
      %p444 = por %p442, %p443
      %p445 = scmp.ne.s32.totalorder %s431, %s432
      %p446 = scmp.eq.s32.totalorder %s41, 1
      %p447 = por %p445, %p446
      %p449 = scmp.ne.s32.totalorder %s432, %s448
      %p450 = scmp.eq.s32.totalorder %s41, 0
      %p451 = por %p449, %p450
      %s452 = ssub.s32 %s43, %s50
      %p453 = scmp.eq.s32.totalorder %s452, 0
      %s455 = sadd.s32 %s454, 1
      %s456 = scalar_select %p453, %s454, %s455
      %p459 = pneg %p453
      %p460 = scmp.eq.s32.totalorder %s35, 1
      %p461 = por %p459, %p460
      %p462 = scmp.ne.s32.totalorder %s454, %s457
      %p463 = scmp.eq.s32.totalorder %s35, 0
      %p464 = por %p462, %p463
      %p465 = scmp.ne.s32.totalorder %s454, %s457
      %p466 = scmp.eq.s32.totalorder %s40, 1
      %p467 = por %p465, %p466
      %p468 = scmp.ne.s32.totalorder %s457, %s458
      %p469 = scmp.eq.s32.totalorder %s40, 0
      %p470 = por %p468, %p469
      %p471 = scmp.ne.s32.totalorder %s457, %s458
      %p472 = scmp.eq.s32.totalorder %s41, 1
      %p473 = por %p471, %p472
      %p475 = scmp.ne.s32.totalorder %s458, %s474
      %p476 = scmp.eq.s32.totalorder %s41, 0
      %p477 = por %p475, %p476
      %s478 = ssub.s32 %s43, %s50
      %p479 = scmp.eq.s32.totalorder %s478, 0
      %s481 = sadd.s32 %s480, 1
      %s482 = scalar_select %p479, %s480, %s481
      %p485 = pneg %p479
      %p486 = scmp.eq.s32.totalorder %s35, 1
      %p487 = por %p485, %p486
      %p488 = scmp.ne.s32.totalorder %s480, %s483
      %p489 = scmp.eq.s32.totalorder %s35, 0
      %p490 = por %p488, %p489
      %p491 = scmp.ne.s32.totalorder %s480, %s483
      %p492 = scmp.eq.s32.totalorder %s40, 1
      %p493 = por %p491, %p492
      %p494 = scmp.ne.s32.totalorder %s483, %s484
      %p495 = scmp.eq.s32.totalorder %s40, 0
      %p496 = por %p494, %p495
      %p497 = scmp.ne.s32.totalorder %s483, %s484
      %p498 = scmp.eq.s32.totalorder %s41, 1
      %p499 = por %p497, %p498
      %p501 = scmp.ne.s32.totalorder %s484, %s500
      %p502 = scmp.eq.s32.totalorder %s41, 0
      %p503 = por %p501, %p502
      %s504 = ssub.s32 %s43, %s50
      %p505 = scmp.eq.s32.totalorder %s504, 0
      %s507 = sadd.s32 %s506, 1
      %s508 = scalar_select %p505, %s506, %s507
      %p511 = pneg %p505
      %p512 = scmp.eq.s32.totalorder %s35, 1
      %p513 = por %p511, %p512
      %p514 = scmp.ne.s32.totalorder %s506, %s509
      %p515 = scmp.eq.s32.totalorder %s35, 0
      %p516 = por %p514, %p515
      %p517 = scmp.ne.s32.totalorder %s506, %s509
      %p518 = scmp.eq.s32.totalorder %s40, 1
      %p519 = por %p517, %p518
      %p520 = scmp.ne.s32.totalorder %s509, %s510
      %p521 = scmp.eq.s32.totalorder %s40, 0
      %p522 = por %p520, %p521
      %p523 = scmp.ne.s32.totalorder %s509, %s510
      %p524 = scmp.eq.s32.totalorder %s41, 1
      %p525 = por %p523, %p524
      %p527 = scmp.ne.s32.totalorder %s510, %s526
      %p528 = scmp.eq.s32.totalorder %s41, 0
      %p529 = por %p527, %p528
      %s530 = ssub.s32 %s43, %s50
      %p531 = scmp.eq.s32.totalorder %s530, 0
      %s533 = sadd.s32 %s532, 1
      %s534 = scalar_select %p531, %s532, %s533
      %p537 = pneg %p531
      %p538 = scmp.eq.s32.totalorder %s35, 1
      %p539 = por %p537, %p538
      %p540 = scmp.ne.s32.totalorder %s532, %s535
      %p541 = scmp.eq.s32.totalorder %s35, 0
      %p542 = por %p540, %p541
      %p543 = scmp.ne.s32.totalorder %s532, %s535
      %p544 = scmp.eq.s32.totalorder %s40, 1
      %p545 = por %p543, %p544
      %p546 = scmp.ne.s32.totalorder %s535, %s536
      %p547 = scmp.eq.s32.totalorder %s40, 0
      %p548 = por %p546, %p547
      %p549 = scmp.ne.s32.totalorder %s535, %s536
      %p550 = scmp.eq.s32.totalorder %s41, 1
      %p551 = por %p549, %p550
      %p553 = scmp.ne.s32.totalorder %s536, %s552
      %p554 = scmp.eq.s32.totalorder %s41, 0
      %p555 = por %p553, %p554
      %s556 = ssub.s32 %s43, %s50
      %p557 = scmp.eq.s32.totalorder %s556, 0
      %s559 = sadd.s32 %s558, 1
      %s560 = scalar_select %p557, %s558, %s559
      %p563 = pneg %p557
      %p564 = scmp.eq.s32.totalorder %s35, 1
      %p565 = por %p563, %p564
      %p566 = scmp.ne.s32.totalorder %s558, %s561
      %p567 = scmp.eq.s32.totalorder %s35, 0
      %p568 = por %p566, %p567
      %p569 = scmp.ne.s32.totalorder %s558, %s561
      %p570 = scmp.eq.s32.totalorder %s40, 1
      %p571 = por %p569, %p570
      %p572 = scmp.ne.s32.totalorder %s561, %s562
      %p573 = scmp.eq.s32.totalorder %s40, 0
      %p574 = por %p572, %p573
      %p575 = scmp.ne.s32.totalorder %s561, %s562
      %p576 = scmp.eq.s32.totalorder %s41, 1
      %p577 = por %p575, %p576
      %p579 = scmp.ne.s32.totalorder %s562, %s578
      %p580 = scmp.eq.s32.totalorder %s41, 0
      %p581 = por %p579, %p580
      %s582 = ssub.s32 %s43, %s50
      %p583 = scmp.eq.s32.totalorder %s582, 0
      %s585 = sadd.s32 %s584, 1
      %s586 = scalar_select %p583, %s584, %s585
      %p589 = pneg %p583
      %p590 = scmp.eq.s32.totalorder %s35, 1
      %p591 = por %p589, %p590
      %p592 = scmp.ne.s32.totalorder %s584, %s587
      %p593 = scmp.eq.s32.totalorder %s35, 0
      %p594 = por %p592, %p593
      %p595 = scmp.ne.s32.totalorder %s584, %s587
      %p596 = scmp.eq.s32.totalorder %s40, 1
      %p597 = por %p595, %p596
      %p598 = scmp.ne.s32.totalorder %s587, %s588
      %p599 = scmp.eq.s32.totalorder %s40, 0
      %p600 = por %p598, %p599
      %p601 = scmp.ne.s32.totalorder %s587, %s588
      %p602 = scmp.eq.s32.totalorder %s41, 1
      %p603 = por %p601, %p602
      %p605 = scmp.ne.s32.totalorder %s588, %s604
      %p606 = scmp.eq.s32.totalorder %s41, 0
      %p607 = por %p605, %p606
      %s608 = ssub.s32 %s43, %s50
      %p609 = scmp.eq.s32.totalorder %s608, 0
      %s611 = sadd.s32 %s610, 1
      %s612 = scalar_select %p609, %s610, %s611
      %p615 = pneg %p609
      %p616 = scmp.eq.s32.totalorder %s35, 1
      %p617 = por %p615, %p616
      %p618 = scmp.ne.s32.totalorder %s610, %s613
      %p619 = scmp.eq.s32.totalorder %s35, 0
      %p620 = por %p618, %p619
      %p621 = scmp.ne.s32.totalorder %s610, %s613
      %p622 = scmp.eq.s32.totalorder %s40, 1
      %p623 = por %p621, %p622
      %p624 = scmp.ne.s32.totalorder %s613, %s614
      %p625 = scmp.eq.s32.totalorder %s40, 0
      %p626 = por %p624, %p625
      %p627 = scmp.ne.s32.totalorder %s613, %s614
      %p628 = scmp.eq.s32.totalorder %s41, 1
      %p629 = por %p627, %p628
      %p631 = scmp.ne.s32.totalorder %s614, %s630
      %p632 = scmp.eq.s32.totalorder %s41, 0
      %p633 = por %p631, %p632
      %s634 = ssub.s32 %s43, %s50
      %p635 = scmp.eq.s32.totalorder %s634, 0
      %s637 = sadd.s32 %s636, 1
      %s638 = scalar_select %p635, %s636, %s637
      %p641 = pneg %p635
      %p642 = scmp.eq.s32.totalorder %s35, 1
      %p643 = por %p641, %p642
      %p644 = scmp.ne.s32.totalorder %s636, %s639
      %p645 = scmp.eq.s32.totalorder %s35, 0
      %p646 = por %p644, %p645
      %p647 = scmp.ne.s32.totalorder %s636, %s639
      %p648 = scmp.eq.s32.totalorder %s40, 1
      %p649 = por %p647, %p648
      %p650 = scmp.ne.s32.totalorder %s639, %s640
      %p651 = scmp.eq.s32.totalorder %s40, 0
      %p652 = por %p650, %p651
      %p653 = scmp.ne.s32.totalorder %s639, %s640
      %p654 = scmp.eq.s32.totalorder %s41, 1
      %p655 = por %p653, %p654
      %p657 = scmp.ne.s32.totalorder %s640, %s656
      %p658 = scmp.eq.s32.totalorder %s41, 0
      %p659 = por %p657, %p658
      %s660 = ssub.s32 %s43, %s50
      %p661 = scmp.eq.s32.totalorder %s660, 0
      %s663 = sadd.s32 %s662, 1
      %s664 = scalar_select %p661, %s662, %s663
      %p667 = pneg %p661
      %p668 = scmp.eq.s32.totalorder %s35, 1
      %p669 = por %p667, %p668
      %p670 = scmp.ne.s32.totalorder %s662, %s665
      %p671 = scmp.eq.s32.totalorder %s35, 0
      %p672 = por %p670, %p671
      %p673 = scmp.ne.s32.totalorder %s662, %s665
      %p674 = scmp.eq.s32.totalorder %s40, 1
      %p675 = por %p673, %p674
      %p676 = scmp.ne.s32.totalorder %s665, %s666
      %p677 = scmp.eq.s32.totalorder %s40, 0
      %p678 = por %p676, %p677
      %p679 = scmp.ne.s32.totalorder %s665, %s666
      %p680 = scmp.eq.s32.totalorder %s41, 1
      %p681 = por %p679, %p680
      %p683 = scmp.ne.s32.totalorder %s666, %s682
      %p684 = scmp.eq.s32.totalorder %s41, 0
      %p685 = por %p683, %p684
      %s686 = ssub.s32 %s42, %s54
      %p687 = scmp.eq.s32.totalorder %s686, 0
      %s689 = sadd.s32 %s688, 1
      %s690 = scalar_select %p687, %s688, %s689
      %p693 = pneg %p687
      %p694 = scmp.eq.s32.totalorder %s35, 1
      %p695 = por %p693, %p694
      %p696 = scmp.ne.s32.totalorder %s688, %s691
      %p697 = scmp.eq.s32.totalorder %s35, 0
      %p698 = por %p696, %p697
      %p699 = scmp.ne.s32.totalorder %s688, %s691
      %p700 = scmp.eq.s32.totalorder %s40, 1
      %p701 = por %p699, %p700
      %p702 = scmp.ne.s32.totalorder %s691, %s692
      %p703 = scmp.eq.s32.totalorder %s40, 0
      %p704 = por %p702, %p703
      %p705 = scmp.ne.s32.totalorder %s691, %s692
      %p706 = scmp.eq.s32.totalorder %s41, 1
      %p707 = por %p705, %p706
      %p709 = scmp.ne.s32.totalorder %s692, %s708
      %p710 = scmp.eq.s32.totalorder %s41, 0
      %p711 = por %p709, %p710
      %p712 = scmp.le.s32.totalorder 1, %s35
      %p713 = scmp.lt.s32.totalorder %s35, 3
      %p714 = pnand %p712, %p713
      %p715 = pneg %p714
      // Predicated region
      $region9: #{tpu_custom_call.1} parent=5 // pred_check
        _
      $region10: #{tpu_custom_call.1} parent=5 // pred_check_branch
        %717 = sbr.rel (%p714) target = $region12
      $region11: #{tpu_custom_call.1} parent=5 // pred_region
        %s718 = ssub.s32 %s35, 1
        // Predicated region
        $region13: #{tpu_custom_call.1} parent=11 // pred_check
          %p719 = pneg %p73
        $region14: #{tpu_custom_call.1} parent=11 // pred_check_branch
          %721 = sbr.rel (%p719) target = $region16
        $region15: #{tpu_custom_call.1} parent=11 // pred_region
          %s722 = smul.u32 2, %s44
          %p723 = scmp.lt.s32.totalorder %s722, 1
          %s724 = scalar_select %p723, %s722, 1
          %s725 = smul.addr %s724, 8
          %s726 = scalar_lea.vmem %s0, %s725
          %s727 = smul.u32 2, %s44
        $region16: #{tpu_custom_call.1} parent=11 // pred_fallthru
          _
        // Predicated region
        $region17: #{tpu_custom_call.1} parent=11 // pred_check
          %p728 = pneg %p94
        $region18: #{tpu_custom_call.1} parent=11 // pred_check_branch
          %730 = sbr.rel (%p728) target = $region20
        $region19: #{tpu_custom_call.1} parent=11 // pred_region
          _
        $region20: #{tpu_custom_call.1} parent=11 // pred_fallthru
          _
        // Predicated region
        $region21: #{tpu_custom_call.1} parent=11 // pred_check
          %p731 = pneg %p115
        $region22: #{tpu_custom_call.1} parent=11 // pred_check_branch
          %733 = sbr.rel (%p731) target = $region24
        $region23: #{tpu_custom_call.1} parent=11 // pred_region
          _
        $region24: #{tpu_custom_call.1} parent=11 // pred_fallthru
          _
        // Predicated region
        $region25: #{tpu_custom_call.1} parent=11 // pred_check
          %p734 = pneg %p136
        $region26: #{tpu_custom_call.1} parent=11 // pred_check_branch
          %736 = sbr.rel (%p734) target = $region28
        $region27: #{tpu_custom_call.1} parent=11 // pred_region
          _
        $region28: #{tpu_custom_call.1} parent=11 // pred_fallthru
          _
        // Predicated region
        $region29: #{tpu_custom_call.1} parent=11 // pred_check
          %p737 = pneg %p157
        $region30: #{tpu_custom_call.1} parent=11 // pred_check_branch
          %739 = sbr.rel (%p737) target = $region32
        $region31: #{tpu_custom_call.1} parent=11 // pred_region
          _
        $region32: #{tpu_custom_call.1} parent=11 // pred_fallthru
          _
        // Predicated region
        $region33: #{tpu_custom_call.1} parent=11 // pred_check
          %p740 = pneg %p178
        $region34: #{tpu_custom_call.1} parent=11 // pred_check_branch
          %742 = sbr.rel (%p740) target = $region36
        $region35: #{tpu_custom_call.1} parent=11 // pred_region
          _
        $region36: #{tpu_custom_call.1} parent=11 // pred_fallthru
          _
        // Predicated region
        $region37: #{tpu_custom_call.1} parent=11 // pred_check
          %p743 = pneg %p199
        $region38: #{tpu_custom_call.1} parent=11 // pred_check_branch
          %745 = sbr.rel (%p743) target = $region40
        $region39: #{tpu_custom_call.1} parent=11 // pred_region
          _
        $region40: #{tpu_custom_call.1} parent=11 // pred_fallthru
          _
        // Predicated region
        $region41: #{tpu_custom_call.1} parent=11 // pred_check
          %p746 = pneg %p220
        $region42: #{tpu_custom_call.1} parent=11 // pred_check_branch
          %748 = sbr.rel (%p746) target = $region44
        $region43: #{tpu_custom_call.1} parent=11 // pred_region
          _
        $region44: #{tpu_custom_call.1} parent=11 // pred_fallthru
          _
        // Predicated region
        $region45: #{tpu_custom_call.1} parent=11 // pred_check
          %p749 = pneg %p241
        $region46: #{tpu_custom_call.1} parent=11 // pred_check_branch
          %751 = sbr.rel (%p749) target = $region48
        $region47: #{tpu_custom_call.1} parent=11 // pred_region
          _
        $region48: #{tpu_custom_call.1} parent=11 // pred_fallthru
          _
        // Predicated region
        $region49: #{tpu_custom_call.1} parent=11 // pred_check
          %p752 = pneg %p262
        $region50: #{tpu_custom_call.1} parent=11 // pred_check_branch
          %754 = sbr.rel (%p752) target = $region52
        $region51: #{tpu_custom_call.1} parent=11 // pred_region
          _
        $region52: #{tpu_custom_call.1} parent=11 // pred_fallthru
          _
      $region12: #{tpu_custom_call.1} parent=5 // pred_fallthru
        _
      %p755 = scmp.lt.s32.totalorder %s35, 2
      // Predicated region
      $region53: #{tpu_custom_call.1} parent=5 // pred_check
        %p756 = pneg %p755
      $region54: #{tpu_custom_call.1} parent=5 // pred_check_branch
        %758 = sbr.rel (%p756) target = $region56
      $region55: #{tpu_custom_call.1} parent=5 // pred_region
        // Predicated region
        $region57: #{tpu_custom_call.1} parent=55 // pred_check
          %p759 = pneg %p282
        $region58: #{tpu_custom_call.1} parent=55 // pred_check_branch
          %761 = sbr.rel (%p759) target = $region60
        $region59: #{tpu_custom_call.1} parent=55 // pred_region
          %p762 = scmp.lt.s32.totalorder %s43, 1
          %s763 = scalar_select %p762, %s43, 1
          %s764 = smul.addr %s763, 16
          %s765 = smul.addr %s764, 4
          %s766 = scalar_lea.vmem %s10, %s765
        $region60: #{tpu_custom_call.1} parent=55 // pred_fallthru
          _
        // Predicated region
        $region61: #{tpu_custom_call.1} parent=55 // pred_check
          %p767 = pneg %p308
        $region62: #{tpu_custom_call.1} parent=55 // pred_check_branch
          %769 = sbr.rel (%p767) target = $region64
        $region63: #{tpu_custom_call.1} parent=55 // pred_region
          %p770 = scmp.lt.s32.totalorder %s43, 1
          %s771 = scalar_select %p770, %s43, 1
          %s772 = smul.addr %s771, 4
          %s773 = scalar_lea.vmem %s11, %s772
        $region64: #{tpu_custom_call.1} parent=55 // pred_fallthru
          _
        // Predicated region
        $region65: #{tpu_custom_call.1} parent=55 // pred_check
          %p774 = pneg %p334
        $region66: #{tpu_custom_call.1} parent=55 // pred_check_branch
          %776 = sbr.rel (%p774) target = $region68
        $region67: #{tpu_custom_call.1} parent=55 // pred_region
          %p777 = scmp.lt.s32.totalorder %s43, 1
          %s778 = scalar_select %p777, %s43, 1
          %s779 = smul.addr %s778, 16
          %s780 = smul.addr %s779, 4
          %s781 = scalar_lea.vmem %s12, %s780
        $region68: #{tpu_custom_call.1} parent=55 // pred_fallthru
          _
        // Predicated region
        $region69: #{tpu_custom_call.1} parent=55 // pred_check
          %p782 = pneg %p360
        $region70: #{tpu_custom_call.1} parent=55 // pred_check_branch
          %784 = sbr.rel (%p782) target = $region72
        $region71: #{tpu_custom_call.1} parent=55 // pred_region
          %p785 = scmp.lt.s32.totalorder %s43, 1
          %s786 = scalar_select %p785, %s43, 1
          %s787 = smul.addr %s786, 4
          %s788 = scalar_lea.vmem %s13, %s787
        $region72: #{tpu_custom_call.1} parent=55 // pred_fallthru
          _
        // Predicated region
        $region73: #{tpu_custom_call.1} parent=55 // pred_check
          %p789 = pneg %p386
        $region74: #{tpu_custom_call.1} parent=55 // pred_check_branch
          %791 = sbr.rel (%p789) target = $region76
        $region75: #{tpu_custom_call.1} parent=55 // pred_region
          %p792 = scmp.lt.s32.totalorder %s43, 1
          %s793 = scalar_select %p792, %s43, 1
          %s794 = smul.addr %s793, 16
          %s795 = smul.addr %s794, 4
          %s796 = scalar_lea.vmem %s14, %s795
        $region76: #{tpu_custom_call.1} parent=55 // pred_fallthru
          _
        // Predicated region
        $region77: #{tpu_custom_call.1} parent=55 // pred_check
          %p797 = pneg %p412
        $region78: #{tpu_custom_call.1} parent=55 // pred_check_branch
          %799 = sbr.rel (%p797) target = $region80
        $region79: #{tpu_custom_call.1} parent=55 // pred_region
          %p800 = scmp.lt.s32.totalorder %s43, 1
          %s801 = scalar_select %p800, %s43, 1
          %s802 = smul.addr %s801, 4
          %s803 = scalar_lea.vmem %s15, %s802
        $region80: #{tpu_custom_call.1} parent=55 // pred_fallthru
          _
        // Predicated region
        $region81: #{tpu_custom_call.1} parent=55 // pred_check
          %p804 = pneg %p438
        $region82: #{tpu_custom_call.1} parent=55 // pred_check_branch
          %806 = sbr.rel (%p804) target = $region84
        $region83: #{tpu_custom_call.1} parent=55 // pred_region
          %p807 = scmp.lt.s32.totalorder %s43, 1
          %s808 = scalar_select %p807, %s43, 1
          %s809 = smul.addr %s808, 4
          %s810 = smul.addr %s809, 4
          %s811 = scalar_lea.vmem %s16, %s810
        $region84: #{tpu_custom_call.1} parent=55 // pred_fallthru
          _
        // Predicated region
        $region85: #{tpu_custom_call.1} parent=55 // pred_check
          %p812 = pneg %p464
        $region86: #{tpu_custom_call.1} parent=55 // pred_check_branch
          %814 = sbr.rel (%p812) target = $region88
        $region87: #{tpu_custom_call.1} parent=55 // pred_region
          %p815 = scmp.lt.s32.totalorder %s43, 1
          %s816 = scalar_select %p815, %s43, 1
          %s817 = scalar_lea.vmem %s17, %s816
        $region88: #{tpu_custom_call.1} parent=55 // pred_fallthru
          _
        // Predicated region
        $region89: #{tpu_custom_call.1} parent=55 // pred_check
          %p818 = pneg %p490
        $region90: #{tpu_custom_call.1} parent=55 // pred_check_branch
          %820 = sbr.rel (%p818) target = $region92
        $region91: #{tpu_custom_call.1} parent=55 // pred_region
          %p821 = scmp.lt.s32.totalorder %s43, 1
          %s822 = scalar_select %p821, %s43, 1
          %s823 = smul.addr %s822, 4
          %s824 = smul.addr %s823, 4
          %s825 = scalar_lea.vmem %s18, %s824
        $region92: #{tpu_custom_call.1} parent=55 // pred_fallthru
          _
        // Predicated region
        $region93: #{tpu_custom_call.1} parent=55 // pred_check
          %p826 = pneg %p516
        $region94: #{tpu_custom_call.1} parent=55 // pred_check_branch
          %828 = sbr.rel (%p826) target = $region96
        $region95: #{tpu_custom_call.1} parent=55 // pred_region
          %p829 = scmp.lt.s32.totalorder %s43, 1
          %s830 = scalar_select %p829, %s43, 1
          %s831 = scalar_lea.vmem %s19, %s830
        $region96: #{tpu_custom_call.1} parent=55 // pred_fallthru
          _
        // Predicated region
        $region97: #{tpu_custom_call.1} parent=55 // pred_check
          %p832 = pneg %p542
        $region98: #{tpu_custom_call.1} parent=55 // pred_check_branch
          %834 = sbr.rel (%p832) target = $region100
        $region99: #{tpu_custom_call.1} parent=55 // pred_region
          %p835 = scmp.lt.s32.totalorder %s43, 1
          %s836 = scalar_select %p835, %s43, 1
          %s837 = smul.addr %s836, 8
          %s838 = smul.addr %s837, 4
          %s839 = scalar_lea.vmem %s20, %s838
        $region100: #{tpu_custom_call.1} parent=55 // pred_fallthru
          _
        // Predicated region
        $region101: #{tpu_custom_call.1} parent=55 // pred_check
          %p840 = pneg %p568
        $region102: #{tpu_custom_call.1} parent=55 // pred_check_branch
          %842 = sbr.rel (%p840) target = $region104
        $region103: #{tpu_custom_call.1} parent=55 // pred_region
          %p843 = scmp.lt.s32.totalorder %s43, 1
          %s844 = scalar_select %p843, %s43, 1
          %s845 = scalar_lea.vmem %s21, %s844
        $region104: #{tpu_custom_call.1} parent=55 // pred_fallthru
          _
        // Predicated region
        $region105: #{tpu_custom_call.1} parent=55 // pred_check
          %p846 = pneg %p594
        $region106: #{tpu_custom_call.1} parent=55 // pred_check_branch
          %848 = sbr.rel (%p846) target = $region108
        $region107: #{tpu_custom_call.1} parent=55 // pred_region
          %p849 = scmp.lt.s32.totalorder %s43, 1
          %s850 = scalar_select %p849, %s43, 1
          %s851 = scalar_lea.vmem %s22, %s850
        $region108: #{tpu_custom_call.1} parent=55 // pred_fallthru
          _
        // Predicated region
        $region109: #{tpu_custom_call.1} parent=55 // pred_check
          %p852 = pneg %p620
        $region110: #{tpu_custom_call.1} parent=55 // pred_check_branch
          %854 = sbr.rel (%p852) target = $region112
        $region111: #{tpu_custom_call.1} parent=55 // pred_region
          %p855 = scmp.lt.s32.totalorder %s43, 1
          %s856 = scalar_select %p855, %s43, 1
          %s857 = scalar_lea.vmem %s23, %s856
        $region112: #{tpu_custom_call.1} parent=55 // pred_fallthru
          _
        // Predicated region
        $region113: #{tpu_custom_call.1} parent=55 // pred_check
          %p858 = pneg %p646
        $region114: #{tpu_custom_call.1} parent=55 // pred_check_branch
          %860 = sbr.rel (%p858) target = $region116
        $region115: #{tpu_custom_call.1} parent=55 // pred_region
          %p861 = scmp.lt.s32.totalorder %s43, 1
          %s862 = scalar_select %p861, %s43, 1
          %s863 = scalar_lea.vmem %s24, %s862
        $region116: #{tpu_custom_call.1} parent=55 // pred_fallthru
          _
        // Predicated region
        $region117: #{tpu_custom_call.1} parent=55 // pred_check
          %p864 = pneg %p672
        $region118: #{tpu_custom_call.1} parent=55 // pred_check_branch
          %866 = sbr.rel (%p864) target = $region120
        $region119: #{tpu_custom_call.1} parent=55 // pred_region
          %p867 = scmp.lt.s32.totalorder %s43, 1
          %s868 = scalar_select %p867, %s43, 1
          %s869 = scalar_lea.vmem %s25, %s868
        $region120: #{tpu_custom_call.1} parent=55 // pred_fallthru
          _
      $region56: #{tpu_custom_call.1} parent=5 // pred_fallthru
        _
      %p870 = scmp.le.s32.totalorder 1, %s35
      %p871 = scmp.lt.s32.totalorder %s35, 3
      %p872 = pnand %p870, %p871
      %p873 = pneg %p872
      // Predicated region
      $region121: #{tpu_custom_call.1} parent=5 // pred_check
        _
      $region122: #{tpu_custom_call.1} parent=5 // pred_check_branch
        %875 = sbr.rel (%p872) target = $region124
      $region123: #{tpu_custom_call.1} parent=5 // pred_region
        %s876 = ssub.s32 %s35, 1
        %s877 = smul.u32 2, %s44
        %p878 = scmp.lt.s32.totalorder %s877, 1
        %s879 = scalar_select %p878, %s877, 1
        %s880 = smul.addr %s879, 8
        %s881 = scalar_lea.vmem %s0, %s880
        %p882 = pneg %p73
        %p883 = pneg %p70
        %p884 = pneg %p94
        %p885 = pneg %p91
        %p886 = pneg %p115
        %p887 = pneg %p112
        %p888 = pneg %p136
        %p889 = pneg %p133
        %p890 = pneg %p157
        %p891 = pneg %p154
        %p892 = pneg %p178
        %p893 = pneg %p175
        %p894 = pneg %p199
        %p895 = pneg %p196
        %p896 = pneg %p220
        %p897 = pneg %p217
        %p898 = pneg %p241
        %p899 = pneg %p238
        %p900 = pneg %p262
        %p901 = pneg %p259
        %p902 = scmp.lt.s32.totalorder %s45, 1
        %s903 = scalar_select %p902, %s45, 1
        %s904 = smul.addr %s903, 16
        %s905 = smul.addr %s904, 4
        %s906 = scalar_lea.vmem %s10, %s905
        %p907 = pneg %p288
        %p908 = pneg %p285
        %p909 = scmp.lt.s32.totalorder %s45, 1
        %s910 = scalar_select %p909, %s45, 1
        %s911 = smul.addr %s910, 4
        %s912 = scalar_lea.vmem %s11, %s911
        %p913 = pneg %p314
        %p914 = pneg %p311
        %p915 = scmp.lt.s32.totalorder %s45, 1
        %s916 = scalar_select %p915, %s45, 1
        %s917 = smul.addr %s916, 16
        %s918 = smul.addr %s917, 4
        %s919 = scalar_lea.vmem %s12, %s918
        %p920 = pneg %p340
        %p921 = pneg %p337
        %p922 = scmp.lt.s32.totalorder %s45, 1
        %s923 = scalar_select %p922, %s45, 1
        %s924 = smul.addr %s923, 4
        %s925 = scalar_lea.vmem %s13, %s924
        %p926 = pneg %p366
        %p927 = pneg %p363
        %p928 = scmp.lt.s32.totalorder %s45, 1
        %s929 = scalar_select %p928, %s45, 1
        %s930 = smul.addr %s929, 16
        %s931 = smul.addr %s930, 4
        %s932 = scalar_lea.vmem %s14, %s931
        %p933 = pneg %p392
        %p934 = pneg %p389
        %p935 = scmp.lt.s32.totalorder %s45, 1
        %s936 = scalar_select %p935, %s45, 1
        %s937 = smul.addr %s936, 4
        %s938 = scalar_lea.vmem %s15, %s937
        %p939 = pneg %p418
        %p940 = pneg %p415
        %p941 = scmp.lt.s32.totalorder %s45, 1
        %s942 = scalar_select %p941, %s45, 1
        %s943 = smul.addr %s942, 4
        %s944 = smul.addr %s943, 4
        %s945 = scalar_lea.vmem %s16, %s944
        %p946 = pneg %p444
        %p947 = pneg %p441
        %p948 = scmp.lt.s32.totalorder %s45, 1
        %s949 = scalar_select %p948, %s45, 1
        %s950 = scalar_lea.vmem %s17, %s949
        %p951 = pneg %p470
        %p952 = pneg %p467
        %p953 = scmp.lt.s32.totalorder %s45, 1
        %s954 = scalar_select %p953, %s45, 1
        %s955 = smul.addr %s954, 4
        %s956 = smul.addr %s955, 4
        %s957 = scalar_lea.vmem %s18, %s956
        %p958 = pneg %p496
        %p959 = pneg %p493
        %p960 = scmp.lt.s32.totalorder %s45, 1
        %s961 = scalar_select %p960, %s45, 1
        %s962 = scalar_lea.vmem %s19, %s961
        %p963 = pneg %p522
        %p964 = pneg %p519
        %p965 = scmp.lt.s32.totalorder %s45, 1
        %s966 = scalar_select %p965, %s45, 1
        %s967 = smul.addr %s966, 8
        %s968 = smul.addr %s967, 4
        %s969 = scalar_lea.vmem %s20, %s968
        %p970 = pneg %p548
        %p971 = pneg %p545
        %p972 = scmp.lt.s32.totalorder %s45, 1
        %s973 = scalar_select %p972, %s45, 1
        %s974 = scalar_lea.vmem %s21, %s973
        %p975 = pneg %p574
        %p976 = pneg %p571
        %p977 = scmp.lt.s32.totalorder %s45, 1
        %s978 = scalar_select %p977, %s45, 1
        %s979 = scalar_lea.vmem %s22, %s978
        %p980 = pneg %p600
        %p981 = pneg %p597
        %p982 = scmp.lt.s32.totalorder %s45, 1
        %s983 = scalar_select %p982, %s45, 1
        %s984 = scalar_lea.vmem %s23, %s983
        %p985 = pneg %p626
        %p986 = pneg %p623
        %p987 = scmp.lt.s32.totalorder %s45, 1
        %s988 = scalar_select %p987, %s45, 1
        %s989 = scalar_lea.vmem %s24, %s988
        %p990 = pneg %p652
        %p991 = pneg %p649
        %p992 = scmp.lt.s32.totalorder %s45, 1
        %s993 = scalar_select %p992, %s45, 1
        %s994 = scalar_lea.vmem %s25, %s993
        %p995 = pneg %p678
        %p996 = pneg %p675
        %p997 = pneg %p704
        %p998 = pneg %p701
        %s999 = smul.u32 2, %s44
        %p1000 = scmp.lt.s32.totalorder %s999, 1
        %s1001 = scalar_select %p1000, %s999, 1
        %s1002 = smul.addr %s1001, 8
        %s1003 = scalar_lea.vmem %s0, %s1002
        %s1004 = smul.u32 2, %s44
        %p1005 = scmp.lt.s32.totalorder %s45, 1
        %s1006 = scalar_select %p1005, %s45, 1
        %s1007 = smul.addr %s1006, 16
        %s1008 = smul.addr %s1007, 4
        %s1009 = scalar_lea.vmem %s10, %s1008
        %p1010 = scmp.lt.s32.totalorder %s45, 1
        %s1011 = scalar_select %p1010, %s45, 1
        %s1012 = smul.addr %s1011, 4
        %s1013 = scalar_lea.vmem %s11, %s1012
        %p1014 = scmp.lt.s32.totalorder %s45, 1
        %s1015 = scalar_select %p1014, %s45, 1
        %s1016 = smul.addr %s1015, 16
        %s1017 = smul.addr %s1016, 4
        %s1018 = scalar_lea.vmem %s12, %s1017
        %p1019 = scmp.lt.s32.totalorder %s45, 1
        %s1020 = scalar_select %p1019, %s45, 1
        %s1021 = smul.addr %s1020, 4
        %s1022 = scalar_lea.vmem %s13, %s1021
        %p1023 = scmp.lt.s32.totalorder %s45, 1
        %s1024 = scalar_select %p1023, %s45, 1
        %s1025 = smul.addr %s1024, 16
        %s1026 = smul.addr %s1025, 4
        %s1027 = scalar_lea.vmem %s14, %s1026
        %p1028 = scmp.lt.s32.totalorder %s45, 1
        %s1029 = scalar_select %p1028, %s45, 1
        %s1030 = smul.addr %s1029, 4
        %s1031 = scalar_lea.vmem %s15, %s1030
        %p1032 = scmp.lt.s32.totalorder %s45, 1
        %s1033 = scalar_select %p1032, %s45, 1
        %s1034 = smul.addr %s1033, 4
        %s1035 = smul.addr %s1034, 4
        %s1036 = scalar_lea.vmem %s16, %s1035
        %p1037 = scmp.lt.s32.totalorder %s45, 1
        %s1038 = scalar_select %p1037, %s45, 1
        %s1039 = scalar_lea.vmem %s17, %s1038
        %p1040 = scmp.lt.s32.totalorder %s45, 1
        %s1041 = scalar_select %p1040, %s45, 1
        %s1042 = smul.addr %s1041, 4
        %s1043 = smul.addr %s1042, 4
        %s1044 = scalar_lea.vmem %s18, %s1043
        %p1045 = scmp.lt.s32.totalorder %s45, 1
        %s1046 = scalar_select %p1045, %s45, 1
        %s1047 = scalar_lea.vmem %s19, %s1046
        %p1048 = scmp.lt.s32.totalorder %s45, 1
        %s1049 = scalar_select %p1048, %s45, 1
        %s1050 = smul.addr %s1049, 8
        %s1051 = smul.addr %s1050, 4
        %s1052 = scalar_lea.vmem %s20, %s1051
        %p1053 = scmp.lt.s32.totalorder %s45, 1
        %s1054 = scalar_select %p1053, %s45, 1
        %s1055 = scalar_lea.vmem %s21, %s1054
        %p1056 = scmp.lt.s32.totalorder %s45, 1
        %s1057 = scalar_select %p1056, %s45, 1
        %s1058 = scalar_lea.vmem %s22, %s1057
        %p1059 = scmp.lt.s32.totalorder %s45, 1
        %s1060 = scalar_select %p1059, %s45, 1
        %s1061 = scalar_lea.vmem %s23, %s1060
        %p1062 = scmp.lt.s32.totalorder %s45, 1
        %s1063 = scalar_select %p1062, %s45, 1
        %s1064 = scalar_lea.vmem %s24, %s1063
        %p1065 = scmp.lt.s32.totalorder %s45, 1
        %s1066 = scalar_select %p1065, %s45, 1
        %s1067 = scalar_lea.vmem %s25, %s1066
        %p1069 = scmp.eq.s32.totalorder %s45, 0
        // Predicated region
        $region125: #{tpu_custom_call.1} parent=123 // pred_check
          %p1070 = pneg %p1069
        $region126: #{tpu_custom_call.1} parent=123 // pred_check_branch
          %1072 = sbr.rel (%p1070) target = $region128
        $region127: #{tpu_custom_call.1} parent=123 // pred_region
          %v1073 = vld [vmem:[%s1003] sm:$0xff]
          %v1074 = vld [vmem:[%s1003 + $0x8] sm:$0xff]
          %v1075 = vld [vmem:[%s1] sm:$0xff]
          %v1076 = vadd.f32 %v1073, %v1075
          %v1077 = vadd.f32 %v1074, %v1075
          %v1078 = vld [vmem:[%s2] sm:$0xf]
          %v1079 = vld [vmem:[%s2 + $0x4] sm:$0xf]
          %v1080 = vld [vmem:[%s2 + $0x8] sm:$0xf]
          %v1081 = vld [vmem:[%s2 + $0xc] sm:$0xf]
          %v1082 = vpack.c.bf16 %v1077, %v1076
          %v1083 = vld [vmem:[%s3] sm:$0x1]
          %v1085 = vperm.slane %v1083, 0
          %v1091 = vunpack.c.l.b16 %v1078
          %v1092 = vunpack.c.l.b16 %v1079
          %v1093 = vunpack.c.l.b16 %v1080
          %v1094 = vunpack.c.l.b16 %v1081
          %v1095 = vpack.c.b16 %v1092, %v1091
          %v1096 = vpack.c.b16 %v1094, %v1093
          %vm1099 = vcmask 261120
          %v1101 = vsel %vm1099, %v1082, 0
          %1103 = vmatpush.bf16.msra.mxu0 0
          %1104 = vmatpush.bf16.msra.mxu0 0
          %1105 = vmatpush.bf16.msra.mxu0 0
          %1106 = vmatpush.bf16.msra.mxu0 0
          %1107 = vmatpush.bf16.msra.mxu0 0
          %1108 = vmatpush.bf16.msra.mxu0 0
          %1109 = vmatpush.bf16.msra.mxu0 %v1096
          %1110 = vmatpush.bf16.msra.mxu0 %v1095
          %1111 = vmatmul.bf16.gmra.mxu0 %v1101
          %v1112 = vpop.f32.mrf.mxu0
          %v1113 = vadd.f32 %v1085, %v1112
          %v1114 = vpop.f32.mrf.mxu0
          %v1115 = vadd.f32 %v1085, %v1114
          %1116 = vdwg.mxu0
          %v1117 = vmul.f32 %v1113, 0.5
          %v1118 = vmul.f32 %v1115, 0.5
          %v1119 = vmul.f32 %v1113, 0.044715
          %v1120 = vmul.f32 %v1115, 0.044715
          %v1121 = vmul.f32 %v1119, %v1113
          %v1122 = vmul.f32 %v1120, %v1115
          %v1123 = vmul.f32 %v1121, %v1113
          %v1124 = vmul.f32 %v1122, %v1115
          %v1125 = vadd.f32 %v1113, %v1123
          %v1126 = vadd.f32 %v1115, %v1124
          %v1127 = vmul.f32 %v1125, 0.7978846
          %v1128 = vmul.f32 %v1126, 0.7978846
          %v1129 = vtanh.pop %v1127
          %v1130 = vtanh.pop %v1128
          %v1131 = vadd.f32 %v1129, 1.0
          %v1132 = vadd.f32 %v1130, 1.0
          %v1133 = vmul.f32 %v1117, %v1131
          %v1134 = vmul.f32 %v1118, %v1132
          %v1135 = vld [vmem:[%s4] sm:$0xf]
          %v1136 = vld [vmem:[%s4 + $0x4] sm:$0xf]
          %v1137 = vld [vmem:[%s4 + $0x8] sm:$0xf]
          %v1138 = vld [vmem:[%s4 + $0xc] sm:$0xf]
          %v1139 = vld [vmem:[%s4 + $0x10] sm:$0xf]
          %v1140 = vld [vmem:[%s4 + $0x14] sm:$0xf]
          %v1141 = vld [vmem:[%s4 + $0x18] sm:$0xf]
          %v1142 = vld [vmem:[%s4 + $0x1c] sm:$0xf]
          %v1143 = vpack.c.bf16 %v1134, %v1133
          %v1144 = vld [vmem:[%s5] sm:$0x1]
          %v1146 = vperm.slane %v1144, 0
          %v1156 = vunpack.c.l.b16 %v1135
          %v1157 = vunpack.c.l.b16 %v1136
          %v1158 = vunpack.c.l.b16 %v1137
          %v1159 = vunpack.c.l.b16 %v1138
          %v1160 = vunpack.c.l.b16 %v1139
          %v1161 = vunpack.c.l.b16 %v1140
          %v1162 = vunpack.c.l.b16 %v1141
          %v1163 = vunpack.c.l.b16 %v1142
          %v1164 = vpack.c.b16 %v1157, %v1156
          %v1165 = vpack.c.b16 %v1159, %v1158
          %v1166 = vpack.c.b16 %v1161, %v1160
          %v1167 = vpack.c.b16 %v1163, %v1162
          %vm1172 = vcmask 523264
          %v1174 = vsel %vm1172, %v1143, 0
          %1176 = vmatpush.bf16.msra.mxu0 0
          %1177 = vmatpush.bf16.msra.mxu0 0
          %1178 = vmatpush.bf16.msra.mxu0 0
          %1179 = vmatpush.bf16.msra.mxu0 0
          %1180 = vmatpush.bf16.msra.mxu0 %v1167
          %1181 = vmatpush.bf16.msra.mxu0 %v1166
          %1182 = vmatpush.bf16.msra.mxu0 %v1165
          %1183 = vmatpush.bf16.msra.mxu0 %v1164
          %1184 = vmatmul.bf16.gmra.mxu0 %v1174
          %v1185 = vpop.f32.mrf.mxu0
          %v1186 = vadd.f32 %v1146, %v1185
          %v1187 = vpop.f32.mrf.mxu0
          %v1188 = vadd.f32 %v1146, %v1187
          %1189 = vdwg.mxu0
          %1190 = vst.msk [vmem:[#allocation2] sm:$0xff] %vm1099, %v1186
          %1191 = vst.msk [vmem:[#allocation2 + $0x8] sm:$0xff] %vm1099, %v1188
        $region128: #{tpu_custom_call.1} parent=123 // pred_fallthru
          _
        %v1192 = vld [vmem:[#allocation2] sm:$0xff]
        %v1193 = vld [vmem:[#allocation2 + $0x8] sm:$0xff]
        %v1194 = vpack.c.bf16 %v1193, %v1192
        %v1195 = vld [vmem:[%s1009] sm:$0xf]
        %v1196 = vld [vmem:[%s1009 + $0x4] sm:$0xf]
        %v1197 = vld [vmem:[%s1009 + $0x8] sm:$0xf]
        %v1198 = vld [vmem:[%s1009 + $0xc] sm:$0xf]
        %v1199 = vld [vmem:[%s1009 + $0x10] sm:$0xf]
        %v1200 = vld [vmem:[%s1009 + $0x14] sm:$0xf]
        %v1201 = vld [vmem:[%s1009 + $0x18] sm:$0xf]
        %v1202 = vld [vmem:[%s1009 + $0x1c] sm:$0xf]
        %v1203 = vld [vmem:[%s1009 + $0x20] sm:$0xf]
        %v1204 = vld [vmem:[%s1009 + $0x24] sm:$0xf]
        %v1205 = vld [vmem:[%s1009 + $0x28] sm:$0xf]
        %v1206 = vld [vmem:[%s1009 + $0x2c] sm:$0xf]
        %v1207 = vld [vmem:[%s1009 + $0x30] sm:$0xf]
        %v1208 = vld [vmem:[%s1009 + $0x34] sm:$0xf]
        %v1209 = vld [vmem:[%s1009 + $0x38] sm:$0xf]
        %v1210 = vld [vmem:[%s1009 + $0x3c] sm:$0xf]
        %v1211 = vld [vmem:[%s1013] sm:$0x1]
        %v1212 = vld [vmem:[%s1013 + $0x1] sm:$0x1]
        %v1213 = vld [vmem:[%s1013 + $0x2] sm:$0x1]
        %v1214 = vld [vmem:[%s1013 + $0x3] sm:$0x1]
        %v1215 = vld [vmem:[%s1018] sm:$0xf]
        %v1216 = vld [vmem:[%s1018 + $0x4] sm:$0xf]
        %v1217 = vld [vmem:[%s1018 + $0x8] sm:$0xf]
        %v1218 = vld [vmem:[%s1018 + $0xc] sm:$0xf]
        %v1219 = vld [vmem:[%s1018 + $0x10] sm:$0xf]
        %v1220 = vld [vmem:[%s1018 + $0x14] sm:$0xf]
        %v1221 = vld [vmem:[%s1018 + $0x18] sm:$0xf]
        %v1222 = vld [vmem:[%s1018 + $0x1c] sm:$0xf]
        %v1223 = vld [vmem:[%s1018 + $0x20] sm:$0xf]
        %v1224 = vld [vmem:[%s1018 + $0x24] sm:$0xf]
        %v1225 = vld [vmem:[%s1018 + $0x28] sm:$0xf]
        %v1226 = vld [vmem:[%s1018 + $0x2c] sm:$0xf]
        %v1227 = vld [vmem:[%s1018 + $0x30] sm:$0xf]
        %v1228 = vld [vmem:[%s1018 + $0x34] sm:$0xf]
        %v1229 = vld [vmem:[%s1018 + $0x38] sm:$0xf]
        %v1230 = vld [vmem:[%s1018 + $0x3c] sm:$0xf]
        %v1231 = vld [vmem:[%s1022] sm:$0x1]
        %v1232 = vld [vmem:[%s1022 + $0x1] sm:$0x1]
        %v1233 = vld [vmem:[%s1022 + $0x2] sm:$0x1]
        %v1234 = vld [vmem:[%s1022 + $0x3] sm:$0x1]
        %v1235 = vld [vmem:[%s1027] sm:$0xf]
        %v1236 = vld [vmem:[%s1027 + $0x4] sm:$0xf]
        %v1237 = vld [vmem:[%s1027 + $0x8] sm:$0xf]
        %v1238 = vld [vmem:[%s1027 + $0xc] sm:$0xf]
        %v1239 = vld [vmem:[%s1027 + $0x10] sm:$0xf]
        %v1240 = vld [vmem:[%s1027 + $0x14] sm:$0xf]
        %v1241 = vld [vmem:[%s1027 + $0x18] sm:$0xf]
        %v1242 = vld [vmem:[%s1027 + $0x1c] sm:$0xf]
        %v1243 = vld [vmem:[%s1027 + $0x20] sm:$0xf]
        %v1244 = vld [vmem:[%s1027 + $0x24] sm:$0xf]
        %v1245 = vld [vmem:[%s1027 + $0x28] sm:$0xf]
        %v1246 = vld [vmem:[%s1027 + $0x2c] sm:$0xf]
        %v1247 = vld [vmem:[%s1027 + $0x30] sm:$0xf]
        %v1248 = vld [vmem:[%s1027 + $0x34] sm:$0xf]
        %v1249 = vld [vmem:[%s1027 + $0x38] sm:$0xf]
        %v1250 = vld [vmem:[%s1027 + $0x3c] sm:$0xf]
        %v1251 = vld [vmem:[%s1031] sm:$0x1]
        %v1252 = vld [vmem:[%s1031 + $0x1] sm:$0x1]
        %v1253 = vld [vmem:[%s1031 + $0x2] sm:$0x1]
        %v1254 = vld [vmem:[%s1031 + $0x3] sm:$0x1]
        %v1255 = vld [vmem:[%s1036] sm:$0xf]
        %v1256 = vld [vmem:[%s1036 + $0x4] sm:$0xf]
        %v1257 = vld [vmem:[%s1036 + $0x8] sm:$0xf]
        %v1258 = vld [vmem:[%s1036 + $0xc] sm:$0xf]
        %v1260 = vperm.slane %v1211, 0
        %v1266 = vunpack.c.l.b16 %v1195
        %v1267 = vunpack.c.l.b16 %v1196
        %v1268 = vunpack.c.l.b16 %v1197
        %v1269 = vunpack.c.l.b16 %v1198
        %v1270 = vpack.c.b16 %v1267, %v1266
        %v1271 = vpack.c.b16 %v1269, %v1268
        %vm1274 = vcmask 261120
        %v1276 = vsel %vm1274, %v1194, 0
        %1278 = vmatpush.bf16.msra.mxu0 0
        %1279 = vmatpush.bf16.msra.mxu0 0
        %1280 = vmatpush.bf16.msra.mxu0 0
        %1281 = vmatpush.bf16.msra.mxu0 0
        %1282 = vmatpush.bf16.msra.mxu0 0
        %1283 = vmatpush.bf16.msra.mxu0 0
        %1284 = vmatpush.bf16.msra.mxu0 %v1271
        %1285 = vmatpush.bf16.msra.mxu0 %v1270
        %1286 = vmatmul.bf16.gmra.mxu0 %v1276
        %v1287 = vpop.f32.mrf.mxu0
        %v1288 = vadd.f32 %v1260, %v1287
        %v1289 = vpop.f32.mrf.mxu0
        %v1290 = vadd.f32 %v1260, %v1289
        %1291 = vdwg.mxu0
        %v1293 = vperm.slane %v1231, 0
        %v1299 = vunpack.c.l.b16 %v1215
        %v1300 = vunpack.c.l.b16 %v1216
        %v1301 = vunpack.c.l.b16 %v1217
        %v1302 = vunpack.c.l.b16 %v1218
        %v1303 = vpack.c.b16 %v1300, %v1299
        %v1304 = vpack.c.b16 %v1302, %v1301
        %1307 = vmatpush.bf16.msra.mxu0 0
        %1308 = vmatpush.bf16.msra.mxu0 0
        %1309 = vmatpush.bf16.msra.mxu0 0
        %1310 = vmatpush.bf16.msra.mxu0 0
        %1311 = vmatpush.bf16.msra.mxu0 0
        %1312 = vmatpush.bf16.msra.mxu0 0
        %1313 = vmatpush.bf16.msra.mxu0 %v1304
        %1314 = vmatpush.bf16.msra.mxu0 %v1303
        %1315 = vmatmul.bf16.gmra.mxu0 %v1276
        %v1316 = vpop.f32.mrf.mxu0
        %v1317 = vadd.f32 %v1293, %v1316
        %v1318 = vpop.f32.mrf.mxu0
        %v1319 = vadd.f32 %v1293, %v1318
        %1320 = vdwg.mxu0
        %v1322 = vperm.slane %v1251, 0
        %v1328 = vunpack.c.l.b16 %v1235
        %v1329 = vunpack.c.l.b16 %v1236
        %v1330 = vunpack.c.l.b16 %v1237
        %v1331 = vunpack.c.l.b16 %v1238
        %v1332 = vpack.c.b16 %v1329, %v1328
        %v1333 = vpack.c.b16 %v1331, %v1330
        %1336 = vmatpush.bf16.msra.mxu0 0
        %1337 = vmatpush.bf16.msra.mxu0 0
        %1338 = vmatpush.bf16.msra.mxu0 0
        %1339 = vmatpush.bf16.msra.mxu0 0
        %1340 = vmatpush.bf16.msra.mxu0 0
        %1341 = vmatpush.bf16.msra.mxu0 0
        %1342 = vmatpush.bf16.msra.mxu0 %v1333
        %1343 = vmatpush.bf16.msra.mxu0 %v1332
        %1344 = vmatmul.bf16.gmra.mxu0 %v1276
        %v1345 = vpop.f32.mrf.mxu0
        %v1346 = vadd.f32 %v1322, %v1345
        %v1347 = vpop.f32.mrf.mxu0
        %v1348 = vadd.f32 %v1322, %v1347
        %1349 = vdwg.mxu0
        %v1350 = vpack.c.bf16 %v1288, %v1288
        %v1351 = vpack.c.bf16 %v1290, %v1290
        %v1352 = vpack.c.bf16 %v1317, %v1317
        %v1353 = vpack.c.bf16 %v1319, %v1319
        %v1354 = vpack.c.bf16 %v1346, %v1346
        %v1355 = vpack.c.bf16 %v1348, %v1348
        %vm1356 = vcmask 64512
        %v1358 = vsel %vm1356, %v1350, 0
        %v1361 = vsel %vm1356, %v1352, 0
        %1363 = vmatpush.bf16.xpose.msra.mxu0 0
        %1364 = vmatpush.bf16.xpose.msra.mxu0 0
        %1365 = vmatpush.bf16.xpose.msra.mxu0 0
        %1366 = vmatpush.bf16.xpose.msra.mxu0 0
        %1367 = vmatpush.bf16.xpose.msra.mxu0 0
        %1368 = vmatpush.bf16.xpose.msra.mxu0 0
        %1369 = vmatpush.bf16.xpose.msra.mxu0 0
        %1370 = vmatpush.bf16.xpose.msra.mxu0 %v1361
        %1371 = vmatmul.bf16.gmra.mxu0 %v1358
        %v1372 = vpop.f32.mrf.mxu0
        %v1373 = vadd.f32 0.0, %v1372
        %v1374 = vpop.f32.mrf.mxu0
        %1375 = vdwg.mxu0
        %v1376 = vsel %vm1356, %v1373, -inf
        %1377 = vmax.xlane.f32.xlu0 %v1376
        %v1378 = vpop.xlane.xlu0 %1377
        %v1379 = vsub.f32 %v1373, %v1378
        %v1380 = vmul.f32 %v1379, 1.442695
        %v1381 = vpow.pop %v1380
        %v1382 = vsel %vm1356, %v1381, 0.0
        %1383 = vadd.xlane.f32.xlu0 %v1382
        %v1384 = vpop.xlane.xlu0 %1383
        %v1385 = vrcp.pop %v1384
        %v1386 = vmul.f32 %v1381, %v1385
        %v1387 = vpack.c.bf16 %v1386, %v1386
        %v1389 = vsel %vm1356, %v1387, 0
        %vm1391 = vcmask 1043456
        %v1393 = vsel %vm1391, %v1354, 0
        %1395 = vmatpush.bf16.msra.mxu0 0
        %1396 = vmatpush.bf16.msra.mxu0 0
        %1397 = vmatpush.bf16.msra.mxu0 0
        %1398 = vmatpush.bf16.msra.mxu0 0
        %1399 = vmatpush.bf16.msra.mxu0 0
        %1400 = vmatpush.bf16.msra.mxu0 0
        %1401 = vmatpush.bf16.msra.mxu0 0
        %1402 = vmatpush.bf16.msra.mxu0 %v1393
        %1403 = vmatmul.bf16.gmra.mxu0 %v1389
        %v1404 = vpop.f32.mrf.mxu0
        %v1405 = vadd.f32 0.0, %v1404
        %v1406 = vpop.f32.mrf.mxu0
        %1407 = vdwg.mxu0
        %v1409 = vsel %vm1356, %v1351, 0
        %v1412 = vsel %vm1356, %v1353, 0
        %1414 = vmatpush.bf16.xpose.msra.mxu0 0
        %1415 = vmatpush.bf16.xpose.msra.mxu0 0
        %1416 = vmatpush.bf16.xpose.msra.mxu0 0
        %1417 = vmatpush.bf16.xpose.msra.mxu0 0
        %1418 = vmatpush.bf16.xpose.msra.mxu0 0
        %1419 = vmatpush.bf16.xpose.msra.mxu0 0
        %1420 = vmatpush.bf16.xpose.msra.mxu0 0
        %1421 = vmatpush.bf16.xpose.msra.mxu0 %v1412
        %1422 = vmatmul.bf16.gmra.mxu0 %v1409
        %v1423 = vpop.f32.mrf.mxu0
        %v1424 = vadd.f32 0.0, %v1423
        %v1425 = vpop.f32.mrf.mxu0
        %1426 = vdwg.mxu0
        %v1427 = vsel %vm1356, %v1424, -inf
        %1428 = vmax.xlane.f32.xlu0 %v1427
        %v1429 = vpop.xlane.xlu0 %1428
        %v1430 = vsub.f32 %v1424, %v1429
        %v1431 = vmul.f32 %v1430, 1.442695
        %v1432 = vpow.pop %v1431
        %v1433 = vsel %vm1356, %v1432, 0.0
        %1434 = vadd.xlane.f32.xlu0 %v1433
        %v1435 = vpop.xlane.xlu0 %1434
        %v1436 = vrcp.pop %v1435
        %v1437 = vmul.f32 %v1432, %v1436
        %v1438 = vpack.c.bf16 %v1437, %v1437
        %v1440 = vsel %vm1356, %v1438, 0
        %v1443 = vsel %vm1391, %v1355, 0
        %1445 = vmatpush.bf16.msra.mxu0 0
        %1446 = vmatpush.bf16.msra.mxu0 0
        %1447 = vmatpush.bf16.msra.mxu0 0
        %1448 = vmatpush.bf16.msra.mxu0 0
        %1449 = vmatpush.bf16.msra.mxu0 0
        %1450 = vmatpush.bf16.msra.mxu0 0
        %1451 = vmatpush.bf16.msra.mxu0 0
        %1452 = vmatpush.bf16.msra.mxu0 %v1443
        %1453 = vmatmul.bf16.gmra.mxu0 %v1440
        %v1454 = vpop.f32.mrf.mxu0
        %v1455 = vadd.f32 0.0, %v1454
        %v1456 = vpop.f32.mrf.mxu0
        %1457 = vdwg.mxu0
        %v1458 = vpack.c.bf16 %v1455, %v1405
        %v1460 = vperm.slane %v1212, 0
        %v1466 = vunpack.c.l.b16 %v1199
        %v1467 = vunpack.c.l.b16 %v1200
        %v1468 = vunpack.c.l.b16 %v1201
        %v1469 = vunpack.c.l.b16 %v1202
        %v1470 = vpack.c.b16 %v1467, %v1466
        %v1471 = vpack.c.b16 %v1469, %v1468
        %1474 = vmatpush.bf16.msra.mxu0 0
        %1475 = vmatpush.bf16.msra.mxu0 0
        %1476 = vmatpush.bf16.msra.mxu0 0
        %1477 = vmatpush.bf16.msra.mxu0 0
        %1478 = vmatpush.bf16.msra.mxu0 0
        %1479 = vmatpush.bf16.msra.mxu0 0
        %1480 = vmatpush.bf16.msra.mxu0 %v1471
        %1481 = vmatpush.bf16.msra.mxu0 %v1470
        %1482 = vmatmul.bf16.gmra.mxu0 %v1276
        %v1483 = vpop.f32.mrf.mxu0
        %v1484 = vadd.f32 %v1460, %v1483
        %v1485 = vpop.f32.mrf.mxu0
        %v1486 = vadd.f32 %v1460, %v1485
        %1487 = vdwg.mxu0
        %v1489 = vperm.slane %v1232, 0
        %v1495 = vunpack.c.l.b16 %v1219
        %v1496 = vunpack.c.l.b16 %v1220
        %v1497 = vunpack.c.l.b16 %v1221
        %v1498 = vunpack.c.l.b16 %v1222
        %v1499 = vpack.c.b16 %v1496, %v1495
        %v1500 = vpack.c.b16 %v1498, %v1497
        %1503 = vmatpush.bf16.msra.mxu0 0
        %1504 = vmatpush.bf16.msra.mxu0 0
        %1505 = vmatpush.bf16.msra.mxu0 0
        %1506 = vmatpush.bf16.msra.mxu0 0
        %1507 = vmatpush.bf16.msra.mxu0 0
        %1508 = vmatpush.bf16.msra.mxu0 0
        %1509 = vmatpush.bf16.msra.mxu0 %v1500
        %1510 = vmatpush.bf16.msra.mxu0 %v1499
        %1511 = vmatmul.bf16.gmra.mxu0 %v1276
        %v1512 = vpop.f32.mrf.mxu0
        %v1513 = vadd.f32 %v1489, %v1512
        %v1514 = vpop.f32.mrf.mxu0
        %v1515 = vadd.f32 %v1489, %v1514
        %1516 = vdwg.mxu0
        %v1518 = vperm.slane %v1252, 0
        %v1524 = vunpack.c.l.b16 %v1239
        %v1525 = vunpack.c.l.b16 %v1240
        %v1526 = vunpack.c.l.b16 %v1241
        %v1527 = vunpack.c.l.b16 %v1242
        %v1528 = vpack.c.b16 %v1525, %v1524
        %v1529 = vpack.c.b16 %v1527, %v1526
        %1532 = vmatpush.bf16.msra.mxu0 0
        %1533 = vmatpush.bf16.msra.mxu0 0
        %1534 = vmatpush.bf16.msra.mxu0 0
        %1535 = vmatpush.bf16.msra.mxu0 0
        %1536 = vmatpush.bf16.msra.mxu0 0
        %1537 = vmatpush.bf16.msra.mxu0 0
        %1538 = vmatpush.bf16.msra.mxu0 %v1529
        %1539 = vmatpush.bf16.msra.mxu0 %v1528
        %1540 = vmatmul.bf16.gmra.mxu0 %v1276
        %v1541 = vpop.f32.mrf.mxu0
        %v1542 = vadd.f32 %v1518, %v1541
        %v1543 = vpop.f32.mrf.mxu0
        %v1544 = vadd.f32 %v1518, %v1543
        %1545 = vdwg.mxu0
        %v1546 = vpack.c.bf16 %v1484, %v1484
        %v1547 = vpack.c.bf16 %v1486, %v1486
        %v1548 = vpack.c.bf16 %v1513, %v1513
        %v1549 = vpack.c.bf16 %v1515, %v1515
        %v1550 = vpack.c.bf16 %v1542, %v1542
        %v1551 = vpack.c.bf16 %v1544, %v1544
        %v1553 = vsel %vm1356, %v1546, 0
        %v1556 = vsel %vm1356, %v1548, 0
        %1558 = vmatpush.bf16.xpose.msra.mxu0 0
        %1559 = vmatpush.bf16.xpose.msra.mxu0 0
        %1560 = vmatpush.bf16.xpose.msra.mxu0 0
        %1561 = vmatpush.bf16.xpose.msra.mxu0 0
        %1562 = vmatpush.bf16.xpose.msra.mxu0 0
        %1563 = vmatpush.bf16.xpose.msra.mxu0 0
        %1564 = vmatpush.bf16.xpose.msra.mxu0 0
        %1565 = vmatpush.bf16.xpose.msra.mxu0 %v1556
        %1566 = vmatmul.bf16.gmra.mxu0 %v1553
        %v1567 = vpop.f32.mrf.mxu0
        %v1568 = vadd.f32 0.0, %v1567
        %v1569 = vpop.f32.mrf.mxu0
        %1570 = vdwg.mxu0
        %v1571 = vsel %vm1356, %v1568, -inf
        %1572 = vmax.xlane.f32.xlu0 %v1571
        %v1573 = vpop.xlane.xlu0 %1572
        %v1574 = vsub.f32 %v1568, %v1573
        %v1575 = vmul.f32 %v1574, 1.442695
        %v1576 = vpow.pop %v1575
        %v1577 = vsel %vm1356, %v1576, 0.0
        %1578 = vadd.xlane.f32.xlu0 %v1577
        %v1579 = vpop.xlane.xlu0 %1578
        %v1580 = vrcp.pop %v1579
        %v1581 = vmul.f32 %v1576, %v1580
        %v1582 = vpack.c.bf16 %v1581, %v1581
        %v1584 = vsel %vm1356, %v1582, 0
        %v1587 = vsel %vm1391, %v1550, 0
        %1589 = vmatpush.bf16.msra.mxu0 0
        %1590 = vmatpush.bf16.msra.mxu0 0
        %1591 = vmatpush.bf16.msra.mxu0 0
        %1592 = vmatpush.bf16.msra.mxu0 0
        %1593 = vmatpush.bf16.msra.mxu0 0
        %1594 = vmatpush.bf16.msra.mxu0 0
        %1595 = vmatpush.bf16.msra.mxu0 0
        %1596 = vmatpush.bf16.msra.mxu0 %v1587
        %1597 = vmatmul.bf16.gmra.mxu0 %v1584
        %v1598 = vpop.f32.mrf.mxu0
        %v1599 = vadd.f32 0.0, %v1598
        %v1600 = vpop.f32.mrf.mxu0
        %1601 = vdwg.mxu0
        %v1603 = vsel %vm1356, %v1547, 0
        %v1606 = vsel %vm1356, %v1549, 0
        %1608 = vmatpush.bf16.xpose.msra.mxu0 0
        %1609 = vmatpush.bf16.xpose.msra.mxu0 0
        %1610 = vmatpush.bf16.xpose.msra.mxu0 0
        %1611 = vmatpush.bf16.xpose.msra.mxu0 0
        %1612 = vmatpush.bf16.xpose.msra.mxu0 0
        %1613 = vmatpush.bf16.xpose.msra.mxu0 0
        %1614 = vmatpush.bf16.xpose.msra.mxu0 0
        %1615 = vmatpush.bf16.xpose.msra.mxu0 %v1606
        %1616 = vmatmul.bf16.gmra.mxu0 %v1603
        %v1617 = vpop.f32.mrf.mxu0
        %v1618 = vadd.f32 0.0, %v1617
        %v1619 = vpop.f32.mrf.mxu0
        %1620 = vdwg.mxu0
        %v1621 = vsel %vm1356, %v1618, -inf
        %1622 = vmax.xlane.f32.xlu0 %v1621
        %v1623 = vpop.xlane.xlu0 %1622
        %v1624 = vsub.f32 %v1618, %v1623
        %v1625 = vmul.f32 %v1624, 1.442695
        %v1626 = vpow.pop %v1625
        %v1627 = vsel %vm1356, %v1626, 0.0
        %1628 = vadd.xlane.f32.xlu0 %v1627
        %v1629 = vpop.xlane.xlu0 %1628
        %v1630 = vrcp.pop %v1629
        %v1631 = vmul.f32 %v1626, %v1630
        %v1632 = vpack.c.bf16 %v1631, %v1631
        %v1634 = vsel %vm1356, %v1632, 0
        %v1637 = vsel %vm1391, %v1551, 0
        %1639 = vmatpush.bf16.msra.mxu0 0
        %1640 = vmatpush.bf16.msra.mxu0 0
        %1641 = vmatpush.bf16.msra.mxu0 0
        %1642 = vmatpush.bf16.msra.mxu0 0
        %1643 = vmatpush.bf16.msra.mxu0 0
        %1644 = vmatpush.bf16.msra.mxu0 0
        %1645 = vmatpush.bf16.msra.mxu0 0
        %1646 = vmatpush.bf16.msra.mxu0 %v1637
        %1647 = vmatmul.bf16.gmra.mxu0 %v1634
        %v1648 = vpop.f32.mrf.mxu0
        %v1649 = vadd.f32 0.0, %v1648
        %v1650 = vpop.f32.mrf.mxu0
        %1651 = vdwg.mxu0
        %v1652 = vpack.c.bf16 %v1649, %v1599
        %v1654 = vsel %vm1356, %v1652, 0
        %v1657 = vsel %vm1391, %v1256, 0
        %1659 = vmatpush.bf16.msra.mxu0 0
        %1660 = vmatpush.bf16.msra.mxu0 0
        %1661 = vmatpush.bf16.msra.mxu0 0
        %1662 = vmatpush.bf16.msra.mxu0 0
        %1663 = vmatpush.bf16.msra.mxu0 0
        %1664 = vmatpush.bf16.msra.mxu0 0
        %1665 = vmatpush.bf16.msra.mxu0 0
        %1666 = vmatpush.bf16.msra.mxu0 %v1657
        %1667 = vmatmul.bf16.gmra.mxu0 %v1654
        %v1668 = vpop.f32.mrf.mxu0
        %v1669 = vadd.f32 0.0, %v1668
        %v1670 = vpop.f32.mrf.mxu0
        %v1671 = vadd.f32 0.0, %v1670
        %1672 = vdwg.mxu0
        %v1674 = vsel %vm1356, %v1458, 0
        %v1677 = vsel %vm1391, %v1255, 0
        %1679 = vmatpush.bf16.msra.mxu0 0
        %1680 = vmatpush.bf16.msra.mxu0 0
        %1681 = vmatpush.bf16.msra.mxu0 0
        %1682 = vmatpush.bf16.msra.mxu0 0
        %1683 = vmatpush.bf16.msra.mxu0 0
        %1684 = vmatpush.bf16.msra.mxu0 0
        %1685 = vmatpush.bf16.msra.mxu0 0
        %1686 = vmatpush.bf16.msra.mxu0 %v1677
        %1687 = vmatmul.bf16.gmra.mxu0 %v1674
        %v1688 = vpop.f32.mrf.mxu0
        %v1689 = vadd.f32 %v1669, %v1688
        %v1690 = vpop.f32.mrf.mxu0
        %v1691 = vadd.f32 %v1671, %v1690
        %1692 = vdwg.mxu0
        %v1694 = vperm.slane %v1213, 0
        %v1700 = vunpack.c.l.b16 %v1203
        %v1701 = vunpack.c.l.b16 %v1204
        %v1702 = vunpack.c.l.b16 %v1205
        %v1703 = vunpack.c.l.b16 %v1206
        %v1704 = vpack.c.b16 %v1701, %v1700
        %v1705 = vpack.c.b16 %v1703, %v1702
        %1708 = vmatpush.bf16.msra.mxu0 0
        %1709 = vmatpush.bf16.msra.mxu0 0
        %1710 = vmatpush.bf16.msra.mxu0 0
        %1711 = vmatpush.bf16.msra.mxu0 0
        %1712 = vmatpush.bf16.msra.mxu0 0
        %1713 = vmatpush.bf16.msra.mxu0 0
        %1714 = vmatpush.bf16.msra.mxu0 %v1705
        %1715 = vmatpush.bf16.msra.mxu0 %v1704
        %1716 = vmatmul.bf16.gmra.mxu0 %v1276
        %v1717 = vpop.f32.mrf.mxu0
        %v1718 = vadd.f32 %v1694, %v1717
        %v1719 = vpop.f32.mrf.mxu0
        %v1720 = vadd.f32 %v1694, %v1719
        %1721 = vdwg.mxu0
        %v1723 = vperm.slane %v1233, 0
        %v1729 = vunpack.c.l.b16 %v1223
        %v1730 = vunpack.c.l.b16 %v1224
        %v1731 = vunpack.c.l.b16 %v1225
        %v1732 = vunpack.c.l.b16 %v1226
        %v1733 = vpack.c.b16 %v1730, %v1729
        %v1734 = vpack.c.b16 %v1732, %v1731
        %1737 = vmatpush.bf16.msra.mxu0 0
        %1738 = vmatpush.bf16.msra.mxu0 0
        %1739 = vmatpush.bf16.msra.mxu0 0
        %1740 = vmatpush.bf16.msra.mxu0 0
        %1741 = vmatpush.bf16.msra.mxu0 0
        %1742 = vmatpush.bf16.msra.mxu0 0
        %1743 = vmatpush.bf16.msra.mxu0 %v1734
        %1744 = vmatpush.bf16.msra.mxu0 %v1733
        %1745 = vmatmul.bf16.gmra.mxu0 %v1276
        %v1746 = vpop.f32.mrf.mxu0
        %v1747 = vadd.f32 %v1723, %v1746
        %v1748 = vpop.f32.mrf.mxu0
        %v1749 = vadd.f32 %v1723, %v1748
        %1750 = vdwg.mxu0
        %v1752 = vperm.slane %v1253, 0
        %v1758 = vunpack.c.l.b16 %v1243
        %v1759 = vunpack.c.l.b16 %v1244
        %v1760 = vunpack.c.l.b16 %v1245
        %v1761 = vunpack.c.l.b16 %v1246
        %v1762 = vpack.c.b16 %v1759, %v1758
        %v1763 = vpack.c.b16 %v1761, %v1760
        %1766 = vmatpush.bf16.msra.mxu0 0
        %1767 = vmatpush.bf16.msra.mxu0 0
        %1768 = vmatpush.bf16.msra.mxu0 0
        %1769 = vmatpush.bf16.msra.mxu0 0
        %1770 = vmatpush.bf16.msra.mxu0 0
        %1771 = vmatpush.bf16.msra.mxu0 0
        %1772 = vmatpush.bf16.msra.mxu0 %v1763
        %1773 = vmatpush.bf16.msra.mxu0 %v1762
        %1774 = vmatmul.bf16.gmra.mxu0 %v1276
        %v1775 = vpop.f32.mrf.mxu0
        %v1776 = vadd.f32 %v1752, %v1775
        %v1777 = vpop.f32.mrf.mxu0
        %v1778 = vadd.f32 %v1752, %v1777
        %1779 = vdwg.mxu0
        %v1780 = vpack.c.bf16 %v1718, %v1718
        %v1781 = vpack.c.bf16 %v1720, %v1720
        %v1782 = vpack.c.bf16 %v1747, %v1747
        %v1783 = vpack.c.bf16 %v1749, %v1749
        %v1784 = vpack.c.bf16 %v1776, %v1776
        %v1785 = vpack.c.bf16 %v1778, %v1778
        %v1787 = vsel %vm1356, %v1780, 0
        %v1790 = vsel %vm1356, %v1782, 0
        %1792 = vmatpush.bf16.xpose.msra.mxu0 0
        %1793 = vmatpush.bf16.xpose.msra.mxu0 0
        %1794 = vmatpush.bf16.xpose.msra.mxu0 0
        %1795 = vmatpush.bf16.xpose.msra.mxu0 0
        %1796 = vmatpush.bf16.xpose.msra.mxu0 0
        %1797 = vmatpush.bf16.xpose.msra.mxu0 0
        %1798 = vmatpush.bf16.xpose.msra.mxu0 0
        %1799 = vmatpush.bf16.xpose.msra.mxu0 %v1790
        %1800 = vmatmul.bf16.gmra.mxu0 %v1787
        %v1801 = vpop.f32.mrf.mxu0
        %v1802 = vadd.f32 0.0, %v1801
        %v1803 = vpop.f32.mrf.mxu0
        %1804 = vdwg.mxu0
        %v1805 = vsel %vm1356, %v1802, -inf
        %1806 = vmax.xlane.f32.xlu0 %v1805
        %v1807 = vpop.xlane.xlu0 %1806
        %v1808 = vsub.f32 %v1802, %v1807
        %v1809 = vmul.f32 %v1808, 1.442695
        %v1810 = vpow.pop %v1809
        %v1811 = vsel %vm1356, %v1810, 0.0
        %1812 = vadd.xlane.f32.xlu0 %v1811
        %v1813 = vpop.xlane.xlu0 %1812
        %v1814 = vrcp.pop %v1813
        %v1815 = vmul.f32 %v1810, %v1814
        %v1816 = vpack.c.bf16 %v1815, %v1815
        %v1818 = vsel %vm1356, %v1816, 0
        %v1821 = vsel %vm1391, %v1784, 0
        %1823 = vmatpush.bf16.msra.mxu0 0
        %1824 = vmatpush.bf16.msra.mxu0 0
        %1825 = vmatpush.bf16.msra.mxu0 0
        %1826 = vmatpush.bf16.msra.mxu0 0
        %1827 = vmatpush.bf16.msra.mxu0 0
        %1828 = vmatpush.bf16.msra.mxu0 0
        %1829 = vmatpush.bf16.msra.mxu0 0
        %1830 = vmatpush.bf16.msra.mxu0 %v1821
        %1831 = vmatmul.bf16.gmra.mxu0 %v1818
        %v1832 = vpop.f32.mrf.mxu0
        %v1833 = vadd.f32 0.0, %v1832
        %v1834 = vpop.f32.mrf.mxu0
        %1835 = vdwg.mxu0
        %v1837 = vsel %vm1356, %v1781, 0
        %v1840 = vsel %vm1356, %v1783, 0
        %1842 = vmatpush.bf16.xpose.msra.mxu0 0
        %1843 = vmatpush.bf16.xpose.msra.mxu0 0
        %1844 = vmatpush.bf16.xpose.msra.mxu0 0
        %1845 = vmatpush.bf16.xpose.msra.mxu0 0
        %1846 = vmatpush.bf16.xpose.msra.mxu0 0
        %1847 = vmatpush.bf16.xpose.msra.mxu0 0
        %1848 = vmatpush.bf16.xpose.msra.mxu0 0
        %1849 = vmatpush.bf16.xpose.msra.mxu0 %v1840
        %1850 = vmatmul.bf16.gmra.mxu0 %v1837
        %v1851 = vpop.f32.mrf.mxu0
        %v1852 = vadd.f32 0.0, %v1851
        %v1853 = vpop.f32.mrf.mxu0
        %1854 = vdwg.mxu0
        %v1855 = vsel %vm1356, %v1852, -inf
        %1856 = vmax.xlane.f32.xlu0 %v1855
        %v1857 = vpop.xlane.xlu0 %1856
        %v1858 = vsub.f32 %v1852, %v1857
        %v1859 = vmul.f32 %v1858, 1.442695
        %v1860 = vpow.pop %v1859
        %v1861 = vsel %vm1356, %v1860, 0.0
        %1862 = vadd.xlane.f32.xlu0 %v1861
        %v1863 = vpop.xlane.xlu0 %1862
        %v1864 = vrcp.pop %v1863
        %v1865 = vmul.f32 %v1860, %v1864
        %v1866 = vpack.c.bf16 %v1865, %v1865
        %v1868 = vsel %vm1356, %v1866, 0
        %v1871 = vsel %vm1391, %v1785, 0
        %1873 = vmatpush.bf16.msra.mxu0 0
        %1874 = vmatpush.bf16.msra.mxu0 0
        %1875 = vmatpush.bf16.msra.mxu0 0
        %1876 = vmatpush.bf16.msra.mxu0 0
        %1877 = vmatpush.bf16.msra.mxu0 0
        %1878 = vmatpush.bf16.msra.mxu0 0
        %1879 = vmatpush.bf16.msra.mxu0 0
        %1880 = vmatpush.bf16.msra.mxu0 %v1871
        %1881 = vmatmul.bf16.gmra.mxu0 %v1868
        %v1882 = vpop.f32.mrf.mxu0
        %v1883 = vadd.f32 0.0, %v1882
        %v1884 = vpop.f32.mrf.mxu0
        %1885 = vdwg.mxu0
        %v1886 = vpack.c.bf16 %v1883, %v1833
        %v1888 = vsel %vm1356, %v1886, 0
        %v1891 = vsel %vm1391, %v1257, 0
        %1893 = vmatpush.bf16.msra.mxu0 0
        %1894 = vmatpush.bf16.msra.mxu0 0
        %1895 = vmatpush.bf16.msra.mxu0 0
        %1896 = vmatpush.bf16.msra.mxu0 0
        %1897 = vmatpush.bf16.msra.mxu0 0
        %1898 = vmatpush.bf16.msra.mxu0 0
        %1899 = vmatpush.bf16.msra.mxu0 0
        %1900 = vmatpush.bf16.msra.mxu0 %v1891
        %1901 = vmatmul.bf16.gmra.mxu0 %v1888
        %v1902 = vpop.f32.mrf.mxu0
        %v1903 = vadd.f32 0.0, %v1902
        %v1904 = vpop.f32.mrf.mxu0
        %v1905 = vadd.f32 0.0, %v1904
        %1906 = vdwg.mxu0
        %v1907 = vadd.f32 %v1689, %v1903
        %v1908 = vadd.f32 %v1691, %v1905
        %v1910 = vperm.slane %v1214, 0
        %v1916 = vunpack.c.l.b16 %v1207
        %v1917 = vunpack.c.l.b16 %v1208
        %v1918 = vunpack.c.l.b16 %v1209
        %v1919 = vunpack.c.l.b16 %v1210
        %v1920 = vpack.c.b16 %v1917, %v1916
        %v1921 = vpack.c.b16 %v1919, %v1918
        %1924 = vmatpush.bf16.msra.mxu0 0
        %1925 = vmatpush.bf16.msra.mxu0 0
        %1926 = vmatpush.bf16.msra.mxu0 0
        %1927 = vmatpush.bf16.msra.mxu0 0
        %1928 = vmatpush.bf16.msra.mxu0 0
        %1929 = vmatpush.bf16.msra.mxu0 0
        %1930 = vmatpush.bf16.msra.mxu0 %v1921
        %1931 = vmatpush.bf16.msra.mxu0 %v1920
        %1932 = vmatmul.bf16.gmra.mxu0 %v1276
        %v1933 = vpop.f32.mrf.mxu0
        %v1934 = vadd.f32 %v1910, %v1933
        %v1935 = vpop.f32.mrf.mxu0
        %v1936 = vadd.f32 %v1910, %v1935
        %1937 = vdwg.mxu0
        %v1939 = vperm.slane %v1234, 0
        %v1945 = vunpack.c.l.b16 %v1227
        %v1946 = vunpack.c.l.b16 %v1228
        %v1947 = vunpack.c.l.b16 %v1229
        %v1948 = vunpack.c.l.b16 %v1230
        %v1949 = vpack.c.b16 %v1946, %v1945
        %v1950 = vpack.c.b16 %v1948, %v1947
        %1953 = vmatpush.bf16.msra.mxu0 0
        %1954 = vmatpush.bf16.msra.mxu0 0
        %1955 = vmatpush.bf16.msra.mxu0 0
        %1956 = vmatpush.bf16.msra.mxu0 0
        %1957 = vmatpush.bf16.msra.mxu0 0
        %1958 = vmatpush.bf16.msra.mxu0 0
        %1959 = vmatpush.bf16.msra.mxu0 %v1950
        %1960 = vmatpush.bf16.msra.mxu0 %v1949
        %1961 = vmatmul.bf16.gmra.mxu0 %v1276
        %v1962 = vpop.f32.mrf.mxu0
        %v1963 = vadd.f32 %v1939, %v1962
        %v1964 = vpop.f32.mrf.mxu0
        %v1965 = vadd.f32 %v1939, %v1964
        %1966 = vdwg.mxu0
        %v1968 = vperm.slane %v1254, 0
        %v1974 = vunpack.c.l.b16 %v1247
        %v1975 = vunpack.c.l.b16 %v1248
        %v1976 = vunpack.c.l.b16 %v1249
        %v1977 = vunpack.c.l.b16 %v1250
        %v1978 = vpack.c.b16 %v1975, %v1974
        %v1979 = vpack.c.b16 %v1977, %v1976
        %1982 = vmatpush.bf16.msra.mxu0 0
        %1983 = vmatpush.bf16.msra.mxu0 0
        %1984 = vmatpush.bf16.msra.mxu0 0
        %1985 = vmatpush.bf16.msra.mxu0 0
        %1986 = vmatpush.bf16.msra.mxu0 0
        %1987 = vmatpush.bf16.msra.mxu0 0
        %1988 = vmatpush.bf16.msra.mxu0 %v1979
        %1989 = vmatpush.bf16.msra.mxu0 %v1978
        %1990 = vmatmul.bf16.gmra.mxu0 %v1276
        %v1991 = vpop.f32.mrf.mxu0
        %v1992 = vadd.f32 %v1968, %v1991
        %v1993 = vpop.f32.mrf.mxu0
        %v1994 = vadd.f32 %v1968, %v1993
        %1995 = vdwg.mxu0
        %v1996 = vpack.c.bf16 %v1934, %v1934
        %v1997 = vpack.c.bf16 %v1936, %v1936
        %v1998 = vpack.c.bf16 %v1963, %v1963
        %v1999 = vpack.c.bf16 %v1965, %v1965
        %v2000 = vpack.c.bf16 %v1992, %v1992
        %v2001 = vpack.c.bf16 %v1994, %v1994
        %v2003 = vsel %vm1356, %v1996, 0
        %v2006 = vsel %vm1356, %v1998, 0
        %2008 = vmatpush.bf16.xpose.msra.mxu0 0
        %2009 = vmatpush.bf16.xpose.msra.mxu0 0
        %2010 = vmatpush.bf16.xpose.msra.mxu0 0
        %2011 = vmatpush.bf16.xpose.msra.mxu0 0
        %2012 = vmatpush.bf16.xpose.msra.mxu0 0
        %2013 = vmatpush.bf16.xpose.msra.mxu0 0
        %2014 = vmatpush.bf16.xpose.msra.mxu0 0
        %2015 = vmatpush.bf16.xpose.msra.mxu0 %v2006
        %2016 = vmatmul.bf16.gmra.mxu0 %v2003
        %v2017 = vpop.f32.mrf.mxu0
        %v2018 = vadd.f32 0.0, %v2017
        %v2019 = vpop.f32.mrf.mxu0
        %2020 = vdwg.mxu0
        %v2021 = vsel %vm1356, %v2018, -inf
        %2022 = vmax.xlane.f32.xlu0 %v2021
        %v2023 = vpop.xlane.xlu0 %2022
        %v2024 = vsub.f32 %v2018, %v2023
        %v2025 = vmul.f32 %v2024, 1.442695
        %v2026 = vpow.pop %v2025
        %v2027 = vsel %vm1356, %v2026, 0.0
        %2028 = vadd.xlane.f32.xlu0 %v2027
        %v2029 = vpop.xlane.xlu0 %2028
        %v2030 = vrcp.pop %v2029
        %v2031 = vmul.f32 %v2026, %v2030
        %v2032 = vpack.c.bf16 %v2031, %v2031
        %v2034 = vsel %vm1356, %v2032, 0
        %v2037 = vsel %vm1391, %v2000, 0
        %2039 = vmatpush.bf16.msra.mxu0 0
        %2040 = vmatpush.bf16.msra.mxu0 0
        %2041 = vmatpush.bf16.msra.mxu0 0
        %2042 = vmatpush.bf16.msra.mxu0 0
        %2043 = vmatpush.bf16.msra.mxu0 0
        %2044 = vmatpush.bf16.msra.mxu0 0
        %2045 = vmatpush.bf16.msra.mxu0 0
        %2046 = vmatpush.bf16.msra.mxu0 %v2037
        %2047 = vmatmul.bf16.gmra.mxu0 %v2034
        %v2048 = vpop.f32.mrf.mxu0
        %v2049 = vadd.f32 0.0, %v2048
        %v2050 = vpop.f32.mrf.mxu0
        %2051 = vdwg.mxu0
        %v2053 = vsel %vm1356, %v1997, 0
        %v2056 = vsel %vm1356, %v1999, 0
        %2058 = vmatpush.bf16.xpose.msra.mxu0 0
        %2059 = vmatpush.bf16.xpose.msra.mxu0 0
        %2060 = vmatpush.bf16.xpose.msra.mxu0 0
        %2061 = vmatpush.bf16.xpose.msra.mxu0 0
        %2062 = vmatpush.bf16.xpose.msra.mxu0 0
        %2063 = vmatpush.bf16.xpose.msra.mxu0 0
        %2064 = vmatpush.bf16.xpose.msra.mxu0 0
        %2065 = vmatpush.bf16.xpose.msra.mxu0 %v2056
        %2066 = vmatmul.bf16.gmra.mxu0 %v2053
        %v2067 = vpop.f32.mrf.mxu0
        %v2068 = vadd.f32 0.0, %v2067
        %v2069 = vpop.f32.mrf.mxu0
        %2070 = vdwg.mxu0
        %v2071 = vsel %vm1356, %v2068, -inf
        %2072 = vmax.xlane.f32.xlu0 %v2071
        %v2073 = vpop.xlane.xlu0 %2072
        %v2074 = vsub.f32 %v2068, %v2073
        %v2075 = vmul.f32 %v2074, 1.442695
        %v2076 = vpow.pop %v2075
        %v2077 = vsel %vm1356, %v2076, 0.0
        %2078 = vadd.xlane.f32.xlu0 %v2077
        %v2079 = vpop.xlane.xlu0 %2078
        %v2080 = vrcp.pop %v2079
        %v2081 = vmul.f32 %v2076, %v2080
        %v2082 = vpack.c.bf16 %v2081, %v2081
        %v2084 = vsel %vm1356, %v2082, 0
        %v2087 = vsel %vm1391, %v2001, 0
        %2089 = vmatpush.bf16.msra.mxu0 0
        %2090 = vmatpush.bf16.msra.mxu0 0
        %2091 = vmatpush.bf16.msra.mxu0 0
        %2092 = vmatpush.bf16.msra.mxu0 0
        %2093 = vmatpush.bf16.msra.mxu0 0
        %2094 = vmatpush.bf16.msra.mxu0 0
        %2095 = vmatpush.bf16.msra.mxu0 0
        %2096 = vmatpush.bf16.msra.mxu0 %v2087
        %2097 = vmatmul.bf16.gmra.mxu0 %v2084
        %v2098 = vpop.f32.mrf.mxu0
        %v2099 = vadd.f32 0.0, %v2098
        %v2100 = vpop.f32.mrf.mxu0
        %2101 = vdwg.mxu0
        %v2102 = vpack.c.bf16 %v2099, %v2049
        %v2104 = vsel %vm1356, %v2102, 0
        %v2107 = vsel %vm1391, %v1258, 0
        %2109 = vmatpush.bf16.msra.mxu0 0
        %2110 = vmatpush.bf16.msra.mxu0 0
        %2111 = vmatpush.bf16.msra.mxu0 0
        %2112 = vmatpush.bf16.msra.mxu0 0
        %2113 = vmatpush.bf16.msra.mxu0 0
        %2114 = vmatpush.bf16.msra.mxu0 0
        %2115 = vmatpush.bf16.msra.mxu0 0
        %2116 = vmatpush.bf16.msra.mxu0 %v2107
        %2117 = vmatmul.bf16.gmra.mxu0 %v2104
        %v2118 = vpop.f32.mrf.mxu0
        %v2119 = vadd.f32 0.0, %v2118
        %v2120 = vpop.f32.mrf.mxu0
        %v2121 = vadd.f32 0.0, %v2120
        %2122 = vdwg.mxu0
        %v2123 = vadd.f32 %v1907, %v2119
        %v2124 = vadd.f32 %v1908, %v2121
        %v2125 = vld [vmem:[%s1039] sm:$0x1]
        %v2127 = vperm.slane %v2125, 0
        %v2129 = vadd.f32 %v2123, %v2127
        %v2130 = vadd.f32 %v2124, %v2127
        %v2131 = vadd.f32 %v2129, %v1192
        %v2132 = vadd.f32 %v2130, %v1193
        %v2133 = vld [vmem:[%s1058] sm:$0x1]
        %v2135 = vperm.slane %v2133, 0
        %v2137 = vmul.f32 %v2131, %v2135
        %v2138 = vmul.f32 %v2132, %v2135
        %v2139 = vld [vmem:[%s1061] sm:$0x1]
        %v2141 = vperm.slane %v2139, 0
        %v2143 = vadd.f32 %v2137, %v2141
        %v2144 = vadd.f32 %v2138, %v2141
        %v2145 = vld [vmem:[%s1044] sm:$0xf]
        %v2146 = vld [vmem:[%s1044 + $0x4] sm:$0xf]
        %v2147 = vld [vmem:[%s1044 + $0x8] sm:$0xf]
        %v2148 = vld [vmem:[%s1044 + $0xc] sm:$0xf]
        %v2149 = vpack.c.bf16 %v2144, %v2143
        %v2150 = vld [vmem:[%s1047] sm:$0x1]
        %v2152 = vperm.slane %v2150, 0
        %v2158 = vunpack.c.l.b16 %v2145
        %v2159 = vunpack.c.l.b16 %v2146
        %v2160 = vunpack.c.l.b16 %v2147
        %v2161 = vunpack.c.l.b16 %v2148
        %v2162 = vpack.c.b16 %v2159, %v2158
        %v2163 = vpack.c.b16 %v2161, %v2160
        %v2167 = vsel %vm1274, %v2149, 0
        %2169 = vmatpush.bf16.msra.mxu0 0
        %2170 = vmatpush.bf16.msra.mxu0 0
        %2171 = vmatpush.bf16.msra.mxu0 0
        %2172 = vmatpush.bf16.msra.mxu0 0
        %2173 = vmatpush.bf16.msra.mxu0 0
        %2174 = vmatpush.bf16.msra.mxu0 0
        %2175 = vmatpush.bf16.msra.mxu0 %v2163
        %2176 = vmatpush.bf16.msra.mxu0 %v2162
        %2177 = vmatmul.bf16.gmra.mxu0 %v2167
        %v2178 = vpop.f32.mrf.mxu0
        %v2179 = vadd.f32 %v2152, %v2178
        %v2180 = vpop.f32.mrf.mxu0
        %v2181 = vadd.f32 %v2152, %v2180
        %2182 = vdwg.mxu0
        %v2183 = vmul.f32 %v2179, 0.5
        %v2184 = vmul.f32 %v2181, 0.5
        %v2185 = vmul.f32 %v2179, 0.044715
        %v2186 = vmul.f32 %v2181, 0.044715
        %v2187 = vmul.f32 %v2185, %v2179
        %v2188 = vmul.f32 %v2186, %v2181
        %v2189 = vmul.f32 %v2187, %v2179
        %v2190 = vmul.f32 %v2188, %v2181
        %v2191 = vadd.f32 %v2179, %v2189
        %v2192 = vadd.f32 %v2181, %v2190
        %v2193 = vmul.f32 %v2191, 0.7978846
        %v2194 = vmul.f32 %v2192, 0.7978846
        %v2195 = vtanh.pop %v2193
        %v2196 = vtanh.pop %v2194
        %v2197 = vadd.f32 %v2195, 1.0
        %v2198 = vadd.f32 %v2196, 1.0
        %v2199 = vmul.f32 %v2183, %v2197
        %v2200 = vmul.f32 %v2184, %v2198
        %v2201 = vld [vmem:[%s1052] sm:$0xf]
        %v2202 = vld [vmem:[%s1052 + $0x4] sm:$0xf]
        %v2203 = vld [vmem:[%s1052 + $0x8] sm:$0xf]
        %v2204 = vld [vmem:[%s1052 + $0xc] sm:$0xf]
        %v2205 = vld [vmem:[%s1052 + $0x10] sm:$0xf]
        %v2206 = vld [vmem:[%s1052 + $0x14] sm:$0xf]
        %v2207 = vld [vmem:[%s1052 + $0x18] sm:$0xf]
        %v2208 = vld [vmem:[%s1052 + $0x1c] sm:$0xf]
        %v2209 = vpack.c.bf16 %v2200, %v2199
        %v2210 = vld [vmem:[%s1055] sm:$0x1]
        %v2212 = vperm.slane %v2210, 0
        %v2222 = vunpack.c.l.b16 %v2201
        %v2223 = vunpack.c.l.b16 %v2202
        %v2224 = vunpack.c.l.b16 %v2203
        %v2225 = vunpack.c.l.b16 %v2204
        %v2226 = vunpack.c.l.b16 %v2205
        %v2227 = vunpack.c.l.b16 %v2206
        %v2228 = vunpack.c.l.b16 %v2207
        %v2229 = vunpack.c.l.b16 %v2208
        %v2230 = vpack.c.b16 %v2223, %v2222
        %v2231 = vpack.c.b16 %v2225, %v2224
        %v2232 = vpack.c.b16 %v2227, %v2226
        %v2233 = vpack.c.b16 %v2229, %v2228
        %vm2238 = vcmask 523264
        %v2240 = vsel %vm2238, %v2209, 0
        %2242 = vmatpush.bf16.msra.mxu0 0
        %2243 = vmatpush.bf16.msra.mxu0 0
        %2244 = vmatpush.bf16.msra.mxu0 0
        %2245 = vmatpush.bf16.msra.mxu0 0
        %2246 = vmatpush.bf16.msra.mxu0 %v2233
        %2247 = vmatpush.bf16.msra.mxu0 %v2232
        %2248 = vmatpush.bf16.msra.mxu0 %v2231
        %2249 = vmatpush.bf16.msra.mxu0 %v2230
        %2250 = vmatmul.bf16.gmra.mxu0 %v2240
        %v2251 = vpop.f32.mrf.mxu0
        %v2252 = vadd.f32 %v2212, %v2251
        %v2253 = vpop.f32.mrf.mxu0
        %v2254 = vadd.f32 %v2212, %v2253
        %2255 = vdwg.mxu0
        %v2256 = vadd.f32 %v2252, %v2143
        %v2257 = vadd.f32 %v2254, %v2144
        %v2258 = vld [vmem:[%s1064] sm:$0x1]
        %v2260 = vperm.slane %v2258, 0
        %v2262 = vmul.f32 %v2256, %v2260
        %v2263 = vmul.f32 %v2257, %v2260
        %v2264 = vld [vmem:[%s1067] sm:$0x1]
        %v2266 = vperm.slane %v2264, 0
        %v2268 = vadd.f32 %v2262, %v2266
        %v2269 = vadd.f32 %v2263, %v2266
        %2270 = vst.msk [vmem:[#allocation2] sm:$0xff] %vm1274, %v2268
        %2271 = vst.msk [vmem:[#allocation2 + $0x8] sm:$0xff] %vm1274, %v2269
        %p2272 = scmp.eq.s32.totalorder %s45, 1
        // Predicated region
        $region129: #{tpu_custom_call.1} parent=123 // pred_check
          %p2273 = pneg %p2272
        $region130: #{tpu_custom_call.1} parent=123 // pred_check_branch
          %2275 = sbr.rel (%p2273) target = $region132
        $region131: #{tpu_custom_call.1} parent=123 // pred_region
          %v2276 = vld [vmem:[%s6] sm:$0xf]
          %v2277 = vld [vmem:[%s6 + $0x4] sm:$0xf]
          %v2278 = vld [vmem:[%s6 + $0x8] sm:$0xf]
          %v2279 = vld [vmem:[%s6 + $0xc] sm:$0xf]
          %v2280 = vpack.c.bf16 %v2269, %v2268
          %v2281 = vld [vmem:[%s7] sm:$0x1]
          %v2283 = vperm.slane %v2281, 0
          %v2289 = vunpack.c.l.b16 %v2276
          %v2290 = vunpack.c.l.b16 %v2277
          %v2291 = vunpack.c.l.b16 %v2278
          %v2292 = vunpack.c.l.b16 %v2279
          %v2293 = vpack.c.b16 %v2290, %v2289
          %v2294 = vpack.c.b16 %v2292, %v2291
          %v2298 = vsel %vm1274, %v2280, 0
          %2300 = vmatpush.bf16.msra.mxu0 0
          %2301 = vmatpush.bf16.msra.mxu0 0
          %2302 = vmatpush.bf16.msra.mxu0 0
          %2303 = vmatpush.bf16.msra.mxu0 0
          %2304 = vmatpush.bf16.msra.mxu0 0
          %2305 = vmatpush.bf16.msra.mxu0 0
          %2306 = vmatpush.bf16.msra.mxu0 %v2294
          %2307 = vmatpush.bf16.msra.mxu0 %v2293
          %2308 = vmatmul.bf16.gmra.mxu0 %v2298
          %v2309 = vpop.f32.mrf.mxu0
          %v2310 = vadd.f32 %v2283, %v2309
          %v2311 = vpop.f32.mrf.mxu0
          %v2312 = vadd.f32 %v2283, %v2311
          %2313 = vdwg.mxu0
          %v2314 = vmul.f32 %v2310, 0.5
          %v2315 = vmul.f32 %v2312, 0.5
          %v2316 = vmul.f32 %v2310, 0.044715
          %v2317 = vmul.f32 %v2312, 0.044715
          %v2318 = vmul.f32 %v2316, %v2310
          %v2319 = vmul.f32 %v2317, %v2312
          %v2320 = vmul.f32 %v2318, %v2310
          %v2321 = vmul.f32 %v2319, %v2312
          %v2322 = vadd.f32 %v2310, %v2320
          %v2323 = vadd.f32 %v2312, %v2321
          %v2324 = vmul.f32 %v2322, 0.7978846
          %v2325 = vmul.f32 %v2323, 0.7978846
          %v2326 = vtanh.pop %v2324
          %v2327 = vtanh.pop %v2325
          %v2328 = vadd.f32 %v2326, 1.0
          %v2329 = vadd.f32 %v2327, 1.0
          %v2330 = vmul.f32 %v2314, %v2328
          %v2331 = vmul.f32 %v2315, %v2329
          %v2332 = vld [vmem:[%s8] sm:$0x1]
          %v2334 = vperm.slane %v2332, 0
          %v2336 = vmul.f32 %v2330, %v2334
          %v2337 = vmul.f32 %v2331, %v2334
          %v2338 = vsel %vm2238, %v2336, 0.0
          %2339 = vadd.xlane.f32.xlu0 %v2338
          %v2340 = vpop.xlane.xlu0 %2339
          %v2341 = vsel %vm2238, %v2337, 0.0
          %2342 = vadd.xlane.f32.xlu0 %v2341
          %v2343 = vpop.xlane.xlu0 %2342
          %v2344 = vld [vmem:[#allocation3] sm:$0x1]
          %v2346 = vperm.slane %v2344, 0
          %2347 = vset.pattern.permute.xlu0 0
          %2348 = vperm.xlu0 %2347, %v2346
          %v2349 = vpop.permute.xlu0 %2348
          %v2351 = vadd.f32 %v2340, %v2349
          %v2352 = vadd.f32 %v2343, %v2349
          %v2355 = vlaneseq
          %v2356 = vand.u32 %v2355, 127
          %v2357 = vperm.slane %v2351, %v2356
          %v2358 = vperm.slane %v2352, %v2356
          %vm2359 = vcmask 1041409
          %v2360 = vsel %vm2359, %v2358, %v2357
          %vm2362 = vcmask 58368
          %v2363 = vsel %vm2362, %v2360, inf
          %2364 = vmin.xlane.f32.xlu0 %v2363
          %v2365 = vpop.xlane.xlu0 %2364
          %v2366 = vsel %vm2362, %v2360, -inf
          %2367 = vmax.xlane.f32.xlu0 %v2366
          %v2368 = vpop.xlane.xlu0 %2367
          %v2369 = vsub.f32 %v2368, %v2365
          %v2370 = vmax.f32 %v2369, 1e-12
          %v2371 = vrcp.pop %v2370
          %v2373 = vperm.slane %v2365, 0
          %v2374 = vperm.slane %v2365, 1
          %v2377 = vsub.f32 %v2351, %v2373
          %v2378 = vsub.f32 %v2352, %v2374
          %v2380 = vperm.slane %v2371, 0
          %v2381 = vperm.slane %v2371, 1
          %v2384 = vmul.f32 %v2377, %v2380
          %v2385 = vmul.f32 %v2378, %v2381
          %2388 = vset.pattern.permute.xlu0 0
          %2389 = vperm.xlu0 %2388, %v2384
          %v2390 = vpop.permute.xlu0 %2389
          %2391 = vset.pattern.permute.xlu0 0
          %2392 = vperm.xlu0 %2391, %v2385
          %v2393 = vpop.permute.xlu0 %2392
          %v2394 = vperm.slane %v2390, %v2356
          %v2395 = vperm.slane %v2393, %v2356
          %v2396 = vsel %vm2359, %v2395, %v2394
          %2398 = vst.msk [vmem:[#allocation4] sm:$0x3] %vm2362, %v2396
        $region132: #{tpu_custom_call.1} parent=123 // pred_fallthru
          _
        // Predicated region
        $region133: #{tpu_custom_call.1} parent=123 // pred_check
          %p2399 = pneg %p701
        $region134: #{tpu_custom_call.1} parent=123 // pred_check_branch
          %2401 = sbr.rel (%p2399) target = $region136
        $region135: #{tpu_custom_call.1} parent=123 // pred_region
          %2403 = vsyncadd [#allocation5], 0
          %s2404 = smul.addr %s44, 2
          %s2405 = scalar_lea.hbm %s26, %s2404
          %s2407 = sshll.u32 [#allocation4], 4
          %s2408 = int_to_ptr.vmem [resolvable:$true] %s2407
          %s2409 = sshll.u32 %s2405, 4
          %s2410 = int_to_ptr.hbm [resolvable:$true] %s2409
          %2412 = dma.vmem_to_hbm [thread:$0]  %s2408, 32, %s2410, [#allocation5]
        $region136: #{tpu_custom_call.1} parent=123 // pred_fallthru
          _
        // Predicated region
        $region137: #{tpu_custom_call.1} parent=123 // pred_check
          %p2413 = pneg %p701
        $region138: #{tpu_custom_call.1} parent=123 // pred_check_branch
          %2415 = sbr.rel (%p2413) target = $region140
        $region139: #{tpu_custom_call.1} parent=123 // pred_region
          %2417 = dma.done [#allocation5], 32
        $region140: #{tpu_custom_call.1} parent=123 // pred_fallthru
          _
      $region124: #{tpu_custom_call.1} parent=5 // pred_fallthru
        _
      %p2418 = scmp.le.s32.totalorder 2, %s35
      // Predicated region
      $region141: #{tpu_custom_call.1} parent=5 // pred_check
        %p2419 = pneg %p2418
      $region142: #{tpu_custom_call.1} parent=5 // pred_check_branch
        %2421 = sbr.rel (%p2419) target = $region144
      $region143: #{tpu_custom_call.1} parent=5 // pred_region
        %s2422 = ssub.s32 %s35, 2
      $region144: #{tpu_custom_call.1} parent=5 // pred_fallthru
        _
    $region6: #{tpu_custom_call.1} parent=1 // loop_footer
      %s39 = sadd.s32 1, %s35
    $region7: #{tpu_custom_call.1} parent=1 // loop_footer_branch
      %34 = sbr.rel target = $region3
    $region8: #{tpu_custom_call.1} parent=1 // loop_exit
      _
    %2423 = vsyncpa [#allocation5], 1
    %s2424 = scalar_lea.sflag [#allocation5], 1
    %2425 = vsyncpa %s2424, 1

</llo_original>
